<compile_context>
chip_gen: v7x
topology: tpu7x:2x2x1
jax: 0.10.0
libtpu: 0.0.40
codegen_flags: <defaults>
</compile_context>

<pallas_src>
import functools
import math

import jax
import jax.numpy as jnp
import numpy as np
from jax.experimental import pallas as pl
from jax.experimental.pallas import tpu as pltpu
from jax.scipy.special import erf as _erf_ref


# ----------------------------- in-kernel helpers ------------------------------------
def _gelu(z):
    """Exact (erf) GELU, matching PyTorch nn.GELU() default.
    erf via Abramowitz-Stegun 7.1.26 (|err| ~1.5e-7); the rational term uses the EUP
    approx reciprocal so it overlaps with the VALU polynomial and the exp."""
    a1, a2, a3, a4, a5 = 0.254829592, -0.284496736, 1.421413741, -1.453152027, 1.061405429
    p = 0.3275911
    s = z * 0.7071067811865476          # z / sqrt(2)
    az = jnp.abs(s)
    t = pl.reciprocal(1.0 + p * az, approx=True)
    poly = ((((a5 * t + a4) * t + a3) * t + a2) * t + a1) * t
    erf_abs = 1.0 - poly * jnp.exp(-az * az)
    erf = jnp.where(s >= 0.0, erf_abs, -erf_abs)
    return 0.5 * z * (1.0 + erf)


# ----------------------------- Pallas kernel -----------------------------------------
def _fcn_kernel(x_ref, emb_ref,
                w1_ref, b1_ref, w2_ref, b2_ref,
                w0x_ref, w0tc_ref, b0_ref,
                wm_ref, bm_ref,
                o_ref, *, num_mid):
    bf16 = jnp.bfloat16
    # bf16 x bf16 MXU matmul with f32 accumulation.
    dot = lambda a, w: jnp.dot(a.astype(bf16), w, preferred_element_type=jnp.float32)

    # Fused time+cond embedding MLPs (block-diagonal weights): 2 matmuls instead of 4.
    tc = dot(emb_ref[...], w1_ref[...]) + b1_ref[...]
    tc = dot(_gelu(tc), w2_ref[...]) + b2_ref[...]

    # main_mlp layer 0: torch.cat([x, t, c], -1) @ W0.T folded into 2 matmuls.
    h = dot(x_ref[...], w0x_ref[...]) + dot(tc, w0tc_ref[...]) + b0_ref[...]

    # remaining layers: GELU -> Linear, statically unrolled; weights resident in VMEM.
    for i in range(num_mid):
        h = dot(_gelu(h), wm_ref[i]) + bm_ref[i]

    o_ref[...] = h.astype(o_ref.dtype)


# ----------------------------- JAX glue -----------------------------------------------
def _sin_emb(v, dim):
    """SinusoidalPositionEmbeddings: (B,) -> (B, dim)."""
    half_dim = dim // 2
    freq = jnp.exp(jnp.arange(half_dim, dtype=jnp.float32)
                   * (-math.log(10000.0) / (half_dim - 1)))
    ang = v.astype(jnp.float32)[:, None] * freq[None, :]
    return jnp.concatenate([jnp.sin(ang), jnp.cos(ang)], axis=-1)


def _block_diag(a, b):
    z_tr = jnp.zeros((a.shape[0], b.shape[1]), a.dtype)
    z_bl = jnp.zeros((b.shape[0], a.shape[1]), b.dtype)
    return jnp.concatenate(
        [jnp.concatenate([a, z_tr], axis=1),
         jnp.concatenate([z_bl, b], axis=1)], axis=0)


def _pick_tile_b(B):
    # Small batches: one tile (grid=(1,)) so the weights are DMA'd exactly once and the
    # fixed per-grid-step overhead is paid once.  Large batches: 128/256-row MXU tiles.
    if B <= 256:
        return B
    for t in (256, 128, 64, 32, 16, 8):
        if B % t == 0:
            return t
    return B


def fcn_forward(x, cond, time, params, *, cond_emb_dim=64, tile_b=None):
    B, dim_in = x.shape
    half = cond_emb_dim // 2
    quarter = half // 2
    f32, bf16 = jnp.float32, jnp.bfloat16

    if tile_b is None:
        tile_b = _pick_tile_b(B)
    assert B % tile_b == 0, "batch must be a multiple of tile_b"
    n_tiles = B // tile_b

    # TODO(synk): sinusoidal sin/cos of the per-row scalars stays in the wrapper (tiny
    # (B, 32) preprocessing, akin to an embedding lookup); all Linear layers + GELUs run
    # inside the single fused Pallas kernel.
    emb = jnp.concatenate([_sin_emb(time, quarter), _sin_emb(cond, quarter)], axis=-1)

    row = lambda v: v.reshape(1, -1).astype(f32)
    # Weights transposed to (in, out) so every matmul is lane-dense in `out`; time/cond
    # MLPs fused into block-diagonal weights; bf16 weights halve HBM->VMEM DMA bytes
    # (the kernel is weight-DMA bound); accumulation stays f32.
    w1_bd = _block_diag(params["wt1"].T, params["wc1"].T).astype(bf16)   # (half, cond_emb_dim)
    b1 = row(jnp.concatenate([params["bt1"], params["bc1"]]))
    w2_bd = _block_diag(params["wt2"].T, params["wc2"].T).astype(bf16)   # (cond_emb_dim, cond_emb_dim)
    b2 = row(jnp.concatenate([params["bt2"], params["bc2"]]))
    w0T = params["w0"].T                                                 # (dim_in+cond_emb_dim, dim_in)
    w0x = w0T[:dim_in].astype(bf16)                                      # x rows of the concat
    w0tc = w0T[dim_in:].astype(bf16)                                     # [t; c] rows of the concat
    b0 = row(params["b0"])
    wmT = jnp.transpose(params["wm"], (0, 2, 1)).astype(bf16)            # (L-1, dim_in, dim_in)
    bm = params["bm"].reshape(-1, 1, dim_in).astype(f32)
    num_mid = int(wmT.shape[0])
    assert num_mid >= 1  # TODO(synk): num_layers == 1 (empty mid-layer stack) not handled.

    tiled = lambda cols: pl.BlockSpec((tile_b, cols), lambda i: (i, 0))
    full2 = lambda shp: pl.BlockSpec(shp, lambda i: (0, 0))
    full3 = lambda shp: pl.BlockSpec(shp, lambda i: (0, 0, 0))

    # Advisory cost estimate so XLA can overlap the weight DMA / custom call with
    # surrounding ops in a sampling loop.
    weight_bytes = 2 * (w1_bd.size + w2_bd.size + w0x.size + w0tc.size + wmT.size)
    bias_bytes = 4 * (b1.size + b2.size + b0.size + bm.size)
    act_bytes = 4 * (x.size + emb.size + B * dim_in)
    flops = 2 * B * (half * cond_emb_dim + cond_emb_dim * cond_emb_dim
                     + (dim_in + cond_emb_dim) * dim_in + num_mid * dim_in * dim_in)
    transcendentals = 2 * B * (cond_emb_dim + num_mid * dim_in)   # exp + recip per GELU elem

    kernel = pl.pallas_call(
        functools.partial(_fcn_kernel, num_mid=num_mid),
        out_shape=jax.ShapeDtypeStruct((B, dim_in), f32),
        grid=(n_tiles,),
        in_specs=[
            tiled(dim_in), tiled(half),                               # x, [temb|cemb]
            full2((half, cond_emb_dim)), full2((1, cond_emb_dim)),    # fused emb linear 1
            full2((cond_emb_dim, cond_emb_dim)), full2((1, cond_emb_dim)),  # fused emb linear 2
            full2((dim_in, dim_in)),                                  # W0 rows for x
            full2((cond_emb_dim, dim_in)),                            # W0 rows for [t, c]
            full2((1, dim_in)),                                       # b0
            full3((num_mid, dim_in, dim_in)),                         # stacked mid weights
            full3((num_mid, 1, dim_in)),                              # stacked mid biases
        ],
        out_specs=tiled(dim_in),
        compiler_params=pltpu.CompilerParams(
            # Only shard across cores when there is actually more than one row tile.
            dimension_semantics=(("parallel",) if n_tiles > 1 else ("arbitrary",))),
        cost_estimate=pl.CostEstimate(
            flops=int(flops),
            transcendentals=int(transcendentals),
            bytes_accessed=int(weight_bytes + bias_bytes + act_bytes)),
    )
    return kernel(x.astype(f32), emb,
                  w1_bd, b1, w2_bd, b2,
                  w0x, w0tc, b0,
                  wmT, bm)


# ----------------------------- pure-JAX reference -------------------------------------
def _ref_forward(x, cond, time, params, *, cond_emb_dim=64):
    gelu = lambda z: 0.5 * z * (1.0 + _erf_ref(z / np.sqrt(2.0)))     # exact PyTorch GELU
    lin = lambda v, w, b: v @ w.T + b
    quarter = cond_emb_dim // 4

    temb = _sin_emb(time, quarter)
    cemb = _sin_emb(cond, quarter)
    t = lin(gelu(lin(temb, params["wt1"], params["bt1"])), params["wt2"], params["bt2"])
    c = lin(gelu(lin(cemb, params["wc1"], params["bc1"])), params["wc2"], params["bc2"])

    h = jnp.concatenate([x, t, c], axis=-1)
    h = lin(h, params["w0"], params["b0"])
    for i in range(params["wm"].shape[0]):
        h = lin(gelu(h), params["wm"][i], params["bm"][i])
    return h


# ----------------------------- main ----------------------------------------------------
if __name__ == "__main__":
    B, dim_in, cond_emb_dim, num_layers = 16, 356, 64, 4
    half = cond_emb_dim // 2        # 32
    quarter = half // 2             # 16

    key = jax.random.PRNGKey(0)
    ks = list(jax.random.split(key, 20))

    def lin_init(kw, kb, out_d, in_d):
        s = 1.0 / np.sqrt(in_d)
        w = jax.random.uniform(kw, (out_d, in_d), jnp.float32, -s, s)
        b = jax.random.uniform(kb, (out_d,), jnp.float32, -s, s)
        return w, b

    wt1, bt1 = lin_init(ks[0], ks[1], half, quarter)
    wt2, bt2 = lin_init(ks[2], ks[3], half, half)
    wc1, bc1 = lin_init(ks[4], ks[5], half, quarter)
    wc2, bc2 = lin_init(ks[6], ks[7], half, half)
    w0, b0 = lin_init(ks[8], ks[9], dim_in, dim_in + cond_emb_dim)
    wm_list, bm_list = [], []
    kidx = 10
    for _ in range(num_layers - 1):
        w, b = lin_init(ks[kidx], ks[kidx + 1], dim_in, dim_in)
        kidx += 2
        wm_list.append(w)
        bm_list.append(b)

    params = dict(
        wt1=wt1, bt1=bt1, wt2=wt2, bt2=bt2,
        wc1=wc1, bc1=bc1, wc2=wc2, bc2=bc2,
        w0=w0, b0=b0,
        wm=jnp.stack(wm_list), bm=jnp.stack(bm_list),
    )

    x = jax.random.normal(ks[16], (B, dim_in), jnp.float32)
    time = jax.random.uniform(ks[17], (B,), jnp.float32, 0.0, 1000.0)
    cond = jax.random.uniform(ks[18], (B,), jnp.float32, 0.0, 10.0)

    out = jax.block_until_ready(
        fcn_forward(x, cond, time, params, cond_emb_dim=cond_emb_dim))
    ref = jax.block_until_ready(
        _ref_forward(x, cond, time, params, cond_emb_dim=cond_emb_dim))

    # bf16 weights / bf16 matmul operands with f32 accumulation -> ~1e-2-level agreement
    # with the f32 exact-erf reference.
    np.testing.assert_allclose(np.asarray(out), np.asarray(ref), rtol=2e-2, atol=2e-2)
    print("KERNEL_OK")
</pallas_src>

<mosaic_0001>
module attributes {stable_mosaic.version = 11 : i64} {
  func.func @_fcn_kernel(%arg0: i32, %arg1: memref<16x356xf32, #tpu.memory_space<vmem>>, %arg2: memref<16x32xf32, #tpu.memory_space<vmem>>, %arg3: memref<32x64xbf16, #tpu.memory_space<vmem>>, %arg4: memref<1x64xf32, #tpu.memory_space<vmem>>, %arg5: memref<64x64xbf16, #tpu.memory_space<vmem>>, %arg6: memref<1x64xf32, #tpu.memory_space<vmem>>, %arg7: memref<356x356xbf16, #tpu.memory_space<vmem>>, %arg8: memref<64x356xbf16, #tpu.memory_space<vmem>>, %arg9: memref<1x356xf32, #tpu.memory_space<vmem>>, %arg10: memref<3x356x356xbf16, #tpu.memory_space<vmem>>, %arg11: memref<3x1x356xf32, #tpu.memory_space<vmem>>, %arg12: memref<16x356xf32, #tpu.memory_space<vmem>>) attributes {dimension_semantics = [#tpu.dimension_semantics<arbitrary>], iteration_bounds = array<i64: 1>, scalar_prefetch = 0 : i64, scratch_operands = 0 : i64, tpu.core_type = #tpu.core_type<tc>, window_params = [{transform_indices = @transform_0, window_bounds = array<i64: 16, 356>}, {transform_indices = @transform_1, window_bounds = array<i64: 16, 32>}, {pipeline_mode = #tpu.pipeline_mode<synchronous>, transform_indices = @transform_2, window_bounds = array<i64: 32, 64>}, {pipeline_mode = #tpu.pipeline_mode<synchronous>, transform_indices = @transform_3, window_bounds = array<i64: 1, 64>}, {pipeline_mode = #tpu.pipeline_mode<synchronous>, transform_indices = @transform_4, window_bounds = array<i64: 64, 64>}, {pipeline_mode = #tpu.pipeline_mode<synchronous>, transform_indices = @transform_5, window_bounds = array<i64: 1, 64>}, {pipeline_mode = #tpu.pipeline_mode<synchronous>, transform_indices = @transform_6, window_bounds = array<i64: 356, 356>}, {pipeline_mode = #tpu.pipeline_mode<synchronous>, transform_indices = @transform_7, window_bounds = array<i64: 64, 356>}, {pipeline_mode = #tpu.pipeline_mode<synchronous>, transform_indices = @transform_8, window_bounds = array<i64: 1, 356>}, {pipeline_mode = #tpu.pipeline_mode<synchronous>, transform_indices = @transform_9, window_bounds = array<i64: 3, 356, 356>}, {pipeline_mode = #tpu.pipeline_mode<synchronous>, transform_indices = @transform_10, window_bounds = array<i64: 3, 1, 356>}, {transform_indices = @transform_11, window_bounds = array<i64: 16, 356>}]} {
    %c0 = arith.constant 0 : index
    %c0_0 = arith.constant 0 : index
    %0 = vector.load %arg2[%c0, %c0_0] : memref<16x32xf32, #tpu.memory_space<vmem>>, vector<16x32xf32>
    %c0_1 = arith.constant 0 : index
    %c0_2 = arith.constant 0 : index
    %1 = vector.load %arg3[%c0_1, %c0_2] : memref<32x64xbf16, #tpu.memory_space<vmem>>, vector<32x64xbf16>
    %2 = arith.truncf %0 : vector<16x32xf32> to vector<16x32xbf16>
    %cst = arith.constant dense<0.000000e+00> : vector<16x64xf32>
    %3 = tpu.matmul %2, %1, %cst {dimension_numbers = #tpu.dot_dimension_numbers<[1], [0], [0], [1], [0, 0, 1, 1], [], []>} : vector<16x32xbf16>, vector<32x64xbf16>, vector<16x64xf32> -> vector<16x64xf32>
    %c0_3 = arith.constant 0 : index
    %c0_4 = arith.constant 0 : index
    %4 = vector.load %arg4[%c0_3, %c0_4] : memref<1x64xf32, #tpu.memory_space<vmem>>, vector<1x64xf32>
    %5 = vector.broadcast %4 : vector<1x64xf32> to vector<16x64xf32>
    %6 = arith.addf %3, %5 : vector<16x64xf32>
    %cst_5 = arith.constant 0.707106769 : f32
    %7 = vector.broadcast %cst_5 : f32 to vector<16x64xf32>
    %8 = arith.mulf %6, %7 : vector<16x64xf32>
    %9 = math.absf %8 : vector<16x64xf32>
    %cst_6 = arith.constant 0.327591091 : f32
    %10 = vector.broadcast %cst_6 : f32 to vector<16x64xf32>
    %11 = arith.mulf %10, %9 : vector<16x64xf32>
    %cst_7 = arith.constant 1.000000e+00 : f32
    %12 = vector.broadcast %cst_7 : f32 to vector<16x64xf32>
    %13 = arith.addf %12, %11 : vector<16x64xf32>
    %14 = tpu.reciprocal %13 {approx = true} : vector<16x64xf32> -> vector<16x64xf32>
    %cst_8 = arith.constant 1.06140542 : f32
    %15 = vector.broadcast %cst_8 : f32 to vector<16x64xf32>
    %16 = arith.mulf %15, %14 : vector<16x64xf32>
    %cst_9 = arith.constant -1.45315206 : f32
    %17 = vector.broadcast %cst_9 : f32 to vector<16x64xf32>
    %18 = arith.addf %16, %17 : vector<16x64xf32>
    %19 = arith.mulf %18, %14 : vector<16x64xf32>
    %cst_10 = arith.constant 1.42141378 : f32
    %20 = vector.broadcast %cst_10 : f32 to vector<16x64xf32>
    %21 = arith.addf %19, %20 : vector<16x64xf32>
    %22 = arith.mulf %21, %14 : vector<16x64xf32>
    %cst_11 = arith.constant -0.284496725 : f32
    %23 = vector.broadcast %cst_11 : f32 to vector<16x64xf32>
    %24 = arith.addf %22, %23 : vector<16x64xf32>
    %25 = arith.mulf %24, %14 : vector<16x64xf32>
    %cst_12 = arith.constant 0.254829586 : f32
    %26 = vector.broadcast %cst_12 : f32 to vector<16x64xf32>
    %27 = arith.addf %25, %26 : vector<16x64xf32>
    %28 = arith.mulf %27, %14 : vector<16x64xf32>
    %cst_13 = arith.constant 0.000000e+00 : f32
    %29 = vector.broadcast %cst_13 : f32 to vector<16x64xf32>
    %30 = arith.subf %29, %9 : vector<16x64xf32>
    %31 = arith.mulf %30, %9 : vector<16x64xf32>
    %32 = math.exp %31 : vector<16x64xf32>
    %33 = arith.mulf %28, %32 : vector<16x64xf32>
    %cst_14 = arith.constant 1.000000e+00 : f32
    %34 = vector.broadcast %cst_14 : f32 to vector<16x64xf32>
    %35 = arith.subf %34, %33 : vector<16x64xf32>
    %cst_15 = arith.constant 0.000000e+00 : f32
    %36 = vector.broadcast %cst_15 : f32 to vector<16x64xf32>
    %37 = arith.cmpf oge, %8, %36 : vector<16x64xf32>
    %cst_16 = arith.constant 0.000000e+00 : f32
    %38 = vector.broadcast %cst_16 : f32 to vector<16x64xf32>
    %39 = arith.subf %38, %35 : vector<16x64xf32>
    %40 = arith.select %37, %35, %39 : vector<16x64xi1>, vector<16x64xf32>
    %cst_17 = arith.constant 5.000000e-01 : f32
    %41 = vector.broadcast %cst_17 : f32 to vector<16x64xf32>
    %42 = arith.mulf %41, %6 : vector<16x64xf32>
    %cst_18 = arith.constant 1.000000e+00 : f32
    %43 = vector.broadcast %cst_18 : f32 to vector<16x64xf32>
    %44 = arith.addf %43, %40 : vector<16x64xf32>
    %45 = arith.mulf %42, %44 : vector<16x64xf32>
    %c0_19 = arith.constant 0 : index
    %c0_20 = arith.constant 0 : index
    %46 = vector.load %arg5[%c0_19, %c0_20] : memref<64x64xbf16, #tpu.memory_space<vmem>>, vector<64x64xbf16>
    %47 = arith.truncf %45 : vector<16x64xf32> to vector<16x64xbf16>
    %cst_21 = arith.constant dense<0.000000e+00> : vector<16x64xf32>
    %48 = tpu.matmul %47, %46, %cst_21 {dimension_numbers = #tpu.dot_dimension_numbers<[1], [0], [0], [1], [0, 0, 1, 1], [], []>} : vector<16x64xbf16>, vector<64x64xbf16>, vector<16x64xf32> -> vector<16x64xf32>
    %c0_22 = arith.constant 0 : index
    %c0_23 = arith.constant 0 : index
    %49 = vector.load %arg6[%c0_22, %c0_23] : memref<1x64xf32, #tpu.memory_space<vmem>>, vector<1x64xf32>
    %50 = vector.broadcast %49 : vector<1x64xf32> to vector<16x64xf32>
    %51 = arith.addf %48, %50 : vector<16x64xf32>
    %c0_24 = arith.constant 0 : index
    %c0_25 = arith.constant 0 : index
    %52 = vector.load %arg1[%c0_24, %c0_25] : memref<16x356xf32, #tpu.memory_space<vmem>>, vector<16x356xf32>
    %c0_26 = arith.constant 0 : index
    %c0_27 = arith.constant 0 : index
    %53 = vector.load %arg7[%c0_26, %c0_27] : memref<356x356xbf16, #tpu.memory_space<vmem>>, vector<356x356xbf16>
    %54 = arith.truncf %52 : vector<16x356xf32> to vector<16x356xbf16>
    %cst_28 = arith.constant dense<0.000000e+00> : vector<16x356xf32>
    %55 = tpu.matmul %54, %53, %cst_28 {dimension_numbers = #tpu.dot_dimension_numbers<[1], [0], [0], [1], [0, 0, 1, 1], [], []>} : vector<16x356xbf16>, vector<356x356xbf16>, vector<16x356xf32> -> vector<16x356xf32>
    %c0_29 = arith.constant 0 : index
    %c0_30 = arith.constant 0 : index
    %56 = vector.load %arg8[%c0_29, %c0_30] : memref<64x356xbf16, #tpu.memory_space<vmem>>, vector<64x356xbf16>
    %57 = arith.truncf %51 : vector<16x64xf32> to vector<16x64xbf16>
    %cst_31 = arith.constant dense<0.000000e+00> : vector<16x356xf32>
    %58 = tpu.matmul %57, %56, %cst_31 {dimension_numbers = #tpu.dot_dimension_numbers<[1], [0], [0], [1], [0, 0, 1, 1], [], []>} : vector<16x64xbf16>, vector<64x356xbf16>, vector<16x356xf32> -> vector<16x356xf32>
    %59 = arith.addf %55, %58 : vector<16x356xf32>
    %c0_32 = arith.constant 0 : index
    %c0_33 = arith.constant 0 : index
    %60 = vector.load %arg9[%c0_32, %c0_33] : memref<1x356xf32, #tpu.memory_space<vmem>>, vector<1x356xf32>
    %61 = vector.broadcast %60 : vector<1x356xf32> to vector<16x356xf32>
    %62 = arith.addf %59, %61 : vector<16x356xf32>
    %cst_34 = arith.constant 0.707106769 : f32
    %63 = vector.broadcast %cst_34 : f32 to vector<16x356xf32>
    %64 = arith.mulf %62, %63 : vector<16x356xf32>
    %65 = math.absf %64 : vector<16x356xf32>
    %cst_35 = arith.constant 0.327591091 : f32
    %66 = vector.broadcast %cst_35 : f32 to vector<16x356xf32>
    %67 = arith.mulf %66, %65 : vector<16x356xf32>
    %cst_36 = arith.constant 1.000000e+00 : f32
    %68 = vector.broadcast %cst_36 : f32 to vector<16x356xf32>
    %69 = arith.addf %68, %67 : vector<16x356xf32>
    %70 = tpu.reciprocal %69 {approx = true} : vector<16x356xf32> -> vector<16x356xf32>
    %cst_37 = arith.constant 1.06140542 : f32
    %71 = vector.broadcast %cst_37 : f32 to vector<16x356xf32>
    %72 = arith.mulf %71, %70 : vector<16x356xf32>
    %cst_38 = arith.constant -1.45315206 : f32
    %73 = vector.broadcast %cst_38 : f32 to vector<16x356xf32>
    %74 = arith.addf %72, %73 : vector<16x356xf32>
    %75 = arith.mulf %74, %70 : vector<16x356xf32>
    %cst_39 = arith.constant 1.42141378 : f32
    %76 = vector.broadcast %cst_39 : f32 to vector<16x356xf32>
    %77 = arith.addf %75, %76 : vector<16x356xf32>
    %78 = arith.mulf %77, %70 : vector<16x356xf32>
    %cst_40 = arith.constant -0.284496725 : f32
    %79 = vector.broadcast %cst_40 : f32 to vector<16x356xf32>
    %80 = arith.addf %78, %79 : vector<16x356xf32>
    %81 = arith.mulf %80, %70 : vector<16x356xf32>
    %cst_41 = arith.constant 0.254829586 : f32
    %82 = vector.broadcast %cst_41 : f32 to vector<16x356xf32>
    %83 = arith.addf %81, %82 : vector<16x356xf32>
    %84 = arith.mulf %83, %70 : vector<16x356xf32>
    %cst_42 = arith.constant 0.000000e+00 : f32
    %85 = vector.broadcast %cst_42 : f32 to vector<16x356xf32>
    %86 = arith.subf %85, %65 : vector<16x356xf32>
    %87 = arith.mulf %86, %65 : vector<16x356xf32>
    %88 = math.exp %87 : vector<16x356xf32>
    %89 = arith.mulf %84, %88 : vector<16x356xf32>
    %cst_43 = arith.constant 1.000000e+00 : f32
    %90 = vector.broadcast %cst_43 : f32 to vector<16x356xf32>
    %91 = arith.subf %90, %89 : vector<16x356xf32>
    %cst_44 = arith.constant 0.000000e+00 : f32
    %92 = vector.broadcast %cst_44 : f32 to vector<16x356xf32>
    %93 = arith.cmpf oge, %64, %92 : vector<16x356xf32>
    %cst_45 = arith.constant 0.000000e+00 : f32
    %94 = vector.broadcast %cst_45 : f32 to vector<16x356xf32>
    %95 = arith.subf %94, %91 : vector<16x356xf32>
    %96 = arith.select %93, %91, %95 : vector<16x356xi1>, vector<16x356xf32>
    %cst_46 = arith.constant 5.000000e-01 : f32
    %97 = vector.broadcast %cst_46 : f32 to vector<16x356xf32>
    %98 = arith.mulf %97, %62 : vector<16x356xf32>
    %cst_47 = arith.constant 1.000000e+00 : f32
    %99 = vector.broadcast %cst_47 : f32 to vector<16x356xf32>
    %100 = arith.addf %99, %96 : vector<16x356xf32>
    %101 = arith.mulf %98, %100 : vector<16x356xf32>
    %c0_48 = arith.constant 0 : index
    %c0_49 = arith.constant 0 : index
    %c0_50 = arith.constant 0 : index
    %102 = vector.load %arg10[%c0_48, %c0_49, %c0_50] : memref<3x356x356xbf16, #tpu.memory_space<vmem>>, vector<1x356x356xbf16>
    %103 = vector.shape_cast %102 : vector<1x356x356xbf16> to vector<356x356xbf16>
    %104 = arith.truncf %101 : vector<16x356xf32> to vector<16x356xbf16>
    %cst_51 = arith.constant dense<0.000000e+00> : vector<16x356xf32>
    %105 = tpu.matmul %104, %103, %cst_51 {dimension_numbers = #tpu.dot_dimension_numbers<[1], [0], [0], [1], [0, 0, 1, 1], [], []>} : vector<16x356xbf16>, vector<356x356xbf16>, vector<16x356xf32> -> vector<16x356xf32>
    %c0_52 = arith.constant 0 : index
    %c0_53 = arith.constant 0 : index
    %c0_54 = arith.constant 0 : index
    %106 = vector.load %arg11[%c0_52, %c0_53, %c0_54] : memref<3x1x356xf32, #tpu.memory_space<vmem>>, vector<1x1x356xf32>
    %107 = vector.shape_cast %106 : vector<1x1x356xf32> to vector<1x356xf32>
    %108 = vector.broadcast %107 : vector<1x356xf32> to vector<16x356xf32>
    %109 = arith.addf %105, %108 : vector<16x356xf32>
    %cst_55 = arith.constant 0.707106769 : f32
    %110 = vector.broadcast %cst_55 : f32 to vector<16x356xf32>
    %111 = arith.mulf %109, %110 : vector<16x356xf32>
    %112 = math.absf %111 : vector<16x356xf32>
    %cst_56 = arith.constant 0.327591091 : f32
    %113 = vector.broadcast %cst_56 : f32 to vector<16x356xf32>
    %114 = arith.mulf %113, %112 : vector<16x356xf32>
    %cst_57 = arith.constant 1.000000e+00 : f32
    %115 = vector.broadcast %cst_57 : f32 to vector<16x356xf32>
    %116 = arith.addf %115, %114 : vector<16x356xf32>
    %117 = tpu.reciprocal %116 {approx = true} : vector<16x356xf32> -> vector<16x356xf32>
    %cst_58 = arith.constant 1.06140542 : f32
    %118 = vector.broadcast %cst_58 : f32 to vector<16x356xf32>
    %119 = arith.mulf %118, %117 : vector<16x356xf32>
    %cst_59 = arith.constant -1.45315206 : f32
    %120 = vector.broadcast %cst_59 : f32 to vector<16x356xf32>
    %121 = arith.addf %119, %120 : vector<16x356xf32>
    %122 = arith.mulf %121, %117 : vector<16x356xf32>
    %cst_60 = arith.constant 1.42141378 : f32
    %123 = vector.broadcast %cst_60 : f32 to vector<16x356xf32>
    %124 = arith.addf %122, %123 : vector<16x356xf32>
    %125 = arith.mulf %124, %117 : vector<16x356xf32>
    %cst_61 = arith.constant -0.284496725 : f32
    %126 = vector.broadcast %cst_61 : f32 to vector<16x356xf32>
    %127 = arith.addf %125, %126 : vector<16x356xf32>
    %128 = arith.mulf %127, %117 : vector<16x356xf32>
    %cst_62 = arith.constant 0.254829586 : f32
    %129 = vector.broadcast %cst_62 : f32 to vector<16x356xf32>
    %130 = arith.addf %128, %129 : vector<16x356xf32>
    %131 = arith.mulf %130, %117 : vector<16x356xf32>
    %cst_63 = arith.constant 0.000000e+00 : f32
    %132 = vector.broadcast %cst_63 : f32 to vector<16x356xf32>
    %133 = arith.subf %132, %112 : vector<16x356xf32>
    %134 = arith.mulf %133, %112 : vector<16x356xf32>
    %135 = math.exp %134 : vector<16x356xf32>
    %136 = arith.mulf %131, %135 : vector<16x356xf32>
    %cst_64 = arith.constant 1.000000e+00 : f32
    %137 = vector.broadcast %cst_64 : f32 to vector<16x356xf32>
    %138 = arith.subf %137, %136 : vector<16x356xf32>
    %cst_65 = arith.constant 0.000000e+00 : f32
    %139 = vector.broadcast %cst_65 : f32 to vector<16x356xf32>
    %140 = arith.cmpf oge, %111, %139 : vector<16x356xf32>
    %cst_66 = arith.constant 0.000000e+00 : f32
    %141 = vector.broadcast %cst_66 : f32 to vector<16x356xf32>
    %142 = arith.subf %141, %138 : vector<16x356xf32>
    %143 = arith.select %140, %138, %142 : vector<16x356xi1>, vector<16x356xf32>
    %cst_67 = arith.constant 5.000000e-01 : f32
    %144 = vector.broadcast %cst_67 : f32 to vector<16x356xf32>
    %145 = arith.mulf %144, %109 : vector<16x356xf32>
    %cst_68 = arith.constant 1.000000e+00 : f32
    %146 = vector.broadcast %cst_68 : f32 to vector<16x356xf32>
    %147 = arith.addf %146, %143 : vector<16x356xf32>
    %148 = arith.mulf %145, %147 : vector<16x356xf32>
    %c1 = arith.constant 1 : index
    %c0_69 = arith.constant 0 : index
    %c0_70 = arith.constant 0 : index
    %149 = vector.load %arg10[%c1, %c0_69, %c0_70] : memref<3x356x356xbf16, #tpu.memory_space<vmem>>, vector<1x356x356xbf16>
    %150 = vector.shape_cast %149 : vector<1x356x356xbf16> to vector<356x356xbf16>
    %151 = arith.truncf %148 : vector<16x356xf32> to vector<16x356xbf16>
    %cst_71 = arith.constant dense<0.000000e+00> : vector<16x356xf32>
    %152 = tpu.matmul %151, %150, %cst_71 {dimension_numbers = #tpu.dot_dimension_numbers<[1], [0], [0], [1], [0, 0, 1, 1], [], []>} : vector<16x356xbf16>, vector<356x356xbf16>, vector<16x356xf32> -> vector<16x356xf32>
    %c1_72 = arith.constant 1 : index
    %c0_73 = arith.constant 0 : index
    %c0_74 = arith.constant 0 : index
    %153 = vector.load %arg11[%c1_72, %c0_73, %c0_74] : memref<3x1x356xf32, #tpu.memory_space<vmem>>, vector<1x1x356xf32>
    %154 = vector.shape_cast %153 : vector<1x1x356xf32> to vector<1x356xf32>
    %155 = vector.broadcast %154 : vector<1x356xf32> to vector<16x356xf32>
    %156 = arith.addf %152, %155 : vector<16x356xf32>
    %cst_75 = arith.constant 0.707106769 : f32
    %157 = vector.broadcast %cst_75 : f32 to vector<16x356xf32>
    %158 = arith.mulf %156, %157 : vector<16x356xf32>
    %159 = math.absf %158 : vector<16x356xf32>
    %cst_76 = arith.constant 0.327591091 : f32
    %160 = vector.broadcast %cst_76 : f32 to vector<16x356xf32>
    %161 = arith.mulf %160, %159 : vector<16x356xf32>
    %cst_77 = arith.constant 1.000000e+00 : f32
    %162 = vector.broadcast %cst_77 : f32 to vector<16x356xf32>
    %163 = arith.addf %162, %161 : vector<16x356xf32>
    %164 = tpu.reciprocal %163 {approx = true} : vector<16x356xf32> -> vector<16x356xf32>
    %cst_78 = arith.constant 1.06140542 : f32
    %165 = vector.broadcast %cst_78 : f32 to vector<16x356xf32>
    %166 = arith.mulf %165, %164 : vector<16x356xf32>
    %cst_79 = arith.constant -1.45315206 : f32
    %167 = vector.broadcast %cst_79 : f32 to vector<16x356xf32>
    %168 = arith.addf %166, %167 : vector<16x356xf32>
    %169 = arith.mulf %168, %164 : vector<16x356xf32>
    %cst_80 = arith.constant 1.42141378 : f32
    %170 = vector.broadcast %cst_80 : f32 to vector<16x356xf32>
    %171 = arith.addf %169, %170 : vector<16x356xf32>
    %172 = arith.mulf %171, %164 : vector<16x356xf32>
    %cst_81 = arith.constant -0.284496725 : f32
    %173 = vector.broadcast %cst_81 : f32 to vector<16x356xf32>
    %174 = arith.addf %172, %173 : vector<16x356xf32>
    %175 = arith.mulf %174, %164 : vector<16x356xf32>
    %cst_82 = arith.constant 0.254829586 : f32
    %176 = vector.broadcast %cst_82 : f32 to vector<16x356xf32>
    %177 = arith.addf %175, %176 : vector<16x356xf32>
    %178 = arith.mulf %177, %164 : vector<16x356xf32>
    %cst_83 = arith.constant 0.000000e+00 : f32
    %179 = vector.broadcast %cst_83 : f32 to vector<16x356xf32>
    %180 = arith.subf %179, %159 : vector<16x356xf32>
    %181 = arith.mulf %180, %159 : vector<16x356xf32>
    %182 = math.exp %181 : vector<16x356xf32>
    %183 = arith.mulf %178, %182 : vector<16x356xf32>
    %cst_84 = arith.constant 1.000000e+00 : f32
    %184 = vector.broadcast %cst_84 : f32 to vector<16x356xf32>
    %185 = arith.subf %184, %183 : vector<16x356xf32>
    %cst_85 = arith.constant 0.000000e+00 : f32
    %186 = vector.broadcast %cst_85 : f32 to vector<16x356xf32>
    %187 = arith.cmpf oge, %158, %186 : vector<16x356xf32>
    %cst_86 = arith.constant 0.000000e+00 : f32
    %188 = vector.broadcast %cst_86 : f32 to vector<16x356xf32>
    %189 = arith.subf %188, %185 : vector<16x356xf32>
    %190 = arith.select %187, %185, %189 : vector<16x356xi1>, vector<16x356xf32>
    %cst_87 = arith.constant 5.000000e-01 : f32
    %191 = vector.broadcast %cst_87 : f32 to vector<16x356xf32>
    %192 = arith.mulf %191, %156 : vector<16x356xf32>
    %cst_88 = arith.constant 1.000000e+00 : f32
    %193 = vector.broadcast %cst_88 : f32 to vector<16x356xf32>
    %194 = arith.addf %193, %190 : vector<16x356xf32>
    %195 = arith.mulf %192, %194 : vector<16x356xf32>
    %c2 = arith.constant 2 : index
    %c0_89 = arith.constant 0 : index
    %c0_90 = arith.constant 0 : index
    %196 = vector.load %arg10[%c2, %c0_89, %c0_90] : memref<3x356x356xbf16, #tpu.memory_space<vmem>>, vector<1x356x356xbf16>
    %197 = vector.shape_cast %196 : vector<1x356x356xbf16> to vector<356x356xbf16>
    %198 = arith.truncf %195 : vector<16x356xf32> to vector<16x356xbf16>
    %cst_91 = arith.constant dense<0.000000e+00> : vector<16x356xf32>
    %199 = tpu.matmul %198, %197, %cst_91 {dimension_numbers = #tpu.dot_dimension_numbers<[1], [0], [0], [1], [0, 0, 1, 1], [], []>} : vector<16x356xbf16>, vector<356x356xbf16>, vector<16x356xf32> -> vector<16x356xf32>
    %c2_92 = arith.constant 2 : index
    %c0_93 = arith.constant 0 : index
    %c0_94 = arith.constant 0 : index
    %200 = vector.load %arg11[%c2_92, %c0_93, %c0_94] : memref<3x1x356xf32, #tpu.memory_space<vmem>>, vector<1x1x356xf32>
    %201 = vector.shape_cast %200 : vector<1x1x356xf32> to vector<1x356xf32>
    %202 = vector.broadcast %201 : vector<1x356xf32> to vector<16x356xf32>
    %203 = arith.addf %199, %202 : vector<16x356xf32>
    %c0_95 = arith.constant 0 : index
    %c0_96 = arith.constant 0 : index
    %204 = vector.load %arg12[%c0_95, %c0_96] : memref<16x356xf32, #tpu.memory_space<vmem>>, vector<16x356xf32>
    tpu.vector_store %arg12[%c0_95, %c0_96], %203 {strides = array<i32>} : memref<16x356xf32, #tpu.memory_space<vmem>>, vector<16x356xf32>,
    return
  }
  func.func @transform_0(%arg0: i32) -> (i32, i32) {
    %c0_i32 = arith.constant 0 : i32
    %c0_i32_0 = arith.constant 0 : i32
    return %arg0, %c0_i32 : i32, i32
  }
  func.func @transform_1(%arg0: i32) -> (i32, i32) {
    %c0_i32 = arith.constant 0 : i32
    %c0_i32_0 = arith.constant 0 : i32
    return %arg0, %c0_i32 : i32, i32
  }
  func.func @transform_2(%arg0: i32) -> (i32, i32) {
    %c0_i32 = arith.constant 0 : i32
    %c0_i32_0 = arith.constant 0 : i32
    %c0_i32_1 = arith.constant 0 : i32
    return %c0_i32, %c0_i32_0 : i32, i32
  }
  func.func @transform_3(%arg0: i32) -> (i32, i32) {
    %c0_i32 = arith.constant 0 : i32
    %c0_i32_0 = arith.constant 0 : i32
    %c0_i32_1 = arith.constant 0 : i32
    return %c0_i32, %c0_i32_0 : i32, i32
  }
  func.func @transform_4(%arg0: i32) -> (i32, i32) {
    %c0_i32 = arith.constant 0 : i32
    %c0_i32_0 = arith.constant 0 : i32
    %c0_i32_1 = arith.constant 0 : i32
    return %c0_i32, %c0_i32_0 : i32, i32
  }
  func.func @transform_5(%arg0: i32) -> (i32, i32) {
    %c0_i32 = arith.constant 0 : i32
    %c0_i32_0 = arith.constant 0 : i32
    %c0_i32_1 = arith.constant 0 : i32
    return %c0_i32, %c0_i32_0 : i32, i32
  }
  func.func @transform_6(%arg0: i32) -> (i32, i32) {
    %c0_i32 = arith.constant 0 : i32
    %c0_i32_0 = arith.constant 0 : i32
    %c0_i32_1 = arith.constant 0 : i32
    return %c0_i32, %c0_i32_0 : i32, i32
  }
  func.func @transform_7(%arg0: i32) -> (i32, i32) {
    %c0_i32 = arith.constant 0 : i32
    %c0_i32_0 = arith.constant 0 : i32
    %c0_i32_1 = arith.constant 0 : i32
    return %c0_i32, %c0_i32_0 : i32, i32
  }
  func.func @transform_8(%arg0: i32) -> (i32, i32) {
    %c0_i32 = arith.constant 0 : i32
    %c0_i32_0 = arith.constant 0 : i32
    %c0_i32_1 = arith.constant 0 : i32
    return %c0_i32, %c0_i32_0 : i32, i32
  }
  func.func @transform_9(%arg0: i32) -> (i32, i32, i32) {
    %c0_i32 = arith.constant 0 : i32
    %c0_i32_0 = arith.constant 0 : i32
    %c0_i32_1 = arith.constant 0 : i32
    %c0_i32_2 = arith.constant 0 : i32
    return %c0_i32, %c0_i32_0, %c0_i32_1 : i32, i32, i32
  }
  func.func @transform_10(%arg0: i32) -> (i32, i32, i32) {
    %c0_i32 = arith.constant 0 : i32
    %c0_i32_0 = arith.constant 0 : i32
    %c0_i32_1 = arith.constant 0 : i32
    %c0_i32_2 = arith.constant 0 : i32
    return %c0_i32, %c0_i32_0, %c0_i32_1 : i32, i32, i32
  }
  func.func @transform_11(%arg0: i32) -> (i32, i32) {
    %c0_i32 = arith.constant 0 : i32
    %c0_i32_0 = arith.constant 0 : i32
    return %arg0, %c0_i32 : i32, i32
  }
}

</mosaic_0001>

<llo_original>
// kernel: tpu_custom_call.1
$region0: #{tpu_custom_call.1}
  #allocation0 [shape = 'u32[]', space=smem, size = 0x4, offset = 0x4, fixed_abs, tag = 'smem constant byte address 0x4 - core index']
  #allocation1 [shape = 'u32[144,128]{1,0:T(1,128)}', space=vmem, size = 0x12000, scoped, tag = 'internal scratch']
  %s0 = inlined_call_operand.hbm [shape: f32[16,356], index: 0, kind: input, shape index: {}]
  %s1 = inlined_call_operand.hbm [shape: f32[16,32], index: 1, kind: input, shape index: {}]
  %s2 = inlined_call_operand.hbm [shape: bf16[32,64], index: 2, kind: input, shape index: {}]
  %s3 = inlined_call_operand.vmem [shape: f32[1,64], index: 3, kind: input, shape index: {}]
  %s4 = inlined_call_operand.hbm [shape: bf16[64,64], index: 4, kind: input, shape index: {}]
  %s5 = inlined_call_operand.vmem [shape: f32[1,64], index: 5, kind: input, shape index: {}]
  %s6 = inlined_call_operand.hbm [shape: bf16[356,356], index: 6, kind: input, shape index: {}]
  %s7 = inlined_call_operand.hbm [shape: bf16[64,356], index: 7, kind: input, shape index: {}]
  %s8 = inlined_call_operand.vmem [shape: f32[1,356], index: 8, kind: input, shape index: {}]
  %s9 = inlined_call_operand.hbm [shape: bf16[3,356,356], index: 9, kind: input, shape index: {}]
  %s10 = inlined_call_operand.vmem [shape: f32[3,1,356], index: 10, kind: input, shape index: {}]
  %s11 = inlined_call_operand.hbm [shape: f32[16,356], index: 11, kind: output, shape index: {}]
  %s12 = sld [smem:[#allocation0]]
  $region82: #{tpu_custom_call.1} parent=0
    _
  %s14 = ssub.s32 1, %s12
  %s15 = scalar_select 0, %s14, %s12
  $region1: #{tpu_custom_call.1} parent=0
    #allocation2 [shape = 'u8[24576]{0}', space=vmem, size = 0x6000, scoped, tag = 'input window, operand 0, single buffered']
    #allocation3 [shape = 's32[1]{0}', space=sflag, size = 0x4, scoped, tag = 'scoped memory for tpu_custom_call.1']
    #allocation4 [shape = 's32[1]{0}', space=sflag, size = 0x4, scoped, tag = 'scoped memory for tpu_custom_call.1']
    #allocation5 [shape = 'u8[8192]{0}', space=vmem, size = 0x2000, scoped, tag = 'input window, operand 1, single buffered']
    #allocation6 [shape = 's32[1]{0}', space=sflag, size = 0x4, scoped, tag = 'scoped memory for tpu_custom_call.1']
    #allocation7 [shape = 'u8[8192]{0}', space=vmem, size = 0x2000, scoped, tag = 'input window, operand 2, single buffered']
    #allocation8 [shape = 'u8[16384]{0}', space=vmem, size = 0x4000, scoped, tag = 'input window, operand 4, single buffered']
    #allocation9 [shape = 's32[1]{0}', space=sflag, size = 0x4, scoped, tag = 'scoped memory for tpu_custom_call.1']
    #allocation10 [shape = 'u8[276480]{0}', space=vmem, size = 0x43800, scoped, tag = 'input window, operand 6, single buffered']
    #allocation11 [shape = 'u8[49152]{0}', space=vmem, size = 0xc000, scoped, tag = 'input window, operand 7, single buffered']
    #allocation12 [shape = 's32[1]{0}', space=sflag, size = 0x4, scoped, tag = 'scoped memory for tpu_custom_call.1']
    #allocation13 [shape = 'u8[829440]{0}', space=vmem, size = 0xca800, scoped, tag = 'input window, operand 9, single buffered']
    #allocation14 [shape = 'u8[24576]{0}', space=vmem, size = 0x6000, scoped, tag = 'output window, operand 0, single buffered']
    %16 = vsyncpa [#allocation3], 0
    %17 = vsyncpa [#allocation6], 0
    %18 = vsyncpa [#allocation9], 0
    %19 = vsyncpa [#allocation12], 0
    %20 = vsyncpa [#allocation4], 0
    // Predicated region
    $region2: #{tpu_custom_call.1} parent=1 // pred_check
      _
    $region3: #{tpu_custom_call.1} parent=1 // pred_check_branch
      %22 = sbr.rel (0) target = $region5
    $region4: #{tpu_custom_call.1} parent=1 // pred_region
      %s24 = ssub.s32 768, 768
      %25 = vsyncadd [#allocation3], %s24
      %s26 = sshll.u32 [#allocation2], 4
      %s27 = int_to_ptr.vmem [resolvable:$true] %s26
      %32 = dma.hbm_to_vmem [thread:$0]  %s0, 768, %s27, [#allocation3], 384, 384, 24
    $region5: #{tpu_custom_call.1} parent=1 // pred_fallthru
      _
    // Predicated region
    $region6: #{tpu_custom_call.1} parent=1 // pred_check
      _
    $region7: #{tpu_custom_call.1} parent=1 // pred_check_branch
      %34 = sbr.rel (0) target = $region9
    $region8: #{tpu_custom_call.1} parent=1 // pred_region
      %s36 = ssub.s32 256, 256
      %37 = vsyncadd [#allocation6], %s36
      %s38 = sshll.u32 [#allocation5], 4
      %s39 = int_to_ptr.vmem [resolvable:$true] %s38
      %44 = dma.hbm_to_vmem [thread:$0]  %s1, 256, %s39, [#allocation6], 128, 128, 8
    $region9: #{tpu_custom_call.1} parent=1 // pred_fallthru
      _
    // Predicated region
    $region10: #{tpu_custom_call.1} parent=1 // pred_check
      _
    $region11: #{tpu_custom_call.1} parent=1 // pred_check_branch
      %46 = sbr.rel (0) target = $region13
    $region12: #{tpu_custom_call.1} parent=1 // pred_region
      %s48 = ssub.s32 256, 256
      %49 = vsyncadd [#allocation6], %s48
      %s50 = sshll.u32 [#allocation7], 4
      %s51 = int_to_ptr.vmem [resolvable:$true] %s50
      %56 = dma.hbm_to_vmem [thread:$0]  %s2, 256, %s51, [#allocation6], 64, 64, 4
    $region13: #{tpu_custom_call.1} parent=1 // pred_fallthru
      _
    // Predicated region
    $region14: #{tpu_custom_call.1} parent=1 // pred_check
      _
    $region15: #{tpu_custom_call.1} parent=1 // pred_check_branch
      %58 = sbr.rel (0) target = $region17
    $region16: #{tpu_custom_call.1} parent=1 // pred_region
      _
    $region17: #{tpu_custom_call.1} parent=1 // pred_fallthru
      _
    // Predicated region
    $region18: #{tpu_custom_call.1} parent=1 // pred_check
      _
    $region19: #{tpu_custom_call.1} parent=1 // pred_check_branch
      %60 = sbr.rel (0) target = $region21
    $region20: #{tpu_custom_call.1} parent=1 // pred_region
      %s62 = ssub.s32 512, 512
      %63 = vsyncadd [#allocation9], %s62
      %s64 = sshll.u32 [#allocation8], 4
      %s65 = int_to_ptr.vmem [resolvable:$true] %s64
      %70 = dma.hbm_to_vmem [thread:$0]  %s4, 512, %s65, [#allocation9], 64, 64, 4
    $region21: #{tpu_custom_call.1} parent=1 // pred_fallthru
      _
    // Predicated region
    $region22: #{tpu_custom_call.1} parent=1 // pred_check
      _
    $region23: #{tpu_custom_call.1} parent=1 // pred_check_branch
      %72 = sbr.rel (0) target = $region25
    $region24: #{tpu_custom_call.1} parent=1 // pred_region
      _
    $region25: #{tpu_custom_call.1} parent=1 // pred_fallthru
      _
    // Predicated region
    $region26: #{tpu_custom_call.1} parent=1 // pred_check
      _
    $region27: #{tpu_custom_call.1} parent=1 // pred_check_branch
      %74 = sbr.rel (0) target = $region29
    $region28: #{tpu_custom_call.1} parent=1 // pred_region
      %s76 = ssub.s32 8640, 8640
      %77 = vsyncadd [#allocation9], %s76
      %s78 = sshll.u32 [#allocation10], 4
      %s79 = int_to_ptr.vmem [resolvable:$true] %s78
      %84 = dma.hbm_to_vmem [thread:$0]  %s6, 8640, %s79, [#allocation9], 192, 192, 12
    $region29: #{tpu_custom_call.1} parent=1 // pred_fallthru
      _
    // Predicated region
    $region30: #{tpu_custom_call.1} parent=1 // pred_check
      _
    $region31: #{tpu_custom_call.1} parent=1 // pred_check_branch
      %86 = sbr.rel (0) target = $region33
    $region32: #{tpu_custom_call.1} parent=1 // pred_region
      %s88 = ssub.s32 1536, 1536
      %89 = vsyncadd [#allocation12], %s88
      %s90 = sshll.u32 [#allocation11], 4
      %s91 = int_to_ptr.vmem [resolvable:$true] %s90
      %96 = dma.hbm_to_vmem [thread:$0]  %s7, 1536, %s91, [#allocation12], 192, 192, 12
    $region33: #{tpu_custom_call.1} parent=1 // pred_fallthru
      _
    // Predicated region
    $region34: #{tpu_custom_call.1} parent=1 // pred_check
      _
    $region35: #{tpu_custom_call.1} parent=1 // pred_check_branch
      %98 = sbr.rel (0) target = $region37
    $region36: #{tpu_custom_call.1} parent=1 // pred_region
      _
    $region37: #{tpu_custom_call.1} parent=1 // pred_fallthru
      _
    // Predicated region
    $region38: #{tpu_custom_call.1} parent=1 // pred_check
      _
    $region39: #{tpu_custom_call.1} parent=1 // pred_check_branch
      %100 = sbr.rel (0) target = $region41
    $region40: #{tpu_custom_call.1} parent=1 // pred_region
      %s102 = ssub.s32 25920, 25920
      %103 = vsyncadd [#allocation12], %s102
      %s104 = sshll.u32 [#allocation13], 4
      %s105 = int_to_ptr.vmem [resolvable:$true] %s104
      %110 = dma.hbm_to_vmem [thread:$0]  %s9, 25920, %s105, [#allocation12], 192, 192, 12
    $region41: #{tpu_custom_call.1} parent=1 // pred_fallthru
      _
    // Predicated region
    $region42: #{tpu_custom_call.1} parent=1 // pred_check
      _
    $region43: #{tpu_custom_call.1} parent=1 // pred_check_branch
      %112 = sbr.rel (0) target = $region45
    $region44: #{tpu_custom_call.1} parent=1 // pred_region
      _
    $region45: #{tpu_custom_call.1} parent=1 // pred_fallthru
      _
    // Predicated region
    $region46: #{tpu_custom_call.1} parent=1 // pred_check
      _
    $region47: #{tpu_custom_call.1} parent=1 // pred_check_branch
      %114 = sbr.rel (0) target = $region49
    $region48: #{tpu_custom_call.1} parent=1 // pred_region
      %115 = dma.done [#allocation3], 768
    $region49: #{tpu_custom_call.1} parent=1 // pred_fallthru
      _
    // Predicated region
    $region50: #{tpu_custom_call.1} parent=1 // pred_check
      _
    $region51: #{tpu_custom_call.1} parent=1 // pred_check_branch
      %117 = sbr.rel (0) target = $region53
    $region52: #{tpu_custom_call.1} parent=1 // pred_region
      %118 = dma.done [#allocation6], 256
    $region53: #{tpu_custom_call.1} parent=1 // pred_fallthru
      _
    // Predicated region
    $region54: #{tpu_custom_call.1} parent=1 // pred_check
      _
    $region55: #{tpu_custom_call.1} parent=1 // pred_check_branch
      %120 = sbr.rel (0) target = $region57
    $region56: #{tpu_custom_call.1} parent=1 // pred_region
      %121 = dma.done [#allocation6], 256
    $region57: #{tpu_custom_call.1} parent=1 // pred_fallthru
      _
    // Predicated region
    $region58: #{tpu_custom_call.1} parent=1 // pred_check
      _
    $region59: #{tpu_custom_call.1} parent=1 // pred_check_branch
      %123 = sbr.rel (0) target = $region61
    $region60: #{tpu_custom_call.1} parent=1 // pred_region
      %124 = dma.done [#allocation9], 512
    $region61: #{tpu_custom_call.1} parent=1 // pred_fallthru
      _
    // Predicated region
    $region62: #{tpu_custom_call.1} parent=1 // pred_check
      _
    $region63: #{tpu_custom_call.1} parent=1 // pred_check_branch
      %126 = sbr.rel (0) target = $region65
    $region64: #{tpu_custom_call.1} parent=1 // pred_region
      %127 = dma.done [#allocation9], 8640
    $region65: #{tpu_custom_call.1} parent=1 // pred_fallthru
      _
    // Predicated region
    $region66: #{tpu_custom_call.1} parent=1 // pred_check
      _
    $region67: #{tpu_custom_call.1} parent=1 // pred_check_branch
      %129 = sbr.rel (0) target = $region69
    $region68: #{tpu_custom_call.1} parent=1 // pred_region
      %130 = dma.done [#allocation12], 1536
    $region69: #{tpu_custom_call.1} parent=1 // pred_fallthru
      _
    // Predicated region
    $region70: #{tpu_custom_call.1} parent=1 // pred_check
      _
    $region71: #{tpu_custom_call.1} parent=1 // pred_check_branch
      %132 = sbr.rel (0) target = $region73
    $region72: #{tpu_custom_call.1} parent=1 // pred_region
      %133 = dma.done [#allocation12], 25920
    $region73: #{tpu_custom_call.1} parent=1 // pred_fallthru
      _
    %v135 = vld [vmem:[#allocation5] sm:$0xff]
    %v136 = vld [vmem:[#allocation5 + $0x8] sm:$0xff]
    %v137 = vld [vmem:[#allocation7] sm:$0xf]
    %v138 = vld [vmem:[#allocation7 + $0x4] sm:$0xf]
    %v139 = vld [vmem:[#allocation7 + $0x8] sm:$0xf]
    %v140 = vld [vmem:[#allocation7 + $0xc] sm:$0xf]
    %v141 = vpack.c.bf16 %v136, %v135
    %v142 = vld [vmem:[%s3] sm:$0x1]
    %v144 = vlaneseq
    %v145 = vshrl.u32 %v144, 7
    %v146 = vsub.s32 0, %v145
    %v147 = vrot.slane %v142, %v146
    %v153 = vunpack.c.l.b16 %v137
    %v154 = vunpack.c.l.b16 %v138
    %v155 = vunpack.c.l.b16 %v139
    %v156 = vunpack.c.l.b16 %v140
    %v157 = vpack.c.b16 %v154, %v153
    %v158 = vpack.c.b16 %v156, %v155
    %vm161 = vcmask 261120
    %v163 = vsel %vm161, %v141, 0
    %165 = vmatprep.subr.bf16.mxu0 0
    %166 = vmatpush1.bf16.msra.mxu0 %v157
    %167 = vmatprep.subr.bf16.mxu0 0
    %168 = vmatpush1.bf16.msra.mxu0 %v158
    %169 = vmatprep.subr.bf16.mxu0 0
    %170 = vmatpush1.bf16.msra.mxu0 0
    %171 = vmatprep.subr.bf16.mxu0 0
    %172 = vmatpush1.bf16.msra.mxu0 0
    %173 = vmatprep.subr.bf16.mxu0 0
    %174 = vmatpush1.bf16.msra.mxu0 0
    %175 = vmatprep.subr.bf16.mxu0 0
    %176 = vmatpush1.bf16.msra.mxu0 0
    %177 = vmatprep.subr.bf16.mxu0 0
    %178 = vmatpush1.bf16.msra.mxu0 0
    %179 = vmatprep.subr.bf16.mxu0 0
    %180 = vmatpush1.bf16.msra.mxu0 0
    %181 = vmatprep.subr.bf16.mxu0 0
    %182 = vmatpush1.bf16.msra.mxu0 0
    %183 = vmatprep.subr.bf16.mxu0 0
    %184 = vmatpush1.bf16.msra.mxu0 0
    %185 = vmatprep.subr.bf16.mxu0 0
    %186 = vmatpush1.bf16.msra.mxu0 0
    %187 = vmatprep.subr.bf16.mxu0 0
    %188 = vmatpush1.bf16.msra.mxu0 0
    %189 = vmatprep.subr.bf16.mxu0 0
    %190 = vmatpush1.bf16.msra.mxu0 0
    %191 = vmatprep.subr.bf16.mxu0 0
    %192 = vmatpush1.bf16.msra.mxu0 0
    %193 = vmatprep.subr.bf16.mxu0 0
    %194 = vmatpush1.bf16.msra.mxu0 0
    %195 = vmatprep.subr.bf16.mxu0 0
    %196 = vmatpush1.bf16.msra.mxu0 0
    %197 = vmatprep.mubr.bf16.mxu0 0
    %198 = vmatmul.mubr.bf16.gmra.mrb[0].mxu0 %v163
    %v199 = vpop.f32.mrb[0].mxu0
    %v200 = vadd.f32 %v147, %v199
    %v201 = vpop.f32.mrb[0].mxu0
    %v202 = vpop.f32.mrb[0].mxu0
    %v203 = vadd.f32 %v147, %v202
    %v204 = vpop.f32.mrb[0].mxu0
    %205 = vdwg.mxu0
    %v206 = vmul.f32 %v200, 0.70710677
    %v207 = vmul.f32 %v203, 0.70710677
    %v208 = vand.u32 2147483647, %v206
    %v209 = vand.u32 2147483647, %v207
    %v210 = vmul.f32 %v208, 0.3275911
    %v211 = vmul.f32 %v209, 0.3275911
    %v212 = vadd.f32 %v210, 1.0
    %v213 = vadd.f32 %v211, 1.0
    %v214 = vrcp.pop %v212
    %v215 = vrcp.pop %v213
    %v216 = vmul.f32 %v214, 1.0614054
    %v217 = vmul.f32 %v215, 1.0614054
    %v218 = vadd.f32 %v216, -1.4531521
    %v219 = vadd.f32 %v217, -1.4531521
    %v220 = vmul.f32 %v218, %v214
    %v221 = vmul.f32 %v219, %v215
    %v222 = vadd.f32 %v220, 1.4214138
    %v223 = vadd.f32 %v221, 1.4214138
    %v224 = vmul.f32 %v222, %v214
    %v225 = vmul.f32 %v223, %v215
    %v226 = vadd.f32 %v224, -0.28449672
    %v227 = vadd.f32 %v225, -0.28449672
    %v228 = vmul.f32 %v226, %v214
    %v229 = vmul.f32 %v227, %v215
    %v230 = vadd.f32 %v228, 0.2548296
    %v231 = vadd.f32 %v229, 0.2548296
    %v232 = vmul.f32 %v230, %v214
    %v233 = vmul.f32 %v231, %v215
    %v234 = vsub.f32 0.0, %v208
    %v235 = vsub.f32 0.0, %v209
    %v236 = vmul.f32 %v234, %v208
    %v237 = vmul.f32 %v235, %v209
    %v238 = vmul.f32 %v236, 1.442695
    %v239 = vpow.pop %v238
    %v240 = vmul.f32 %v237, 1.442695
    %v241 = vpow.pop %v240
    %v242 = vmul.f32 %v232, %v239
    %v243 = vmul.f32 %v233, %v241
    %v244 = vsub.f32 1.0, %v242
    %v245 = vsub.f32 1.0, %v243
    %vm246 = vcmp.ge.f32.partialorder %v206, 0.0
    %vm247 = vcmp.ge.f32.partialorder %v207, 0.0
    %v248 = vsub.f32 0.0, %v244
    %v249 = vsub.f32 0.0, %v245
    %v250 = vsel %vm246, %v244, %v248
    %v251 = vsel %vm247, %v245, %v249
    %v252 = vmul.f32 %v200, 0.5
    %v253 = vmul.f32 %v203, 0.5
    %v254 = vadd.f32 %v250, 1.0
    %v255 = vadd.f32 %v251, 1.0
    %v256 = vmul.f32 %v252, %v254
    %v257 = vmul.f32 %v253, %v255
    %v258 = vld [vmem:[#allocation8] sm:$0xf]
    %v259 = vld [vmem:[#allocation8 + $0x4] sm:$0xf]
    %v260 = vld [vmem:[#allocation8 + $0x8] sm:$0xf]
    %v261 = vld [vmem:[#allocation8 + $0xc] sm:$0xf]
    %v262 = vld [vmem:[#allocation8 + $0x10] sm:$0xf]
    %v263 = vld [vmem:[#allocation8 + $0x14] sm:$0xf]
    %v264 = vld [vmem:[#allocation8 + $0x18] sm:$0xf]
    %v265 = vld [vmem:[#allocation8 + $0x1c] sm:$0xf]
    %v266 = vpack.c.bf16 %v257, %v256
    %v267 = vld [vmem:[%s5] sm:$0x1]
    %v269 = vlaneseq
    %v270 = vshrl.u32 %v269, 7
    %v271 = vsub.s32 0, %v270
    %v272 = vrot.slane %v267, %v271
    %v282 = vunpack.c.l.b16 %v258
    %v283 = vunpack.c.l.b16 %v259
    %v284 = vunpack.c.l.b16 %v260
    %v285 = vunpack.c.l.b16 %v261
    %v286 = vunpack.c.l.b16 %v262
    %v287 = vunpack.c.l.b16 %v263
    %v288 = vunpack.c.l.b16 %v264
    %v289 = vunpack.c.l.b16 %v265
    %v290 = vpack.c.b16 %v283, %v282
    %v291 = vpack.c.b16 %v285, %v284
    %v292 = vpack.c.b16 %v287, %v286
    %v293 = vpack.c.b16 %v289, %v288
    %vm298 = vcmask 523264
    %v300 = vsel %vm298, %v266, 0
    %302 = vmatprep.subr.bf16.mxu0 0
    %303 = vmatpush1.bf16.msra.mxu0 %v290
    %304 = vmatprep.subr.bf16.mxu0 0
    %305 = vmatpush1.bf16.msra.mxu0 %v291
    %306 = vmatprep.subr.bf16.mxu0 0
    %307 = vmatpush1.bf16.msra.mxu0 %v292
    %308 = vmatprep.subr.bf16.mxu0 0
    %309 = vmatpush1.bf16.msra.mxu0 %v293
    %310 = vmatprep.subr.bf16.mxu0 0
    %311 = vmatpush1.bf16.msra.mxu0 0
    %312 = vmatprep.subr.bf16.mxu0 0
    %313 = vmatpush1.bf16.msra.mxu0 0
    %314 = vmatprep.subr.bf16.mxu0 0
    %315 = vmatpush1.bf16.msra.mxu0 0
    %316 = vmatprep.subr.bf16.mxu0 0
    %317 = vmatpush1.bf16.msra.mxu0 0
    %318 = vmatprep.subr.bf16.mxu0 0
    %319 = vmatpush1.bf16.msra.mxu0 0
    %320 = vmatprep.subr.bf16.mxu0 0
    %321 = vmatpush1.bf16.msra.mxu0 0
    %322 = vmatprep.subr.bf16.mxu0 0
    %323 = vmatpush1.bf16.msra.mxu0 0
    %324 = vmatprep.subr.bf16.mxu0 0
    %325 = vmatpush1.bf16.msra.mxu0 0
    %326 = vmatprep.subr.bf16.mxu0 0
    %327 = vmatpush1.bf16.msra.mxu0 0
    %328 = vmatprep.subr.bf16.mxu0 0
    %329 = vmatpush1.bf16.msra.mxu0 0
    %330 = vmatprep.subr.bf16.mxu0 0
    %331 = vmatpush1.bf16.msra.mxu0 0
    %332 = vmatprep.subr.bf16.mxu0 0
    %333 = vmatpush1.bf16.msra.mxu0 0
    %334 = vmatprep.mubr.bf16.mxu0 0
    %335 = vmatmul.mubr.bf16.gmra.mrb[0].mxu0 %v300
    %v336 = vpop.f32.mrb[0].mxu0
    %v337 = vadd.f32 %v272, %v336
    %v338 = vpop.f32.mrb[0].mxu0
    %v339 = vpop.f32.mrb[0].mxu0
    %v340 = vadd.f32 %v272, %v339
    %v341 = vpop.f32.mrb[0].mxu0
    %342 = vdwg.mxu0
    %v343 = vld [vmem:[#allocation2] sm:$0xff]
    %v344 = vld [vmem:[#allocation2 + $0x8] sm:$0xff]
    %v345 = vld [vmem:[#allocation2 + $0x10] sm:$0xff]
    %v346 = vld [vmem:[#allocation2 + $0x18] sm:$0xff]
    %v347 = vld [vmem:[#allocation2 + $0x20] sm:$0xff]
    %v348 = vld [vmem:[#allocation2 + $0x28] sm:$0xff]
    %v349 = vld [vmem:[#allocation10] sm:$0xff]
    %v350 = vld [vmem:[#allocation10 + $0x8] sm:$0xf]
    %v351 = vld [vmem:[#allocation10 + $0xc] sm:$0xff]
    %v352 = vld [vmem:[#allocation10 + $0x14] sm:$0xf]
    %v353 = vld [vmem:[#allocation10 + $0x18] sm:$0xff]
    %v354 = vld [vmem:[#allocation10 + $0x20] sm:$0xf]
    %v355 = vld [vmem:[#allocation10 + $0x24] sm:$0xff]
    %v356 = vld [vmem:[#allocation10 + $0x2c] sm:$0xf]
    %v357 = vld [vmem:[#allocation10 + $0x30] sm:$0xff]
    %v358 = vld [vmem:[#allocation10 + $0x38] sm:$0xf]
    %v359 = vld [vmem:[#allocation10 + $0x3c] sm:$0xff]
    %v360 = vld [vmem:[#allocation10 + $0x44] sm:$0xf]
    %v361 = vld [vmem:[#allocation10 + $0x48] sm:$0xff]
    %v362 = vld [vmem:[#allocation10 + $0x50] sm:$0xf]
    %v363 = vld [vmem:[#allocation10 + $0x54] sm:$0xff]
    %v364 = vld [vmem:[#allocation10 + $0x5c] sm:$0xf]
    %v365 = vld [vmem:[#allocation10 + $0x60] sm:$0xff]
    %v366 = vld [vmem:[#allocation10 + $0x68] sm:$0xf]
    %v367 = vld [vmem:[#allocation10 + $0x6c] sm:$0xff]
    %v368 = vld [vmem:[#allocation10 + $0x74] sm:$0xf]
    %v369 = vld [vmem:[#allocation10 + $0x78] sm:$0xff]
    %v370 = vld [vmem:[#allocation10 + $0x80] sm:$0xf]
    %v371 = vld [vmem:[#allocation10 + $0x84] sm:$0xff]
    %v372 = vld [vmem:[#allocation10 + $0x8c] sm:$0xf]
    %v373 = vld [vmem:[#allocation10 + $0x90] sm:$0xff]
    %v374 = vld [vmem:[#allocation10 + $0x98] sm:$0xf]
    %v375 = vld [vmem:[#allocation10 + $0x9c] sm:$0xff]
    %v376 = vld [vmem:[#allocation10 + $0xa4] sm:$0xf]
    %v377 = vld [vmem:[#allocation10 + $0xa8] sm:$0xff]
    %v378 = vld [vmem:[#allocation10 + $0xb0] sm:$0xf]
    %v379 = vld [vmem:[#allocation10 + $0xb4] sm:$0xff]
    %v380 = vld [vmem:[#allocation10 + $0xbc] sm:$0xf]
    %v381 = vld [vmem:[#allocation10 + $0xc0] sm:$0xff]
    %v382 = vld [vmem:[#allocation10 + $0xc8] sm:$0xf]
    %v383 = vld [vmem:[#allocation10 + $0xcc] sm:$0xff]
    %v384 = vld [vmem:[#allocation10 + $0xd4] sm:$0xf]
    %v385 = vld [vmem:[#allocation10 + $0xd8] sm:$0xff]
    %v386 = vld [vmem:[#allocation10 + $0xe0] sm:$0xf]
    %v387 = vld [vmem:[#allocation10 + $0xe4] sm:$0xff]
    %v388 = vld [vmem:[#allocation10 + $0xec] sm:$0xf]
    %v389 = vld [vmem:[#allocation10 + $0xf0] sm:$0xff]
    %v390 = vld [vmem:[#allocation10 + $0xf8] sm:$0xf]
    %v391 = vld [vmem:[#allocation10 + $0xfc] sm:$0xff]
    %v392 = vld [vmem:[#allocation10 + $0x104] sm:$0xf]
    %v393 = vld [vmem:[#allocation10 + $0x108] sm:$0xff]
    %v394 = vld [vmem:[#allocation10 + $0x110] sm:$0xf]
    %v395 = vld [vmem:[#allocation10 + $0x114] sm:$0xff]
    %v396 = vld [vmem:[#allocation10 + $0x11c] sm:$0xf]
    %v397 = vld [vmem:[#allocation10 + $0x120] sm:$0xff]
    %v398 = vld [vmem:[#allocation10 + $0x128] sm:$0xf]
    %v399 = vld [vmem:[#allocation10 + $0x12c] sm:$0xff]
    %v400 = vld [vmem:[#allocation10 + $0x134] sm:$0xf]
    %v401 = vld [vmem:[#allocation10 + $0x138] sm:$0xff]
    %v402 = vld [vmem:[#allocation10 + $0x140] sm:$0xf]
    %v403 = vld [vmem:[#allocation10 + $0x144] sm:$0xff]
    %v404 = vld [vmem:[#allocation10 + $0x14c] sm:$0xf]
    %v405 = vld [vmem:[#allocation10 + $0x150] sm:$0xff]
    %v406 = vld [vmem:[#allocation10 + $0x158] sm:$0xf]
    %v407 = vld [vmem:[#allocation10 + $0x15c] sm:$0xff]
    %v408 = vld [vmem:[#allocation10 + $0x164] sm:$0xf]
    %v409 = vld [vmem:[#allocation10 + $0x168] sm:$0xff]
    %v410 = vld [vmem:[#allocation10 + $0x170] sm:$0xf]
    %v411 = vld [vmem:[#allocation10 + $0x174] sm:$0xff]
    %v412 = vld [vmem:[#allocation10 + $0x17c] sm:$0xf]
    %v413 = vld [vmem:[#allocation10 + $0x180] sm:$0xff]
    %v414 = vld [vmem:[#allocation10 + $0x188] sm:$0xf]
    %v415 = vld [vmem:[#allocation10 + $0x18c] sm:$0xff]
    %v416 = vld [vmem:[#allocation10 + $0x194] sm:$0xf]
    %v417 = vld [vmem:[#allocation10 + $0x198] sm:$0xff]
    %v418 = vld [vmem:[#allocation10 + $0x1a0] sm:$0xf]
    %v419 = vld [vmem:[#allocation10 + $0x1a4] sm:$0xff]
    %v420 = vld [vmem:[#allocation10 + $0x1ac] sm:$0xf]
    %v421 = vld [vmem:[#allocation10 + $0x1b0] sm:$0xff]
    %v422 = vld [vmem:[#allocation10 + $0x1b8] sm:$0xf]
    %v423 = vld [vmem:[#allocation10 + $0x1bc] sm:$0xff]
    %v424 = vld [vmem:[#allocation10 + $0x1c4] sm:$0xf]
    %v425 = vld [vmem:[#allocation10 + $0x1c8] sm:$0xff]
    %v426 = vld [vmem:[#allocation10 + $0x1d0] sm:$0xf]
    %v427 = vld [vmem:[#allocation10 + $0x1d4] sm:$0xff]
    %v428 = vld [vmem:[#allocation10 + $0x1dc] sm:$0xf]
    %v429 = vld [vmem:[#allocation10 + $0x1e0] sm:$0xff]
    %v430 = vld [vmem:[#allocation10 + $0x1e8] sm:$0xf]
    %v431 = vld [vmem:[#allocation10 + $0x1ec] sm:$0xff]
    %v432 = vld [vmem:[#allocation10 + $0x1f4] sm:$0xf]
    %v433 = vld [vmem:[#allocation10 + $0x1f8] sm:$0xff]
    %v434 = vld [vmem:[#allocation10 + $0x200] sm:$0xf]
    %v435 = vld [vmem:[#allocation10 + $0x204] sm:$0xff]
    %v436 = vld [vmem:[#allocation10 + $0x20c] sm:$0xf]
    %v437 = vld [vmem:[#allocation10 + $0x210] sm:$0x33]
    %v438 = vld [vmem:[#allocation10 + $0x218] sm:$0x3]
    %v439 = vpack.c.bf16 %v346, %v343
    %v440 = vpack.c.bf16 %v347, %v344
    %v441 = vpack.c.bf16 %v348, %v345
    %v442 = vld [vmem:[#allocation11] sm:$0xff]
    %v443 = vld [vmem:[#allocation11 + $0x8] sm:$0xf]
    %v444 = vld [vmem:[#allocation11 + $0xc] sm:$0xff]
    %v445 = vld [vmem:[#allocation11 + $0x14] sm:$0xf]
    %v446 = vld [vmem:[#allocation11 + $0x18] sm:$0xff]
    %v447 = vld [vmem:[#allocation11 + $0x20] sm:$0xf]
    %v448 = vld [vmem:[#allocation11 + $0x24] sm:$0xff]
    %v449 = vld [vmem:[#allocation11 + $0x2c] sm:$0xf]
    %v450 = vld [vmem:[#allocation11 + $0x30] sm:$0xff]
    %v451 = vld [vmem:[#allocation11 + $0x38] sm:$0xf]
    %v452 = vld [vmem:[#allocation11 + $0x3c] sm:$0xff]
    %v453 = vld [vmem:[#allocation11 + $0x44] sm:$0xf]
    %v454 = vld [vmem:[#allocation11 + $0x48] sm:$0xff]
    %v455 = vld [vmem:[#allocation11 + $0x50] sm:$0xf]
    %v456 = vld [vmem:[#allocation11 + $0x54] sm:$0xff]
    %v457 = vld [vmem:[#allocation11 + $0x5c] sm:$0xf]
    %v458 = vpack.c.bf16 %v340, %v337
    %v475 = vunpack.c.l.b16 %v442
    %v476 = vunpack.c.h.b16 %v442
    %v477 = vunpack.c.l.b16 %v443
    %v478 = vunpack.c.l.b16 %v444
    %v479 = vunpack.c.h.b16 %v444
    %v480 = vunpack.c.l.b16 %v445
    %v481 = vunpack.c.l.b16 %v446
    %v482 = vunpack.c.h.b16 %v446
    %v483 = vunpack.c.l.b16 %v447
    %v484 = vunpack.c.l.b16 %v448
    %v485 = vunpack.c.h.b16 %v448
    %v486 = vunpack.c.l.b16 %v449
    %v487 = vunpack.c.l.b16 %v450
    %v488 = vunpack.c.h.b16 %v450
    %v489 = vunpack.c.l.b16 %v451
    %v490 = vunpack.c.l.b16 %v452
    %v491 = vunpack.c.h.b16 %v452
    %v492 = vunpack.c.l.b16 %v453
    %v493 = vunpack.c.l.b16 %v454
    %v494 = vunpack.c.h.b16 %v454
    %v495 = vunpack.c.l.b16 %v455
    %v496 = vunpack.c.l.b16 %v456
    %v497 = vunpack.c.h.b16 %v456
    %v498 = vunpack.c.l.b16 %v457
    %v499 = vpack.c.b16 %v478, %v475
    %v500 = vpack.c.b16 %v479, %v476
    %v501 = vpack.c.b16 %v480, %v477
    %v502 = vpack.c.b16 %v484, %v481
    %v503 = vpack.c.b16 %v485, %v482
    %v504 = vpack.c.b16 %v486, %v483
    %v505 = vpack.c.b16 %v490, %v487
    %v506 = vpack.c.b16 %v491, %v488
    %v507 = vpack.c.b16 %v492, %v489
    %v508 = vpack.c.b16 %v496, %v493
    %v509 = vpack.c.b16 %v497, %v494
    %v510 = vpack.c.b16 %v498, %v495
    %v524 = vsel %vm298, %v458, 0
    %526 = vmatprep.subr.bf16.mxu0 %v500
    %527 = vmatpush1.bf16.msra.mxu0 %v499
    %528 = vmatprep.subr.bf16.mxu0 %v503
    %529 = vmatpush1.bf16.msra.mxu0 %v502
    %530 = vmatprep.subr.bf16.mxu0 %v506
    %531 = vmatpush1.bf16.msra.mxu0 %v505
    %532 = vmatprep.subr.bf16.mxu0 %v509
    %533 = vmatpush1.bf16.msra.mxu0 %v508
    %534 = vmatprep.subr.bf16.mxu0 0
    %535 = vmatpush1.bf16.msra.mxu0 0
    %536 = vmatprep.subr.bf16.mxu0 0
    %537 = vmatpush1.bf16.msra.mxu0 0
    %538 = vmatprep.subr.bf16.mxu0 0
    %539 = vmatpush1.bf16.msra.mxu0 0
    %540 = vmatprep.subr.bf16.mxu0 0
    %541 = vmatpush1.bf16.msra.mxu0 0
    %542 = vmatprep.subr.bf16.mxu0 0
    %543 = vmatpush1.bf16.msra.mxu0 0
    %544 = vmatprep.subr.bf16.mxu0 0
    %545 = vmatpush1.bf16.msra.mxu0 0
    %546 = vmatprep.subr.bf16.mxu0 0
    %547 = vmatpush1.bf16.msra.mxu0 0
    %548 = vmatprep.subr.bf16.mxu0 0
    %549 = vmatpush1.bf16.msra.mxu0 0
    %550 = vmatprep.subr.bf16.mxu0 0
    %551 = vmatpush1.bf16.msra.mxu0 0
    %552 = vmatprep.subr.bf16.mxu0 0
    %553 = vmatpush1.bf16.msra.mxu0 0
    %554 = vmatprep.subr.bf16.mxu0 0
    %555 = vmatpush1.bf16.msra.mxu0 0
    %556 = vmatprep.subr.bf16.mxu0 0
    %557 = vmatpush1.bf16.msra.mxu0 0
    %558 = vmatprep.mubr.bf16.mxu0 0
    %559 = vmatmul.mubr.bf16.gmra.mrb[0].mxu0 %v524
    %v560 = vpop.f32.mrb[0].mxu0
    %v561 = vadd.f32 0.0, %v560
    %v562 = vpop.f32.mrb[0].mxu0
    %v563 = vadd.f32 0.0, %v562
    %v564 = vpop.f32.mrb[0].mxu0
    %v565 = vadd.f32 0.0, %v564
    %v566 = vpop.f32.mrb[0].mxu0
    %v567 = vadd.f32 0.0, %v566
    %568 = vdwg.mxu0
    %569 = vmatprep.subr.bf16.mxu0 0
    %570 = vmatpush1.bf16.msra.mxu0 %v501
    %571 = vmatprep.subr.bf16.mxu0 0
    %572 = vmatpush1.bf16.msra.mxu0 %v504
    %573 = vmatprep.subr.bf16.mxu0 0
    %574 = vmatpush1.bf16.msra.mxu0 %v507
    %575 = vmatprep.subr.bf16.mxu0 0
    %576 = vmatpush1.bf16.msra.mxu0 %v510
    %577 = vmatprep.subr.bf16.mxu0 0
    %578 = vmatpush1.bf16.msra.mxu0 0
    %579 = vmatprep.subr.bf16.mxu0 0
    %580 = vmatpush1.bf16.msra.mxu0 0
    %581 = vmatprep.subr.bf16.mxu0 0
    %582 = vmatpush1.bf16.msra.mxu0 0
    %583 = vmatprep.subr.bf16.mxu0 0
    %584 = vmatpush1.bf16.msra.mxu0 0
    %585 = vmatprep.subr.bf16.mxu0 0
    %586 = vmatpush1.bf16.msra.mxu0 0
    %587 = vmatprep.subr.bf16.mxu0 0
    %588 = vmatpush1.bf16.msra.mxu0 0
    %589 = vmatprep.subr.bf16.mxu0 0
    %590 = vmatpush1.bf16.msra.mxu0 0
    %591 = vmatprep.subr.bf16.mxu0 0
    %592 = vmatpush1.bf16.msra.mxu0 0
    %593 = vmatprep.subr.bf16.mxu0 0
    %594 = vmatpush1.bf16.msra.mxu0 0
    %595 = vmatprep.subr.bf16.mxu0 0
    %596 = vmatpush1.bf16.msra.mxu0 0
    %597 = vmatprep.subr.bf16.mxu0 0
    %598 = vmatpush1.bf16.msra.mxu0 0
    %599 = vmatprep.subr.bf16.mxu0 0
    %600 = vmatpush1.bf16.msra.mxu0 0
    %601 = vmatprep.mubr.bf16.mxu0 0
    %602 = vmatmul.mubr.bf16.gmra.mrb[0].mxu0 %v524
    %v603 = vpop.f32.mrb[0].mxu0
    %v604 = vadd.f32 0.0, %v603
    %v605 = vpop.f32.mrb[0].mxu0
    %v606 = vpop.f32.mrb[0].mxu0
    %v607 = vadd.f32 0.0, %v606
    %v608 = vpop.f32.mrb[0].mxu0
    %609 = vdwg.mxu0
    %v700 = vunpack.c.l.b16 %v349
    %v701 = vunpack.c.h.b16 %v349
    %v702 = vunpack.c.l.b16 %v350
    %v703 = vunpack.c.l.b16 %v351
    %v704 = vunpack.c.h.b16 %v351
    %v705 = vunpack.c.l.b16 %v352
    %v706 = vunpack.c.l.b16 %v353
    %v707 = vunpack.c.h.b16 %v353
    %v708 = vunpack.c.l.b16 %v354
    %v709 = vunpack.c.l.b16 %v355
    %v710 = vunpack.c.h.b16 %v355
    %v711 = vunpack.c.l.b16 %v356
    %v712 = vunpack.c.l.b16 %v357
    %v713 = vunpack.c.h.b16 %v357
    %v714 = vunpack.c.l.b16 %v358
    %v715 = vunpack.c.l.b16 %v359
    %v716 = vunpack.c.h.b16 %v359
    %v717 = vunpack.c.l.b16 %v360
    %v718 = vunpack.c.l.b16 %v361
    %v719 = vunpack.c.h.b16 %v361
    %v720 = vunpack.c.l.b16 %v362
    %v721 = vunpack.c.l.b16 %v363
    %v722 = vunpack.c.h.b16 %v363
    %v723 = vunpack.c.l.b16 %v364
    %v724 = vunpack.c.l.b16 %v365
    %v725 = vunpack.c.h.b16 %v365
    %v726 = vunpack.c.l.b16 %v366
    %v727 = vunpack.c.l.b16 %v367
    %v728 = vunpack.c.h.b16 %v367
    %v729 = vunpack.c.l.b16 %v368
    %v730 = vunpack.c.l.b16 %v369
    %v731 = vunpack.c.h.b16 %v369
    %v732 = vunpack.c.l.b16 %v370
    %v733 = vunpack.c.l.b16 %v371
    %v734 = vunpack.c.h.b16 %v371
    %v735 = vunpack.c.l.b16 %v372
    %v736 = vunpack.c.l.b16 %v373
    %v737 = vunpack.c.h.b16 %v373
    %v738 = vunpack.c.l.b16 %v374
    %v739 = vunpack.c.l.b16 %v375
    %v740 = vunpack.c.h.b16 %v375
    %v741 = vunpack.c.l.b16 %v376
    %v742 = vunpack.c.l.b16 %v377
    %v743 = vunpack.c.h.b16 %v377
    %v744 = vunpack.c.l.b16 %v378
    %v745 = vunpack.c.l.b16 %v379
    %v746 = vunpack.c.h.b16 %v379
    %v747 = vunpack.c.l.b16 %v380
    %v748 = vunpack.c.l.b16 %v381
    %v749 = vunpack.c.h.b16 %v381
    %v750 = vunpack.c.l.b16 %v382
    %v751 = vunpack.c.l.b16 %v383
    %v752 = vunpack.c.h.b16 %v383
    %v753 = vunpack.c.l.b16 %v384
    %v754 = vunpack.c.l.b16 %v385
    %v755 = vunpack.c.h.b16 %v385
    %v756 = vunpack.c.l.b16 %v386
    %v757 = vunpack.c.l.b16 %v387
    %v758 = vunpack.c.h.b16 %v387
    %v759 = vunpack.c.l.b16 %v388
    %v760 = vunpack.c.l.b16 %v389
    %v761 = vunpack.c.h.b16 %v389
    %v762 = vunpack.c.l.b16 %v390
    %v763 = vunpack.c.l.b16 %v391
    %v764 = vunpack.c.h.b16 %v391
    %v765 = vunpack.c.l.b16 %v392
    %v766 = vunpack.c.l.b16 %v393
    %v767 = vunpack.c.h.b16 %v393
    %v768 = vunpack.c.l.b16 %v394
    %v769 = vunpack.c.l.b16 %v395
    %v770 = vunpack.c.h.b16 %v395
    %v771 = vunpack.c.l.b16 %v396
    %v772 = vunpack.c.l.b16 %v397
    %v773 = vunpack.c.h.b16 %v397
    %v774 = vunpack.c.l.b16 %v398
    %v775 = vunpack.c.l.b16 %v399
    %v776 = vunpack.c.h.b16 %v399
    %v777 = vunpack.c.l.b16 %v400
    %v778 = vunpack.c.l.b16 %v401
    %v779 = vunpack.c.h.b16 %v401
    %v780 = vunpack.c.l.b16 %v402
    %v781 = vunpack.c.l.b16 %v403
    %v782 = vunpack.c.h.b16 %v403
    %v783 = vunpack.c.l.b16 %v404
    %v784 = vunpack.c.l.b16 %v405
    %v785 = vunpack.c.h.b16 %v405
    %v786 = vunpack.c.l.b16 %v406
    %v787 = vunpack.c.l.b16 %v407
    %v788 = vunpack.c.h.b16 %v407
    %v789 = vunpack.c.l.b16 %v408
    %v790 = vunpack.c.l.b16 %v409
    %v791 = vunpack.c.h.b16 %v409
    %v792 = vunpack.c.l.b16 %v410
    %v793 = vunpack.c.l.b16 %v411
    %v794 = vunpack.c.h.b16 %v411
    %v795 = vunpack.c.l.b16 %v412
    %v796 = vunpack.c.l.b16 %v413
    %v797 = vunpack.c.h.b16 %v413
    %v798 = vunpack.c.l.b16 %v414
    %v799 = vunpack.c.l.b16 %v415
    %v800 = vunpack.c.h.b16 %v415
    %v801 = vunpack.c.l.b16 %v416
    %v802 = vunpack.c.l.b16 %v417
    %v803 = vunpack.c.h.b16 %v417
    %v804 = vunpack.c.l.b16 %v418
    %v805 = vunpack.c.l.b16 %v419
    %v806 = vunpack.c.h.b16 %v419
    %v807 = vunpack.c.l.b16 %v420
    %v808 = vunpack.c.l.b16 %v421
    %v809 = vunpack.c.h.b16 %v421
    %v810 = vunpack.c.l.b16 %v422
    %v811 = vunpack.c.l.b16 %v423
    %v812 = vunpack.c.h.b16 %v423
    %v813 = vunpack.c.l.b16 %v424
    %v814 = vunpack.c.l.b16 %v425
    %v815 = vunpack.c.h.b16 %v425
    %v816 = vunpack.c.l.b16 %v426
    %v817 = vunpack.c.l.b16 %v427
    %v818 = vunpack.c.h.b16 %v427
    %v819 = vunpack.c.l.b16 %v428
    %v820 = vunpack.c.l.b16 %v429
    %v821 = vunpack.c.h.b16 %v429
    %v822 = vunpack.c.l.b16 %v430
    %v823 = vunpack.c.l.b16 %v431
    %v824 = vunpack.c.h.b16 %v431
    %v825 = vunpack.c.l.b16 %v432
    %v826 = vunpack.c.l.b16 %v433
    %v827 = vunpack.c.h.b16 %v433
    %v828 = vunpack.c.l.b16 %v434
    %v829 = vunpack.c.l.b16 %v435
    %v830 = vunpack.c.h.b16 %v435
    %v831 = vunpack.c.l.b16 %v436
    %v832 = vunpack.c.l.b16 %v437
    %v833 = vunpack.c.h.b16 %v437
    %v834 = vunpack.c.l.b16 %v438
    %v835 = vpack.c.b16 %v703, %v700
    %v836 = vpack.c.b16 %v704, %v701
    %v837 = vpack.c.b16 %v705, %v702
    %v838 = vpack.c.b16 %v709, %v706
    %v839 = vpack.c.b16 %v710, %v707
    %v840 = vpack.c.b16 %v711, %v708
    %v841 = vpack.c.b16 %v715, %v712
    %v842 = vpack.c.b16 %v716, %v713
    %v843 = vpack.c.b16 %v717, %v714
    %v844 = vpack.c.b16 %v721, %v718
    %v845 = vpack.c.b16 %v722, %v719
    %v846 = vpack.c.b16 %v723, %v720
    %v847 = vpack.c.b16 %v727, %v724
    %v848 = vpack.c.b16 %v728, %v725
    %v849 = vpack.c.b16 %v729, %v726
    %v850 = vpack.c.b16 %v733, %v730
    %v851 = vpack.c.b16 %v734, %v731
    %v852 = vpack.c.b16 %v735, %v732
    %v853 = vpack.c.b16 %v739, %v736
    %v854 = vpack.c.b16 %v740, %v737
    %v855 = vpack.c.b16 %v741, %v738
    %v856 = vpack.c.b16 %v745, %v742
    %v857 = vpack.c.b16 %v746, %v743
    %v858 = vpack.c.b16 %v747, %v744
    %v859 = vpack.c.b16 %v751, %v748
    %v860 = vpack.c.b16 %v752, %v749
    %v861 = vpack.c.b16 %v753, %v750
    %v862 = vpack.c.b16 %v757, %v754
    %v863 = vpack.c.b16 %v758, %v755
    %v864 = vpack.c.b16 %v759, %v756
    %v865 = vpack.c.b16 %v763, %v760
    %v866 = vpack.c.b16 %v764, %v761
    %v867 = vpack.c.b16 %v765, %v762
    %v868 = vpack.c.b16 %v769, %v766
    %v869 = vpack.c.b16 %v770, %v767
    %v870 = vpack.c.b16 %v771, %v768
    %v871 = vpack.c.b16 %v775, %v772
    %v872 = vpack.c.b16 %v776, %v773
    %v873 = vpack.c.b16 %v777, %v774
    %v874 = vpack.c.b16 %v781, %v778
    %v875 = vpack.c.b16 %v782, %v779
    %v876 = vpack.c.b16 %v783, %v780
    %v877 = vpack.c.b16 %v787, %v784
    %v878 = vpack.c.b16 %v788, %v785
    %v879 = vpack.c.b16 %v789, %v786
    %v880 = vpack.c.b16 %v793, %v790
    %v881 = vpack.c.b16 %v794, %v791
    %v882 = vpack.c.b16 %v795, %v792
    %v883 = vpack.c.b16 %v799, %v796
    %v884 = vpack.c.b16 %v800, %v797
    %v885 = vpack.c.b16 %v801, %v798
    %v886 = vpack.c.b16 %v805, %v802
    %v887 = vpack.c.b16 %v806, %v803
    %v888 = vpack.c.b16 %v807, %v804
    %v889 = vpack.c.b16 %v811, %v808
    %v890 = vpack.c.b16 %v812, %v809
    %v891 = vpack.c.b16 %v813, %v810
    %v892 = vpack.c.b16 %v817, %v814
    %v893 = vpack.c.b16 %v818, %v815
    %v894 = vpack.c.b16 %v819, %v816
    %v895 = vpack.c.b16 %v823, %v820
    %v896 = vpack.c.b16 %v824, %v821
    %v897 = vpack.c.b16 %v825, %v822
    %v898 = vpack.c.b16 %v829, %v826
    %v899 = vpack.c.b16 %v830, %v827
    %v900 = vpack.c.b16 %v831, %v828
    %v901 = vpack.c.b16 %v832, %v832
    %v902 = vpack.c.b16 %v833, %v833
    %v903 = vpack.c.b16 %v834, %v834
    %vm970 = vcmask 818176
    %v972 = vsel %vm970, %v441, 0
    %vm974 = vcmask 1041408
    %v976 = vsel %vm974, %v901, 0
    %v979 = vsel %vm974, %v902, 0
    %v982 = vsel %vm974, %v903, 0
    %984 = vmatprep.subr.bf16.mxu0 %v836
    %985 = vmatpush1.bf16.msra.mxu0 %v835
    %986 = vmatprep.subr.bf16.mxu0 %v839
    %987 = vmatpush1.bf16.msra.mxu0 %v838
    %988 = vmatprep.subr.bf16.mxu0 %v842
    %989 = vmatpush1.bf16.msra.mxu0 %v841
    %990 = vmatprep.subr.bf16.mxu0 %v845
    %991 = vmatpush1.bf16.msra.mxu0 %v844
    %992 = vmatprep.subr.bf16.mxu0 %v848
    %993 = vmatpush1.bf16.msra.mxu0 %v847
    %994 = vmatprep.subr.bf16.mxu0 %v851
    %995 = vmatpush1.bf16.msra.mxu0 %v850
    %996 = vmatprep.subr.bf16.mxu0 %v854
    %997 = vmatpush1.bf16.msra.mxu0 %v853
    %998 = vmatprep.subr.bf16.mxu0 %v857
    %999 = vmatpush1.bf16.msra.mxu0 %v856
    %1000 = vmatprep.subr.bf16.mxu0 %v860
    %1001 = vmatpush1.bf16.msra.mxu0 %v859
    %1002 = vmatprep.subr.bf16.mxu0 %v863
    %1003 = vmatpush1.bf16.msra.mxu0 %v862
    %1004 = vmatprep.subr.bf16.mxu0 %v866
    %1005 = vmatpush1.bf16.msra.mxu0 %v865
    %1006 = vmatprep.subr.bf16.mxu0 %v869
    %1007 = vmatpush1.bf16.msra.mxu0 %v868
    %1008 = vmatprep.subr.bf16.mxu0 %v872
    %1009 = vmatpush1.bf16.msra.mxu0 %v871
    %1010 = vmatprep.subr.bf16.mxu0 %v875
    %1011 = vmatpush1.bf16.msra.mxu0 %v874
    %1012 = vmatprep.subr.bf16.mxu0 %v878
    %1013 = vmatpush1.bf16.msra.mxu0 %v877
    %1014 = vmatprep.subr.bf16.mxu0 %v881
    %1015 = vmatpush1.bf16.msra.mxu0 %v880
    %1016 = vmatprep.mubr.bf16.mxu0 %v440
    %1017 = vmatmul.mubr.bf16.gmra.mrb[0].mxu0 %v439
    %v1018 = vpop.f32.mrb[0].mxu0
    %v1019 = vadd.f32 %v561, %v1018
    %v1020 = vpop.f32.mrb[0].mxu0
    %v1021 = vadd.f32 %v563, %v1020
    %v1022 = vpop.f32.mrb[0].mxu0
    %v1023 = vadd.f32 %v565, %v1022
    %v1024 = vpop.f32.mrb[0].mxu0
    %v1025 = vadd.f32 %v567, %v1024
    %1026 = vdwg.mxu0
    %1027 = vmatprep.subr.bf16.mxu0 %v884
    %1028 = vmatpush1.bf16.msra.mxu0 %v883
    %1029 = vmatprep.subr.bf16.mxu0 %v887
    %1030 = vmatpush1.bf16.msra.mxu0 %v886
    %1031 = vmatprep.subr.bf16.mxu0 %v890
    %1032 = vmatpush1.bf16.msra.mxu0 %v889
    %1033 = vmatprep.subr.bf16.mxu0 %v893
    %1034 = vmatpush1.bf16.msra.mxu0 %v892
    %1035 = vmatprep.subr.bf16.mxu0 %v896
    %1036 = vmatpush1.bf16.msra.mxu0 %v895
    %1037 = vmatprep.subr.bf16.mxu0 %v899
    %1038 = vmatpush1.bf16.msra.mxu0 %v898
    %1039 = vmatprep.subr.bf16.mxu0 %v979
    %1040 = vmatpush1.bf16.msra.mxu0 %v976
    %1041 = vmatprep.subr.bf16.mxu0 0
    %1042 = vmatpush1.bf16.msra.mxu0 0
    %1043 = vmatprep.subr.bf16.mxu0 0
    %1044 = vmatpush1.bf16.msra.mxu0 0
    %1045 = vmatprep.subr.bf16.mxu0 0
    %1046 = vmatpush1.bf16.msra.mxu0 0
    %1047 = vmatprep.subr.bf16.mxu0 0
    %1048 = vmatpush1.bf16.msra.mxu0 0
    %1049 = vmatprep.subr.bf16.mxu0 0
    %1050 = vmatpush1.bf16.msra.mxu0 0
    %1051 = vmatprep.subr.bf16.mxu0 0
    %1052 = vmatpush1.bf16.msra.mxu0 0
    %1053 = vmatprep.subr.bf16.mxu0 0
    %1054 = vmatpush1.bf16.msra.mxu0 0
    %1055 = vmatprep.subr.bf16.mxu0 0
    %1056 = vmatpush1.bf16.msra.mxu0 0
    %1057 = vmatprep.subr.bf16.mxu0 0
    %1058 = vmatpush1.bf16.msra.mxu0 0
    %1059 = vmatprep.mubr.bf16.mxu0 0
    %1060 = vmatmul.mubr.bf16.gmra.mrb[0].mxu0 %v972
    %v1061 = vpop.f32.mrb[0].mxu0
    %v1062 = vadd.f32 %v1019, %v1061
    %v1063 = vpop.f32.mrb[0].mxu0
    %v1064 = vadd.f32 %v1021, %v1063
    %v1065 = vpop.f32.mrb[0].mxu0
    %v1066 = vadd.f32 %v1023, %v1065
    %v1067 = vpop.f32.mrb[0].mxu0
    %v1068 = vadd.f32 %v1025, %v1067
    %1069 = vdwg.mxu0
    %1070 = vmatprep.subr.bf16.mxu0 0
    %1071 = vmatpush1.bf16.msra.mxu0 %v837
    %1072 = vmatprep.subr.bf16.mxu0 0
    %1073 = vmatpush1.bf16.msra.mxu0 %v840
    %1074 = vmatprep.subr.bf16.mxu0 0
    %1075 = vmatpush1.bf16.msra.mxu0 %v843
    %1076 = vmatprep.subr.bf16.mxu0 0
    %1077 = vmatpush1.bf16.msra.mxu0 %v846
    %1078 = vmatprep.subr.bf16.mxu0 0
    %1079 = vmatpush1.bf16.msra.mxu0 %v849
    %1080 = vmatprep.subr.bf16.mxu0 0
    %1081 = vmatpush1.bf16.msra.mxu0 %v852
    %1082 = vmatprep.subr.bf16.mxu0 0
    %1083 = vmatpush1.bf16.msra.mxu0 %v855
    %1084 = vmatprep.subr.bf16.mxu0 0
    %1085 = vmatpush1.bf16.msra.mxu0 %v858
    %1086 = vmatprep.subr.bf16.mxu0 0
    %1087 = vmatpush1.bf16.msra.mxu0 %v861
    %1088 = vmatprep.subr.bf16.mxu0 0
    %1089 = vmatpush1.bf16.msra.mxu0 %v864
    %1090 = vmatprep.subr.bf16.mxu0 0
    %1091 = vmatpush1.bf16.msra.mxu0 %v867
    %1092 = vmatprep.subr.bf16.mxu0 0
    %1093 = vmatpush1.bf16.msra.mxu0 %v870
    %1094 = vmatprep.subr.bf16.mxu0 0
    %1095 = vmatpush1.bf16.msra.mxu0 %v873
    %1096 = vmatprep.subr.bf16.mxu0 0
    %1097 = vmatpush1.bf16.msra.mxu0 %v876
    %1098 = vmatprep.subr.bf16.mxu0 0
    %1099 = vmatpush1.bf16.msra.mxu0 %v879
    %1100 = vmatprep.subr.bf16.mxu0 0
    %1101 = vmatpush1.bf16.msra.mxu0 %v882
    %1102 = vmatprep.mubr.bf16.mxu0 %v440
    %1103 = vmatmul.mubr.bf16.gmra.mrb[0].mxu0 %v439
    %v1104 = vpop.f32.mrb[0].mxu0
    %v1105 = vadd.f32 %v604, %v1104
    %v1106 = vpop.f32.mrb[0].mxu0
    %v1107 = vpop.f32.mrb[0].mxu0
    %v1108 = vadd.f32 %v607, %v1107
    %v1109 = vpop.f32.mrb[0].mxu0
    %1110 = vdwg.mxu0
    %1111 = vmatprep.subr.bf16.mxu0 0
    %1112 = vmatpush1.bf16.msra.mxu0 %v885
    %1113 = vmatprep.subr.bf16.mxu0 0
    %1114 = vmatpush1.bf16.msra.mxu0 %v888
    %1115 = vmatprep.subr.bf16.mxu0 0
    %1116 = vmatpush1.bf16.msra.mxu0 %v891
    %1117 = vmatprep.subr.bf16.mxu0 0
    %1118 = vmatpush1.bf16.msra.mxu0 %v894
    %1119 = vmatprep.subr.bf16.mxu0 0
    %1120 = vmatpush1.bf16.msra.mxu0 %v897
    %1121 = vmatprep.subr.bf16.mxu0 0
    %1122 = vmatpush1.bf16.msra.mxu0 %v900
    %1123 = vmatprep.subr.bf16.mxu0 0
    %1124 = vmatpush1.bf16.msra.mxu0 %v982
    %1125 = vmatprep.subr.bf16.mxu0 0
    %1126 = vmatpush1.bf16.msra.mxu0 0
    %1127 = vmatprep.subr.bf16.mxu0 0
    %1128 = vmatpush1.bf16.msra.mxu0 0
    %1129 = vmatprep.subr.bf16.mxu0 0
    %1130 = vmatpush1.bf16.msra.mxu0 0
    %1131 = vmatprep.subr.bf16.mxu0 0
    %1132 = vmatpush1.bf16.msra.mxu0 0
    %1133 = vmatprep.subr.bf16.mxu0 0
    %1134 = vmatpush1.bf16.msra.mxu0 0
    %1135 = vmatprep.subr.bf16.mxu0 0
    %1136 = vmatpush1.bf16.msra.mxu0 0
    %1137 = vmatprep.subr.bf16.mxu0 0
    %1138 = vmatpush1.bf16.msra.mxu0 0
    %1139 = vmatprep.subr.bf16.mxu0 0
    %1140 = vmatpush1.bf16.msra.mxu0 0
    %1141 = vmatprep.subr.bf16.mxu0 0
    %1142 = vmatpush1.bf16.msra.mxu0 0
    %1143 = vmatprep.mubr.bf16.mxu0 0
    %1144 = vmatmul.mubr.bf16.gmra.mrb[0].mxu0 %v972
    %v1145 = vpop.f32.mrb[0].mxu0
    %v1146 = vadd.f32 %v1105, %v1145
    %v1147 = vpop.f32.mrb[0].mxu0
    %v1148 = vpop.f32.mrb[0].mxu0
    %v1149 = vadd.f32 %v1108, %v1148
    %v1150 = vpop.f32.mrb[0].mxu0
    %1151 = vdwg.mxu0
    %v1152 = vld [vmem:[%s8] sm:$0x7]
    %v1154 = vlaneseq
    %v1155 = vshrl.u32 %v1154, 7
    %v1156 = vsub.s32 0, %v1155
    %v1157 = vrot.slane %v1152, %v1156
    %v1158 = vlaneseq
    %v1159 = vshrl.u32 %v1158, 7
    %v1160 = vsub.s32 1, %v1159
    %v1161 = vrot.slane %v1152, %v1160
    %v1162 = vlaneseq
    %v1163 = vshrl.u32 %v1162, 7
    %v1164 = vsub.s32 2, %v1163
    %v1165 = vrot.slane %v1152, %v1164
    %v1169 = vadd.f32 %v1062, %v1157
    %v1170 = vadd.f32 %v1064, %v1161
    %v1171 = vadd.f32 %v1146, %v1165
    %v1172 = vadd.f32 %v1066, %v1157
    %v1173 = vadd.f32 %v1068, %v1161
    %v1174 = vadd.f32 %v1149, %v1165
    %v1175 = vmul.f32 %v1169, 0.70710677
    %v1176 = vmul.f32 %v1170, 0.70710677
    %v1177 = vmul.f32 %v1171, 0.70710677
    %v1178 = vmul.f32 %v1172, 0.70710677
    %v1179 = vmul.f32 %v1173, 0.70710677
    %v1180 = vmul.f32 %v1174, 0.70710677
    %v1181 = vand.u32 2147483647, %v1175
    %v1182 = vand.u32 2147483647, %v1176
    %v1183 = vand.u32 2147483647, %v1177
    %v1184 = vand.u32 2147483647, %v1178
    %v1185 = vand.u32 2147483647, %v1179
    %v1186 = vand.u32 2147483647, %v1180
    %v1187 = vmul.f32 %v1181, 0.3275911
    %v1188 = vmul.f32 %v1182, 0.3275911
    %v1189 = vmul.f32 %v1183, 0.3275911
    %v1190 = vmul.f32 %v1184, 0.3275911
    %v1191 = vmul.f32 %v1185, 0.3275911
    %v1192 = vmul.f32 %v1186, 0.3275911
    %v1193 = vadd.f32 %v1187, 1.0
    %v1194 = vadd.f32 %v1188, 1.0
    %v1195 = vadd.f32 %v1189, 1.0
    %v1196 = vadd.f32 %v1190, 1.0
    %v1197 = vadd.f32 %v1191, 1.0
    %v1198 = vadd.f32 %v1192, 1.0
    %v1199 = vrcp.pop %v1193
    %v1200 = vrcp.pop %v1194
    %v1201 = vrcp.pop %v1195
    %v1202 = vrcp.pop %v1196
    %v1203 = vrcp.pop %v1197
    %v1204 = vrcp.pop %v1198
    %v1205 = vmul.f32 %v1199, 1.0614054
    %v1206 = vmul.f32 %v1200, 1.0614054
    %v1207 = vmul.f32 %v1201, 1.0614054
    %v1208 = vmul.f32 %v1202, 1.0614054
    %v1209 = vmul.f32 %v1203, 1.0614054
    %v1210 = vmul.f32 %v1204, 1.0614054
    %v1211 = vadd.f32 %v1205, -1.4531521
    %v1212 = vadd.f32 %v1206, -1.4531521
    %v1213 = vadd.f32 %v1207, -1.4531521
    %v1214 = vadd.f32 %v1208, -1.4531521
    %v1215 = vadd.f32 %v1209, -1.4531521
    %v1216 = vadd.f32 %v1210, -1.4531521
    %v1217 = vmul.f32 %v1211, %v1199
    %v1218 = vmul.f32 %v1212, %v1200
    %v1219 = vmul.f32 %v1213, %v1201
    %v1220 = vmul.f32 %v1214, %v1202
    %v1221 = vmul.f32 %v1215, %v1203
    %v1222 = vmul.f32 %v1216, %v1204
    %v1223 = vadd.f32 %v1217, 1.4214138
    %v1224 = vadd.f32 %v1218, 1.4214138
    %v1225 = vadd.f32 %v1219, 1.4214138
    %v1226 = vadd.f32 %v1220, 1.4214138
    %v1227 = vadd.f32 %v1221, 1.4214138
    %v1228 = vadd.f32 %v1222, 1.4214138
    %v1229 = vmul.f32 %v1223, %v1199
    %v1230 = vmul.f32 %v1224, %v1200
    %v1231 = vmul.f32 %v1225, %v1201
    %v1232 = vmul.f32 %v1226, %v1202
    %v1233 = vmul.f32 %v1227, %v1203
    %v1234 = vmul.f32 %v1228, %v1204
    %v1235 = vadd.f32 %v1229, -0.28449672
    %v1236 = vadd.f32 %v1230, -0.28449672
    %v1237 = vadd.f32 %v1231, -0.28449672
    %v1238 = vadd.f32 %v1232, -0.28449672
    %v1239 = vadd.f32 %v1233, -0.28449672
    %v1240 = vadd.f32 %v1234, -0.28449672
    %v1241 = vmul.f32 %v1235, %v1199
    %v1242 = vmul.f32 %v1236, %v1200
    %v1243 = vmul.f32 %v1237, %v1201
    %v1244 = vmul.f32 %v1238, %v1202
    %v1245 = vmul.f32 %v1239, %v1203
    %v1246 = vmul.f32 %v1240, %v1204
    %v1247 = vadd.f32 %v1241, 0.2548296
    %v1248 = vadd.f32 %v1242, 0.2548296
    %v1249 = vadd.f32 %v1243, 0.2548296
    %v1250 = vadd.f32 %v1244, 0.2548296
    %v1251 = vadd.f32 %v1245, 0.2548296
    %v1252 = vadd.f32 %v1246, 0.2548296
    %v1253 = vmul.f32 %v1247, %v1199
    %v1254 = vmul.f32 %v1248, %v1200
    %v1255 = vmul.f32 %v1249, %v1201
    %v1256 = vmul.f32 %v1250, %v1202
    %v1257 = vmul.f32 %v1251, %v1203
    %v1258 = vmul.f32 %v1252, %v1204
    %v1259 = vsub.f32 0.0, %v1181
    %v1260 = vsub.f32 0.0, %v1182
    %v1261 = vsub.f32 0.0, %v1183
    %v1262 = vsub.f32 0.0, %v1184
    %v1263 = vsub.f32 0.0, %v1185
    %v1264 = vsub.f32 0.0, %v1186
    %v1265 = vmul.f32 %v1259, %v1181
    %v1266 = vmul.f32 %v1260, %v1182
    %v1267 = vmul.f32 %v1261, %v1183
    %v1268 = vmul.f32 %v1262, %v1184
    %v1269 = vmul.f32 %v1263, %v1185
    %v1270 = vmul.f32 %v1264, %v1186
    %v1271 = vmul.f32 %v1265, 1.442695
    %v1272 = vpow.pop %v1271
    %v1273 = vmul.f32 %v1266, 1.442695
    %v1274 = vpow.pop %v1273
    %v1275 = vmul.f32 %v1267, 1.442695
    %v1276 = vpow.pop %v1275
    %v1277 = vmul.f32 %v1268, 1.442695
    %v1278 = vpow.pop %v1277
    %v1279 = vmul.f32 %v1269, 1.442695
    %v1280 = vpow.pop %v1279
    %v1281 = vmul.f32 %v1270, 1.442695
    %v1282 = vpow.pop %v1281
    %v1283 = vmul.f32 %v1253, %v1272
    %v1284 = vmul.f32 %v1254, %v1274
    %v1285 = vmul.f32 %v1255, %v1276
    %v1286 = vmul.f32 %v1256, %v1278
    %v1287 = vmul.f32 %v1257, %v1280
    %v1288 = vmul.f32 %v1258, %v1282
    %v1289 = vsub.f32 1.0, %v1283
    %v1290 = vsub.f32 1.0, %v1284
    %v1291 = vsub.f32 1.0, %v1285
    %v1292 = vsub.f32 1.0, %v1286
    %v1293 = vsub.f32 1.0, %v1287
    %v1294 = vsub.f32 1.0, %v1288
    %vm1295 = vcmp.ge.f32.partialorder %v1175, 0.0
    %vm1296 = vcmp.ge.f32.partialorder %v1176, 0.0
    %vm1297 = vcmp.ge.f32.partialorder %v1177, 0.0
    %vm1298 = vcmp.ge.f32.partialorder %v1178, 0.0
    %vm1299 = vcmp.ge.f32.partialorder %v1179, 0.0
    %vm1300 = vcmp.ge.f32.partialorder %v1180, 0.0
    %v1301 = vsub.f32 0.0, %v1289
    %v1302 = vsub.f32 0.0, %v1290
    %v1303 = vsub.f32 0.0, %v1291
    %v1304 = vsub.f32 0.0, %v1292
    %v1305 = vsub.f32 0.0, %v1293
    %v1306 = vsub.f32 0.0, %v1294
    %v1307 = vsel %vm1295, %v1289, %v1301
    %v1308 = vsel %vm1296, %v1290, %v1302
    %v1309 = vsel %vm1297, %v1291, %v1303
    %v1310 = vsel %vm1298, %v1292, %v1304
    %v1311 = vsel %vm1299, %v1293, %v1305
    %v1312 = vsel %vm1300, %v1294, %v1306
    %v1313 = vmul.f32 %v1169, 0.5
    %v1314 = vmul.f32 %v1170, 0.5
    %v1315 = vmul.f32 %v1171, 0.5
    %v1316 = vmul.f32 %v1172, 0.5
    %v1317 = vmul.f32 %v1173, 0.5
    %v1318 = vmul.f32 %v1174, 0.5
    %v1319 = vadd.f32 %v1307, 1.0
    %v1320 = vadd.f32 %v1308, 1.0
    %v1321 = vadd.f32 %v1309, 1.0
    %v1322 = vadd.f32 %v1310, 1.0
    %v1323 = vadd.f32 %v1311, 1.0
    %v1324 = vadd.f32 %v1312, 1.0
    %v1325 = vmul.f32 %v1313, %v1319
    %v1326 = vmul.f32 %v1314, %v1320
    %v1327 = vmul.f32 %v1315, %v1321
    %v1328 = vmul.f32 %v1316, %v1322
    %v1329 = vmul.f32 %v1317, %v1323
    %v1330 = vmul.f32 %v1318, %v1324
    %v1331 = vld [vmem:[#allocation13] sm:$0xff]
    %v1332 = vld [vmem:[#allocation13 + $0x8] sm:$0xf]
    %v1333 = vld [vmem:[#allocation13 + $0xc] sm:$0xff]
    %v1334 = vld [vmem:[#allocation13 + $0x14] sm:$0xf]
    %v1335 = vld [vmem:[#allocation13 + $0x18] sm:$0xff]
    %v1336 = vld [vmem:[#allocation13 + $0x20] sm:$0xf]
    %v1337 = vld [vmem:[#allocation13 + $0x24] sm:$0xff]
    %v1338 = vld [vmem:[#allocation13 + $0x2c] sm:$0xf]
    %v1339 = vld [vmem:[#allocation13 + $0x30] sm:$0xff]
    %v1340 = vld [vmem:[#allocation13 + $0x38] sm:$0xf]
    %v1341 = vld [vmem:[#allocation13 + $0x3c] sm:$0xff]
    %v1342 = vld [vmem:[#allocation13 + $0x44] sm:$0xf]
    %v1343 = vld [vmem:[#allocation13 + $0x48] sm:$0xff]
    %v1344 = vld [vmem:[#allocation13 + $0x50] sm:$0xf]
    %v1345 = vld [vmem:[#allocation13 + $0x54] sm:$0xff]
    %v1346 = vld [vmem:[#allocation13 + $0x5c] sm:$0xf]
    %v1347 = vld [vmem:[#allocation13 + $0x60] sm:$0xff]
    %v1348 = vld [vmem:[#allocation13 + $0x68] sm:$0xf]
    %v1349 = vld [vmem:[#allocation13 + $0x6c] sm:$0xff]
    %v1350 = vld [vmem:[#allocation13 + $0x74] sm:$0xf]
    %v1351 = vld [vmem:[#allocation13 + $0x78] sm:$0xff]
    %v1352 = vld [vmem:[#allocation13 + $0x80] sm:$0xf]
    %v1353 = vld [vmem:[#allocation13 + $0x84] sm:$0xff]
    %v1354 = vld [vmem:[#allocation13 + $0x8c] sm:$0xf]
    %v1355 = vld [vmem:[#allocation13 + $0x90] sm:$0xff]
    %v1356 = vld [vmem:[#allocation13 + $0x98] sm:$0xf]
    %v1357 = vld [vmem:[#allocation13 + $0x9c] sm:$0xff]
    %v1358 = vld [vmem:[#allocation13 + $0xa4] sm:$0xf]
    %v1359 = vld [vmem:[#allocation13 + $0xa8] sm:$0xff]
    %v1360 = vld [vmem:[#allocation13 + $0xb0] sm:$0xf]
    %v1361 = vld [vmem:[#allocation13 + $0xb4] sm:$0xff]
    %v1362 = vld [vmem:[#allocation13 + $0xbc] sm:$0xf]
    %v1363 = vld [vmem:[#allocation13 + $0xc0] sm:$0xff]
    %v1364 = vld [vmem:[#allocation13 + $0xc8] sm:$0xf]
    %v1365 = vld [vmem:[#allocation13 + $0xcc] sm:$0xff]
    %v1366 = vld [vmem:[#allocation13 + $0xd4] sm:$0xf]
    %v1367 = vld [vmem:[#allocation13 + $0xd8] sm:$0xff]
    %v1368 = vld [vmem:[#allocation13 + $0xe0] sm:$0xf]
    %v1369 = vld [vmem:[#allocation13 + $0xe4] sm:$0xff]
    %v1370 = vld [vmem:[#allocation13 + $0xec] sm:$0xf]
    %v1371 = vld [vmem:[#allocation13 + $0xf0] sm:$0xff]
    %v1372 = vld [vmem:[#allocation13 + $0xf8] sm:$0xf]
    %v1373 = vld [vmem:[#allocation13 + $0xfc] sm:$0xff]
    %v1374 = vld [vmem:[#allocation13 + $0x104] sm:$0xf]
    %v1375 = vld [vmem:[#allocation13 + $0x108] sm:$0xff]
    %v1376 = vld [vmem:[#allocation13 + $0x110] sm:$0xf]
    %v1377 = vld [vmem:[#allocation13 + $0x114] sm:$0xff]
    %v1378 = vld [vmem:[#allocation13 + $0x11c] sm:$0xf]
    %v1379 = vld [vmem:[#allocation13 + $0x120] sm:$0xff]
    %v1380 = vld [vmem:[#allocation13 + $0x128] sm:$0xf]
    %v1381 = vld [vmem:[#allocation13 + $0x12c] sm:$0xff]
    %v1382 = vld [vmem:[#allocation13 + $0x134] sm:$0xf]
    %v1383 = vld [vmem:[#allocation13 + $0x138] sm:$0xff]
    %v1384 = vld [vmem:[#allocation13 + $0x140] sm:$0xf]
    %v1385 = vld [vmem:[#allocation13 + $0x144] sm:$0xff]
    %v1386 = vld [vmem:[#allocation13 + $0x14c] sm:$0xf]
    %v1387 = vld [vmem:[#allocation13 + $0x150] sm:$0xff]
    %v1388 = vld [vmem:[#allocation13 + $0x158] sm:$0xf]
    %v1389 = vld [vmem:[#allocation13 + $0x15c] sm:$0xff]
    %v1390 = vld [vmem:[#allocation13 + $0x164] sm:$0xf]
    %v1391 = vld [vmem:[#allocation13 + $0x168] sm:$0xff]
    %v1392 = vld [vmem:[#allocation13 + $0x170] sm:$0xf]
    %v1393 = vld [vmem:[#allocation13 + $0x174] sm:$0xff]
    %v1394 = vld [vmem:[#allocation13 + $0x17c] sm:$0xf]
    %v1395 = vld [vmem:[#allocation13 + $0x180] sm:$0xff]
    %v1396 = vld [vmem:[#allocation13 + $0x188] sm:$0xf]
    %v1397 = vld [vmem:[#allocation13 + $0x18c] sm:$0xff]
    %v1398 = vld [vmem:[#allocation13 + $0x194] sm:$0xf]
    %v1399 = vld [vmem:[#allocation13 + $0x198] sm:$0xff]
    %v1400 = vld [vmem:[#allocation13 + $0x1a0] sm:$0xf]
    %v1401 = vld [vmem:[#allocation13 + $0x1a4] sm:$0xff]
    %v1402 = vld [vmem:[#allocation13 + $0x1ac] sm:$0xf]
    %v1403 = vld [vmem:[#allocation13 + $0x1b0] sm:$0xff]
    %v1404 = vld [vmem:[#allocation13 + $0x1b8] sm:$0xf]
    %v1405 = vld [vmem:[#allocation13 + $0x1bc] sm:$0xff]
    %v1406 = vld [vmem:[#allocation13 + $0x1c4] sm:$0xf]
    %v1407 = vld [vmem:[#allocation13 + $0x1c8] sm:$0xff]
    %v1408 = vld [vmem:[#allocation13 + $0x1d0] sm:$0xf]
    %v1409 = vld [vmem:[#allocation13 + $0x1d4] sm:$0xff]
    %v1410 = vld [vmem:[#allocation13 + $0x1dc] sm:$0xf]
    %v1411 = vld [vmem:[#allocation13 + $0x1e0] sm:$0xff]
    %v1412 = vld [vmem:[#allocation13 + $0x1e8] sm:$0xf]
    %v1413 = vld [vmem:[#allocation13 + $0x1ec] sm:$0xff]
    %v1414 = vld [vmem:[#allocation13 + $0x1f4] sm:$0xf]
    %v1415 = vld [vmem:[#allocation13 + $0x1f8] sm:$0xff]
    %v1416 = vld [vmem:[#allocation13 + $0x200] sm:$0xf]
    %v1417 = vld [vmem:[#allocation13 + $0x204] sm:$0xff]
    %v1418 = vld [vmem:[#allocation13 + $0x20c] sm:$0xf]
    %v1419 = vld [vmem:[#allocation13 + $0x210] sm:$0x33]
    %v1420 = vld [vmem:[#allocation13 + $0x218] sm:$0x3]
    %v1421 = vpack.c.bf16 %v1328, %v1325
    %v1422 = vpack.c.bf16 %v1329, %v1326
    %v1423 = vpack.c.bf16 %v1330, %v1327
    %v1424 = vld [vmem:[%s10] sm:$0x7]
    %v1426 = vlaneseq
    %v1427 = vshrl.u32 %v1426, 7
    %v1428 = vsub.s32 0, %v1427
    %v1429 = vrot.slane %v1424, %v1428
    %v1430 = vlaneseq
    %v1431 = vshrl.u32 %v1430, 7
    %v1432 = vsub.s32 1, %v1431
    %v1433 = vrot.slane %v1424, %v1432
    %v1434 = vlaneseq
    %v1435 = vshrl.u32 %v1434, 7
    %v1436 = vsub.s32 2, %v1435
    %v1437 = vrot.slane %v1424, %v1436
    %v1531 = vunpack.c.l.b16 %v1331
    %v1532 = vunpack.c.h.b16 %v1331
    %v1533 = vunpack.c.l.b16 %v1332
    %v1534 = vunpack.c.l.b16 %v1333
    %v1535 = vunpack.c.h.b16 %v1333
    %v1536 = vunpack.c.l.b16 %v1334
    %v1537 = vunpack.c.l.b16 %v1335
    %v1538 = vunpack.c.h.b16 %v1335
    %v1539 = vunpack.c.l.b16 %v1336
    %v1540 = vunpack.c.l.b16 %v1337
    %v1541 = vunpack.c.h.b16 %v1337
    %v1542 = vunpack.c.l.b16 %v1338
    %v1543 = vunpack.c.l.b16 %v1339
    %v1544 = vunpack.c.h.b16 %v1339
    %v1545 = vunpack.c.l.b16 %v1340
    %v1546 = vunpack.c.l.b16 %v1341
    %v1547 = vunpack.c.h.b16 %v1341
    %v1548 = vunpack.c.l.b16 %v1342
    %v1549 = vunpack.c.l.b16 %v1343
    %v1550 = vunpack.c.h.b16 %v1343
    %v1551 = vunpack.c.l.b16 %v1344
    %v1552 = vunpack.c.l.b16 %v1345
    %v1553 = vunpack.c.h.b16 %v1345
    %v1554 = vunpack.c.l.b16 %v1346
    %v1555 = vunpack.c.l.b16 %v1347
    %v1556 = vunpack.c.h.b16 %v1347
    %v1557 = vunpack.c.l.b16 %v1348
    %v1558 = vunpack.c.l.b16 %v1349
    %v1559 = vunpack.c.h.b16 %v1349
    %v1560 = vunpack.c.l.b16 %v1350
    %v1561 = vunpack.c.l.b16 %v1351
    %v1562 = vunpack.c.h.b16 %v1351
    %v1563 = vunpack.c.l.b16 %v1352
    %v1564 = vunpack.c.l.b16 %v1353
    %v1565 = vunpack.c.h.b16 %v1353
    %v1566 = vunpack.c.l.b16 %v1354
    %v1567 = vunpack.c.l.b16 %v1355
    %v1568 = vunpack.c.h.b16 %v1355
    %v1569 = vunpack.c.l.b16 %v1356
    %v1570 = vunpack.c.l.b16 %v1357
    %v1571 = vunpack.c.h.b16 %v1357
    %v1572 = vunpack.c.l.b16 %v1358
    %v1573 = vunpack.c.l.b16 %v1359
    %v1574 = vunpack.c.h.b16 %v1359
    %v1575 = vunpack.c.l.b16 %v1360
    %v1576 = vunpack.c.l.b16 %v1361
    %v1577 = vunpack.c.h.b16 %v1361
    %v1578 = vunpack.c.l.b16 %v1362
    %v1579 = vunpack.c.l.b16 %v1363
    %v1580 = vunpack.c.h.b16 %v1363
    %v1581 = vunpack.c.l.b16 %v1364
    %v1582 = vunpack.c.l.b16 %v1365
    %v1583 = vunpack.c.h.b16 %v1365
    %v1584 = vunpack.c.l.b16 %v1366
    %v1585 = vunpack.c.l.b16 %v1367
    %v1586 = vunpack.c.h.b16 %v1367
    %v1587 = vunpack.c.l.b16 %v1368
    %v1588 = vunpack.c.l.b16 %v1369
    %v1589 = vunpack.c.h.b16 %v1369
    %v1590 = vunpack.c.l.b16 %v1370
    %v1591 = vunpack.c.l.b16 %v1371
    %v1592 = vunpack.c.h.b16 %v1371
    %v1593 = vunpack.c.l.b16 %v1372
    %v1594 = vunpack.c.l.b16 %v1373
    %v1595 = vunpack.c.h.b16 %v1373
    %v1596 = vunpack.c.l.b16 %v1374
    %v1597 = vunpack.c.l.b16 %v1375
    %v1598 = vunpack.c.h.b16 %v1375
    %v1599 = vunpack.c.l.b16 %v1376
    %v1600 = vunpack.c.l.b16 %v1377
    %v1601 = vunpack.c.h.b16 %v1377
    %v1602 = vunpack.c.l.b16 %v1378
    %v1603 = vunpack.c.l.b16 %v1379
    %v1604 = vunpack.c.h.b16 %v1379
    %v1605 = vunpack.c.l.b16 %v1380
    %v1606 = vunpack.c.l.b16 %v1381
    %v1607 = vunpack.c.h.b16 %v1381
    %v1608 = vunpack.c.l.b16 %v1382
    %v1609 = vunpack.c.l.b16 %v1383
    %v1610 = vunpack.c.h.b16 %v1383
    %v1611 = vunpack.c.l.b16 %v1384
    %v1612 = vunpack.c.l.b16 %v1385
    %v1613 = vunpack.c.h.b16 %v1385
    %v1614 = vunpack.c.l.b16 %v1386
    %v1615 = vunpack.c.l.b16 %v1387
    %v1616 = vunpack.c.h.b16 %v1387
    %v1617 = vunpack.c.l.b16 %v1388
    %v1618 = vunpack.c.l.b16 %v1389
    %v1619 = vunpack.c.h.b16 %v1389
    %v1620 = vunpack.c.l.b16 %v1390
    %v1621 = vunpack.c.l.b16 %v1391
    %v1622 = vunpack.c.h.b16 %v1391
    %v1623 = vunpack.c.l.b16 %v1392
    %v1624 = vunpack.c.l.b16 %v1393
    %v1625 = vunpack.c.h.b16 %v1393
    %v1626 = vunpack.c.l.b16 %v1394
    %v1627 = vunpack.c.l.b16 %v1395
    %v1628 = vunpack.c.h.b16 %v1395
    %v1629 = vunpack.c.l.b16 %v1396
    %v1630 = vunpack.c.l.b16 %v1397
    %v1631 = vunpack.c.h.b16 %v1397
    %v1632 = vunpack.c.l.b16 %v1398
    %v1633 = vunpack.c.l.b16 %v1399
    %v1634 = vunpack.c.h.b16 %v1399
    %v1635 = vunpack.c.l.b16 %v1400
    %v1636 = vunpack.c.l.b16 %v1401
    %v1637 = vunpack.c.h.b16 %v1401
    %v1638 = vunpack.c.l.b16 %v1402
    %v1639 = vunpack.c.l.b16 %v1403
    %v1640 = vunpack.c.h.b16 %v1403
    %v1641 = vunpack.c.l.b16 %v1404
    %v1642 = vunpack.c.l.b16 %v1405
    %v1643 = vunpack.c.h.b16 %v1405
    %v1644 = vunpack.c.l.b16 %v1406
    %v1645 = vunpack.c.l.b16 %v1407
    %v1646 = vunpack.c.h.b16 %v1407
    %v1647 = vunpack.c.l.b16 %v1408
    %v1648 = vunpack.c.l.b16 %v1409
    %v1649 = vunpack.c.h.b16 %v1409
    %v1650 = vunpack.c.l.b16 %v1410
    %v1651 = vunpack.c.l.b16 %v1411
    %v1652 = vunpack.c.h.b16 %v1411
    %v1653 = vunpack.c.l.b16 %v1412
    %v1654 = vunpack.c.l.b16 %v1413
    %v1655 = vunpack.c.h.b16 %v1413
    %v1656 = vunpack.c.l.b16 %v1414
    %v1657 = vunpack.c.l.b16 %v1415
    %v1658 = vunpack.c.h.b16 %v1415
    %v1659 = vunpack.c.l.b16 %v1416
    %v1660 = vunpack.c.l.b16 %v1417
    %v1661 = vunpack.c.h.b16 %v1417
    %v1662 = vunpack.c.l.b16 %v1418
    %v1663 = vunpack.c.l.b16 %v1419
    %v1664 = vunpack.c.h.b16 %v1419
    %v1665 = vunpack.c.l.b16 %v1420
    %v1666 = vpack.c.b16 %v1534, %v1531
    %v1667 = vpack.c.b16 %v1535, %v1532
    %v1668 = vpack.c.b16 %v1536, %v1533
    %v1669 = vpack.c.b16 %v1540, %v1537
    %v1670 = vpack.c.b16 %v1541, %v1538
    %v1671 = vpack.c.b16 %v1542, %v1539
    %v1672 = vpack.c.b16 %v1546, %v1543
    %v1673 = vpack.c.b16 %v1547, %v1544
    %v1674 = vpack.c.b16 %v1548, %v1545
    %v1675 = vpack.c.b16 %v1552, %v1549
    %v1676 = vpack.c.b16 %v1553, %v1550
    %v1677 = vpack.c.b16 %v1554, %v1551
    %v1678 = vpack.c.b16 %v1558, %v1555
    %v1679 = vpack.c.b16 %v1559, %v1556
    %v1680 = vpack.c.b16 %v1560, %v1557
    %v1681 = vpack.c.b16 %v1564, %v1561
    %v1682 = vpack.c.b16 %v1565, %v1562
    %v1683 = vpack.c.b16 %v1566, %v1563
    %v1684 = vpack.c.b16 %v1570, %v1567
    %v1685 = vpack.c.b16 %v1571, %v1568
    %v1686 = vpack.c.b16 %v1572, %v1569
    %v1687 = vpack.c.b16 %v1576, %v1573
    %v1688 = vpack.c.b16 %v1577, %v1574
    %v1689 = vpack.c.b16 %v1578, %v1575
    %v1690 = vpack.c.b16 %v1582, %v1579
    %v1691 = vpack.c.b16 %v1583, %v1580
    %v1692 = vpack.c.b16 %v1584, %v1581
    %v1693 = vpack.c.b16 %v1588, %v1585
    %v1694 = vpack.c.b16 %v1589, %v1586
    %v1695 = vpack.c.b16 %v1590, %v1587
    %v1696 = vpack.c.b16 %v1594, %v1591
    %v1697 = vpack.c.b16 %v1595, %v1592
    %v1698 = vpack.c.b16 %v1596, %v1593
    %v1699 = vpack.c.b16 %v1600, %v1597
    %v1700 = vpack.c.b16 %v1601, %v1598
    %v1701 = vpack.c.b16 %v1602, %v1599
    %v1702 = vpack.c.b16 %v1606, %v1603
    %v1703 = vpack.c.b16 %v1607, %v1604
    %v1704 = vpack.c.b16 %v1608, %v1605
    %v1705 = vpack.c.b16 %v1612, %v1609
    %v1706 = vpack.c.b16 %v1613, %v1610
    %v1707 = vpack.c.b16 %v1614, %v1611
    %v1708 = vpack.c.b16 %v1618, %v1615
    %v1709 = vpack.c.b16 %v1619, %v1616
    %v1710 = vpack.c.b16 %v1620, %v1617
    %v1711 = vpack.c.b16 %v1624, %v1621
    %v1712 = vpack.c.b16 %v1625, %v1622
    %v1713 = vpack.c.b16 %v1626, %v1623
    %v1714 = vpack.c.b16 %v1630, %v1627
    %v1715 = vpack.c.b16 %v1631, %v1628
    %v1716 = vpack.c.b16 %v1632, %v1629
    %v1717 = vpack.c.b16 %v1636, %v1633
    %v1718 = vpack.c.b16 %v1637, %v1634
    %v1719 = vpack.c.b16 %v1638, %v1635
    %v1720 = vpack.c.b16 %v1642, %v1639
    %v1721 = vpack.c.b16 %v1643, %v1640
    %v1722 = vpack.c.b16 %v1644, %v1641
    %v1723 = vpack.c.b16 %v1648, %v1645
    %v1724 = vpack.c.b16 %v1649, %v1646
    %v1725 = vpack.c.b16 %v1650, %v1647
    %v1726 = vpack.c.b16 %v1654, %v1651
    %v1727 = vpack.c.b16 %v1655, %v1652
    %v1728 = vpack.c.b16 %v1656, %v1653
    %v1729 = vpack.c.b16 %v1660, %v1657
    %v1730 = vpack.c.b16 %v1661, %v1658
    %v1731 = vpack.c.b16 %v1662, %v1659
    %v1732 = vpack.c.b16 %v1663, %v1663
    %v1733 = vpack.c.b16 %v1664, %v1664
    %v1734 = vpack.c.b16 %v1665, %v1665
    %v1802 = vsel %vm970, %v1423, 0
    %v1805 = vsel %vm974, %v1732, 0
    %v1808 = vsel %vm974, %v1733, 0
    %v1811 = vsel %vm974, %v1734, 0
    %1813 = vmatprep.subr.bf16.mxu0 %v1667
    %1814 = vmatpush1.bf16.msra.mxu0 %v1666
    %1815 = vmatprep.subr.bf16.mxu0 %v1670
    %1816 = vmatpush1.bf16.msra.mxu0 %v1669
    %1817 = vmatprep.subr.bf16.mxu0 %v1673
    %1818 = vmatpush1.bf16.msra.mxu0 %v1672
    %1819 = vmatprep.subr.bf16.mxu0 %v1676
    %1820 = vmatpush1.bf16.msra.mxu0 %v1675
    %1821 = vmatprep.subr.bf16.mxu0 %v1679
    %1822 = vmatpush1.bf16.msra.mxu0 %v1678
    %1823 = vmatprep.subr.bf16.mxu0 %v1682
    %1824 = vmatpush1.bf16.msra.mxu0 %v1681
    %1825 = vmatprep.subr.bf16.mxu0 %v1685
    %1826 = vmatpush1.bf16.msra.mxu0 %v1684
    %1827 = vmatprep.subr.bf16.mxu0 %v1688
    %1828 = vmatpush1.bf16.msra.mxu0 %v1687
    %1829 = vmatprep.subr.bf16.mxu0 %v1691
    %1830 = vmatpush1.bf16.msra.mxu0 %v1690
    %1831 = vmatprep.subr.bf16.mxu0 %v1694
    %1832 = vmatpush1.bf16.msra.mxu0 %v1693
    %1833 = vmatprep.subr.bf16.mxu0 %v1697
    %1834 = vmatpush1.bf16.msra.mxu0 %v1696
    %1835 = vmatprep.subr.bf16.mxu0 %v1700
    %1836 = vmatpush1.bf16.msra.mxu0 %v1699
    %1837 = vmatprep.subr.bf16.mxu0 %v1703
    %1838 = vmatpush1.bf16.msra.mxu0 %v1702
    %1839 = vmatprep.subr.bf16.mxu0 %v1706
    %1840 = vmatpush1.bf16.msra.mxu0 %v1705
    %1841 = vmatprep.subr.bf16.mxu0 %v1709
    %1842 = vmatpush1.bf16.msra.mxu0 %v1708
    %1843 = vmatprep.subr.bf16.mxu0 %v1712
    %1844 = vmatpush1.bf16.msra.mxu0 %v1711
    %1845 = vmatprep.mubr.bf16.mxu0 %v1422
    %1846 = vmatmul.mubr.bf16.gmra.mrb[0].mxu0 %v1421
    %v1847 = vpop.f32.mrb[0].mxu0
    %v1848 = vadd.f32 %v1429, %v1847
    %v1849 = vpop.f32.mrb[0].mxu0
    %v1850 = vadd.f32 %v1433, %v1849
    %v1851 = vpop.f32.mrb[0].mxu0
    %v1852 = vadd.f32 %v1429, %v1851
    %v1853 = vpop.f32.mrb[0].mxu0
    %v1854 = vadd.f32 %v1433, %v1853
    %1855 = vdwg.mxu0
    %1856 = vmatprep.subr.bf16.mxu0 %v1715
    %1857 = vmatpush1.bf16.msra.mxu0 %v1714
    %1858 = vmatprep.subr.bf16.mxu0 %v1718
    %1859 = vmatpush1.bf16.msra.mxu0 %v1717
    %1860 = vmatprep.subr.bf16.mxu0 %v1721
    %1861 = vmatpush1.bf16.msra.mxu0 %v1720
    %1862 = vmatprep.subr.bf16.mxu0 %v1724
    %1863 = vmatpush1.bf16.msra.mxu0 %v1723
    %1864 = vmatprep.subr.bf16.mxu0 %v1727
    %1865 = vmatpush1.bf16.msra.mxu0 %v1726
    %1866 = vmatprep.subr.bf16.mxu0 %v1730
    %1867 = vmatpush1.bf16.msra.mxu0 %v1729
    %1868 = vmatprep.subr.bf16.mxu0 %v1808
    %1869 = vmatpush1.bf16.msra.mxu0 %v1805
    %1870 = vmatprep.subr.bf16.mxu0 0
    %1871 = vmatpush1.bf16.msra.mxu0 0
    %1872 = vmatprep.subr.bf16.mxu0 0
    %1873 = vmatpush1.bf16.msra.mxu0 0
    %1874 = vmatprep.subr.bf16.mxu0 0
    %1875 = vmatpush1.bf16.msra.mxu0 0
    %1876 = vmatprep.subr.bf16.mxu0 0
    %1877 = vmatpush1.bf16.msra.mxu0 0
    %1878 = vmatprep.subr.bf16.mxu0 0
    %1879 = vmatpush1.bf16.msra.mxu0 0
    %1880 = vmatprep.subr.bf16.mxu0 0
    %1881 = vmatpush1.bf16.msra.mxu0 0
    %1882 = vmatprep.subr.bf16.mxu0 0
    %1883 = vmatpush1.bf16.msra.mxu0 0
    %1884 = vmatprep.subr.bf16.mxu0 0
    %1885 = vmatpush1.bf16.msra.mxu0 0
    %1886 = vmatprep.subr.bf16.mxu0 0
    %1887 = vmatpush1.bf16.msra.mxu0 0
    %1888 = vmatprep.mubr.bf16.mxu0 0
    %1889 = vmatmul.mubr.bf16.gmra.mrb[0].mxu0 %v1802
    %v1890 = vpop.f32.mrb[0].mxu0
    %v1891 = vadd.f32 %v1848, %v1890
    %v1892 = vpop.f32.mrb[0].mxu0
    %v1893 = vadd.f32 %v1850, %v1892
    %v1894 = vpop.f32.mrb[0].mxu0
    %v1895 = vadd.f32 %v1852, %v1894
    %v1896 = vpop.f32.mrb[0].mxu0
    %v1897 = vadd.f32 %v1854, %v1896
    %1898 = vdwg.mxu0
    %1899 = vmatprep.subr.bf16.mxu0 0
    %1900 = vmatpush1.bf16.msra.mxu0 %v1668
    %1901 = vmatprep.subr.bf16.mxu0 0
    %1902 = vmatpush1.bf16.msra.mxu0 %v1671
    %1903 = vmatprep.subr.bf16.mxu0 0
    %1904 = vmatpush1.bf16.msra.mxu0 %v1674
    %1905 = vmatprep.subr.bf16.mxu0 0
    %1906 = vmatpush1.bf16.msra.mxu0 %v1677
    %1907 = vmatprep.subr.bf16.mxu0 0
    %1908 = vmatpush1.bf16.msra.mxu0 %v1680
    %1909 = vmatprep.subr.bf16.mxu0 0
    %1910 = vmatpush1.bf16.msra.mxu0 %v1683
    %1911 = vmatprep.subr.bf16.mxu0 0
    %1912 = vmatpush1.bf16.msra.mxu0 %v1686
    %1913 = vmatprep.subr.bf16.mxu0 0
    %1914 = vmatpush1.bf16.msra.mxu0 %v1689
    %1915 = vmatprep.subr.bf16.mxu0 0
    %1916 = vmatpush1.bf16.msra.mxu0 %v1692
    %1917 = vmatprep.subr.bf16.mxu0 0
    %1918 = vmatpush1.bf16.msra.mxu0 %v1695
    %1919 = vmatprep.subr.bf16.mxu0 0
    %1920 = vmatpush1.bf16.msra.mxu0 %v1698
    %1921 = vmatprep.subr.bf16.mxu0 0
    %1922 = vmatpush1.bf16.msra.mxu0 %v1701
    %1923 = vmatprep.subr.bf16.mxu0 0
    %1924 = vmatpush1.bf16.msra.mxu0 %v1704
    %1925 = vmatprep.subr.bf16.mxu0 0
    %1926 = vmatpush1.bf16.msra.mxu0 %v1707
    %1927 = vmatprep.subr.bf16.mxu0 0
    %1928 = vmatpush1.bf16.msra.mxu0 %v1710
    %1929 = vmatprep.subr.bf16.mxu0 0
    %1930 = vmatpush1.bf16.msra.mxu0 %v1713
    %1931 = vmatprep.mubr.bf16.mxu0 %v1422
    %1932 = vmatmul.mubr.bf16.gmra.mrb[0].mxu0 %v1421
    %v1933 = vpop.f32.mrb[0].mxu0
    %v1934 = vadd.f32 %v1437, %v1933
    %v1935 = vpop.f32.mrb[0].mxu0
    %v1936 = vpop.f32.mrb[0].mxu0
    %v1937 = vadd.f32 %v1437, %v1936
    %v1938 = vpop.f32.mrb[0].mxu0
    %1939 = vdwg.mxu0
    %1940 = vmatprep.subr.bf16.mxu0 0
    %1941 = vmatpush1.bf16.msra.mxu0 %v1716
    %1942 = vmatprep.subr.bf16.mxu0 0
    %1943 = vmatpush1.bf16.msra.mxu0 %v1719
    %1944 = vmatprep.subr.bf16.mxu0 0
    %1945 = vmatpush1.bf16.msra.mxu0 %v1722
    %1946 = vmatprep.subr.bf16.mxu0 0
    %1947 = vmatpush1.bf16.msra.mxu0 %v1725
    %1948 = vmatprep.subr.bf16.mxu0 0
    %1949 = vmatpush1.bf16.msra.mxu0 %v1728
    %1950 = vmatprep.subr.bf16.mxu0 0
    %1951 = vmatpush1.bf16.msra.mxu0 %v1731
    %1952 = vmatprep.subr.bf16.mxu0 0
    %1953 = vmatpush1.bf16.msra.mxu0 %v1811
    %1954 = vmatprep.subr.bf16.mxu0 0
    %1955 = vmatpush1.bf16.msra.mxu0 0
    %1956 = vmatprep.subr.bf16.mxu0 0
    %1957 = vmatpush1.bf16.msra.mxu0 0
    %1958 = vmatprep.subr.bf16.mxu0 0
    %1959 = vmatpush1.bf16.msra.mxu0 0
    %1960 = vmatprep.subr.bf16.mxu0 0
    %1961 = vmatpush1.bf16.msra.mxu0 0
    %1962 = vmatprep.subr.bf16.mxu0 0
    %1963 = vmatpush1.bf16.msra.mxu0 0
    %1964 = vmatprep.subr.bf16.mxu0 0
    %1965 = vmatpush1.bf16.msra.mxu0 0
    %1966 = vmatprep.subr.bf16.mxu0 0
    %1967 = vmatpush1.bf16.msra.mxu0 0
    %1968 = vmatprep.subr.bf16.mxu0 0
    %1969 = vmatpush1.bf16.msra.mxu0 0
    %1970 = vmatprep.subr.bf16.mxu0 0
    %1971 = vmatpush1.bf16.msra.mxu0 0
    %1972 = vmatprep.mubr.bf16.mxu0 0
    %1973 = vmatmul.mubr.bf16.gmra.mrb[0].mxu0 %v1802
    %v1974 = vpop.f32.mrb[0].mxu0
    %v1975 = vadd.f32 %v1934, %v1974
    %v1976 = vpop.f32.mrb[0].mxu0
    %v1977 = vpop.f32.mrb[0].mxu0
    %v1978 = vadd.f32 %v1937, %v1977
    %v1979 = vpop.f32.mrb[0].mxu0
    %1980 = vdwg.mxu0
    %v1981 = vmul.f32 %v1891, 0.70710677
    %v1982 = vmul.f32 %v1893, 0.70710677
    %v1983 = vmul.f32 %v1975, 0.70710677
    %v1984 = vmul.f32 %v1895, 0.70710677
    %v1985 = vmul.f32 %v1897, 0.70710677
    %v1986 = vmul.f32 %v1978, 0.70710677
    %v1987 = vand.u32 2147483647, %v1981
    %v1988 = vand.u32 2147483647, %v1982
    %v1989 = vand.u32 2147483647, %v1983
    %v1990 = vand.u32 2147483647, %v1984
    %v1991 = vand.u32 2147483647, %v1985
    %v1992 = vand.u32 2147483647, %v1986
    %v1993 = vmul.f32 %v1987, 0.3275911
    %v1994 = vmul.f32 %v1988, 0.3275911
    %v1995 = vmul.f32 %v1989, 0.3275911
    %v1996 = vmul.f32 %v1990, 0.3275911
    %v1997 = vmul.f32 %v1991, 0.3275911
    %v1998 = vmul.f32 %v1992, 0.3275911
    %v1999 = vadd.f32 %v1993, 1.0
    %v2000 = vadd.f32 %v1994, 1.0
    %v2001 = vadd.f32 %v1995, 1.0
    %v2002 = vadd.f32 %v1996, 1.0
    %v2003 = vadd.f32 %v1997, 1.0
    %v2004 = vadd.f32 %v1998, 1.0
    %v2005 = vrcp.pop %v1999
    %v2006 = vrcp.pop %v2000
    %v2007 = vrcp.pop %v2001
    %v2008 = vrcp.pop %v2002
    %v2009 = vrcp.pop %v2003
    %v2010 = vrcp.pop %v2004
    %v2011 = vmul.f32 %v2005, 1.0614054
    %v2012 = vmul.f32 %v2006, 1.0614054
    %v2013 = vmul.f32 %v2007, 1.0614054
    %v2014 = vmul.f32 %v2008, 1.0614054
    %v2015 = vmul.f32 %v2009, 1.0614054
    %v2016 = vmul.f32 %v2010, 1.0614054
    %v2017 = vadd.f32 %v2011, -1.4531521
    %v2018 = vadd.f32 %v2012, -1.4531521
    %v2019 = vadd.f32 %v2013, -1.4531521
    %v2020 = vadd.f32 %v2014, -1.4531521
    %v2021 = vadd.f32 %v2015, -1.4531521
    %v2022 = vadd.f32 %v2016, -1.4531521
    %v2023 = vmul.f32 %v2017, %v2005
    %v2024 = vmul.f32 %v2018, %v2006
    %v2025 = vmul.f32 %v2019, %v2007
    %v2026 = vmul.f32 %v2020, %v2008
    %v2027 = vmul.f32 %v2021, %v2009
    %v2028 = vmul.f32 %v2022, %v2010
    %v2029 = vadd.f32 %v2023, 1.4214138
    %v2030 = vadd.f32 %v2024, 1.4214138
    %v2031 = vadd.f32 %v2025, 1.4214138
    %v2032 = vadd.f32 %v2026, 1.4214138
    %v2033 = vadd.f32 %v2027, 1.4214138
    %v2034 = vadd.f32 %v2028, 1.4214138
    %v2035 = vmul.f32 %v2029, %v2005
    %v2036 = vmul.f32 %v2030, %v2006
    %v2037 = vmul.f32 %v2031, %v2007
    %v2038 = vmul.f32 %v2032, %v2008
    %v2039 = vmul.f32 %v2033, %v2009
    %v2040 = vmul.f32 %v2034, %v2010
    %v2041 = vadd.f32 %v2035, -0.28449672
    %v2042 = vadd.f32 %v2036, -0.28449672
    %v2043 = vadd.f32 %v2037, -0.28449672
    %v2044 = vadd.f32 %v2038, -0.28449672
    %v2045 = vadd.f32 %v2039, -0.28449672
    %v2046 = vadd.f32 %v2040, -0.28449672
    %v2047 = vmul.f32 %v2041, %v2005
    %v2048 = vmul.f32 %v2042, %v2006
    %v2049 = vmul.f32 %v2043, %v2007
    %v2050 = vmul.f32 %v2044, %v2008
    %v2051 = vmul.f32 %v2045, %v2009
    %v2052 = vmul.f32 %v2046, %v2010
    %v2053 = vadd.f32 %v2047, 0.2548296
    %v2054 = vadd.f32 %v2048, 0.2548296
    %v2055 = vadd.f32 %v2049, 0.2548296
    %v2056 = vadd.f32 %v2050, 0.2548296
    %v2057 = vadd.f32 %v2051, 0.2548296
    %v2058 = vadd.f32 %v2052, 0.2548296
    %v2059 = vmul.f32 %v2053, %v2005
    %v2060 = vmul.f32 %v2054, %v2006
    %v2061 = vmul.f32 %v2055, %v2007
    %v2062 = vmul.f32 %v2056, %v2008
    %v2063 = vmul.f32 %v2057, %v2009
    %v2064 = vmul.f32 %v2058, %v2010
    %v2065 = vsub.f32 0.0, %v1987
    %v2066 = vsub.f32 0.0, %v1988
    %v2067 = vsub.f32 0.0, %v1989
    %v2068 = vsub.f32 0.0, %v1990
    %v2069 = vsub.f32 0.0, %v1991
    %v2070 = vsub.f32 0.0, %v1992
    %v2071 = vmul.f32 %v2065, %v1987
    %v2072 = vmul.f32 %v2066, %v1988
    %v2073 = vmul.f32 %v2067, %v1989
    %v2074 = vmul.f32 %v2068, %v1990
    %v2075 = vmul.f32 %v2069, %v1991
    %v2076 = vmul.f32 %v2070, %v1992
    %v2077 = vmul.f32 %v2071, 1.442695
    %v2078 = vpow.pop %v2077
    %v2079 = vmul.f32 %v2072, 1.442695
    %v2080 = vpow.pop %v2079
    %v2081 = vmul.f32 %v2073, 1.442695
    %v2082 = vpow.pop %v2081
    %v2083 = vmul.f32 %v2074, 1.442695
    %v2084 = vpow.pop %v2083
    %v2085 = vmul.f32 %v2075, 1.442695
    %v2086 = vpow.pop %v2085
    %v2087 = vmul.f32 %v2076, 1.442695
    %v2088 = vpow.pop %v2087
    %v2089 = vmul.f32 %v2059, %v2078
    %v2090 = vmul.f32 %v2060, %v2080
    %v2091 = vmul.f32 %v2061, %v2082
    %v2092 = vmul.f32 %v2062, %v2084
    %v2093 = vmul.f32 %v2063, %v2086
    %v2094 = vmul.f32 %v2064, %v2088
    %v2095 = vsub.f32 1.0, %v2089
    %v2096 = vsub.f32 1.0, %v2090
    %v2097 = vsub.f32 1.0, %v2091
    %v2098 = vsub.f32 1.0, %v2092
    %v2099 = vsub.f32 1.0, %v2093
    %v2100 = vsub.f32 1.0, %v2094
    %vm2101 = vcmp.ge.f32.partialorder %v1981, 0.0
    %vm2102 = vcmp.ge.f32.partialorder %v1982, 0.0
    %vm2103 = vcmp.ge.f32.partialorder %v1983, 0.0
    %vm2104 = vcmp.ge.f32.partialorder %v1984, 0.0
    %vm2105 = vcmp.ge.f32.partialorder %v1985, 0.0
    %vm2106 = vcmp.ge.f32.partialorder %v1986, 0.0
    %v2107 = vsub.f32 0.0, %v2095
    %v2108 = vsub.f32 0.0, %v2096
    %v2109 = vsub.f32 0.0, %v2097
    %v2110 = vsub.f32 0.0, %v2098
    %v2111 = vsub.f32 0.0, %v2099
    %v2112 = vsub.f32 0.0, %v2100
    %v2113 = vsel %vm2101, %v2095, %v2107
    %v2114 = vsel %vm2102, %v2096, %v2108
    %v2115 = vsel %vm2103, %v2097, %v2109
    %v2116 = vsel %vm2104, %v2098, %v2110
    %v2117 = vsel %vm2105, %v2099, %v2111
    %v2118 = vsel %vm2106, %v2100, %v2112
    %v2119 = vmul.f32 %v1891, 0.5
    %v2120 = vmul.f32 %v1893, 0.5
    %v2121 = vmul.f32 %v1975, 0.5
    %v2122 = vmul.f32 %v1895, 0.5
    %v2123 = vmul.f32 %v1897, 0.5
    %v2124 = vmul.f32 %v1978, 0.5
    %v2125 = vadd.f32 %v2113, 1.0
    %v2126 = vadd.f32 %v2114, 1.0
    %v2127 = vadd.f32 %v2115, 1.0
    %v2128 = vadd.f32 %v2116, 1.0
    %v2129 = vadd.f32 %v2117, 1.0
    %v2130 = vadd.f32 %v2118, 1.0
    %v2131 = vmul.f32 %v2119, %v2125
    %v2132 = vmul.f32 %v2120, %v2126
    %v2133 = vmul.f32 %v2121, %v2127
    %v2134 = vmul.f32 %v2122, %v2128
    %v2135 = vmul.f32 %v2123, %v2129
    %v2136 = vmul.f32 %v2124, %v2130
    %s2137 = scalar_lea.vmem [#allocation13], 540
    %v2138 = vld [vmem:[%s2137] sm:$0xff]
    %v2139 = vld [vmem:[%s2137 + $0x8] sm:$0xf]
    %v2140 = vld [vmem:[%s2137 + $0xc] sm:$0xff]
    %v2141 = vld [vmem:[%s2137 + $0x14] sm:$0xf]
    %v2142 = vld [vmem:[%s2137 + $0x18] sm:$0xff]
    %v2143 = vld [vmem:[%s2137 + $0x20] sm:$0xf]
    %v2144 = vld [vmem:[%s2137 + $0x24] sm:$0xff]
    %v2145 = vld [vmem:[%s2137 + $0x2c] sm:$0xf]
    %v2146 = vld [vmem:[%s2137 + $0x30] sm:$0xff]
    %v2147 = vld [vmem:[%s2137 + $0x38] sm:$0xf]
    %v2148 = vld [vmem:[%s2137 + $0x3c] sm:$0xff]
    %v2149 = vld [vmem:[%s2137 + $0x44] sm:$0xf]
    %v2150 = vld [vmem:[%s2137 + $0x48] sm:$0xff]
    %v2151 = vld [vmem:[%s2137 + $0x50] sm:$0xf]
    %v2152 = vld [vmem:[%s2137 + $0x54] sm:$0xff]
    %v2153 = vld [vmem:[%s2137 + $0x5c] sm:$0xf]
    %v2154 = vld [vmem:[%s2137 + $0x60] sm:$0xff]
    %v2155 = vld [vmem:[%s2137 + $0x68] sm:$0xf]
    %v2156 = vld [vmem:[%s2137 + $0x6c] sm:$0xff]
    %v2157 = vld [vmem:[%s2137 + $0x74] sm:$0xf]
    %v2158 = vld [vmem:[%s2137 + $0x78] sm:$0xff]
    %v2159 = vld [vmem:[%s2137 + $0x80] sm:$0xf]
    %v2160 = vld [vmem:[%s2137 + $0x84] sm:$0xff]
    %v2161 = vld [vmem:[%s2137 + $0x8c] sm:$0xf]
    %v2162 = vld [vmem:[%s2137 + $0x90] sm:$0xff]
    %v2163 = vld [vmem:[%s2137 + $0x98] sm:$0xf]
    %v2164 = vld [vmem:[%s2137 + $0x9c] sm:$0xff]
    %v2165 = vld [vmem:[%s2137 + $0xa4] sm:$0xf]
    %v2166 = vld [vmem:[%s2137 + $0xa8] sm:$0xff]
    %v2167 = vld [vmem:[%s2137 + $0xb0] sm:$0xf]
    %v2168 = vld [vmem:[%s2137 + $0xb4] sm:$0xff]
    %v2169 = vld [vmem:[%s2137 + $0xbc] sm:$0xf]
    %v2170 = vld [vmem:[%s2137 + $0xc0] sm:$0xff]
    %v2171 = vld [vmem:[%s2137 + $0xc8] sm:$0xf]
    %v2172 = vld [vmem:[%s2137 + $0xcc] sm:$0xff]
    %v2173 = vld [vmem:[%s2137 + $0xd4] sm:$0xf]
    %v2174 = vld [vmem:[%s2137 + $0xd8] sm:$0xff]
    %v2175 = vld [vmem:[%s2137 + $0xe0] sm:$0xf]
    %v2176 = vld [vmem:[%s2137 + $0xe4] sm:$0xff]
    %v2177 = vld [vmem:[%s2137 + $0xec] sm:$0xf]
    %v2178 = vld [vmem:[%s2137 + $0xf0] sm:$0xff]
    %v2179 = vld [vmem:[%s2137 + $0xf8] sm:$0xf]
    %v2180 = vld [vmem:[%s2137 + $0xfc] sm:$0xff]
    %v2181 = vld [vmem:[%s2137 + $0x104] sm:$0xf]
    %v2182 = vld [vmem:[%s2137 + $0x108] sm:$0xff]
    %v2183 = vld [vmem:[%s2137 + $0x110] sm:$0xf]
    %v2184 = vld [vmem:[%s2137 + $0x114] sm:$0xff]
    %v2185 = vld [vmem:[%s2137 + $0x11c] sm:$0xf]
    %v2186 = vld [vmem:[%s2137 + $0x120] sm:$0xff]
    %v2187 = vld [vmem:[%s2137 + $0x128] sm:$0xf]
    %v2188 = vld [vmem:[%s2137 + $0x12c] sm:$0xff]
    %v2189 = vld [vmem:[%s2137 + $0x134] sm:$0xf]
    %v2190 = vld [vmem:[%s2137 + $0x138] sm:$0xff]
    %v2191 = vld [vmem:[%s2137 + $0x140] sm:$0xf]
    %v2192 = vld [vmem:[%s2137 + $0x144] sm:$0xff]
    %v2193 = vld [vmem:[%s2137 + $0x14c] sm:$0xf]
    %v2194 = vld [vmem:[%s2137 + $0x150] sm:$0xff]
    %v2195 = vld [vmem:[%s2137 + $0x158] sm:$0xf]
    %v2196 = vld [vmem:[%s2137 + $0x15c] sm:$0xff]
    %v2197 = vld [vmem:[%s2137 + $0x164] sm:$0xf]
    %v2198 = vld [vmem:[%s2137 + $0x168] sm:$0xff]
    %v2199 = vld [vmem:[%s2137 + $0x170] sm:$0xf]
    %v2200 = vld [vmem:[%s2137 + $0x174] sm:$0xff]
    %v2201 = vld [vmem:[%s2137 + $0x17c] sm:$0xf]
    %v2202 = vld [vmem:[%s2137 + $0x180] sm:$0xff]
    %v2203 = vld [vmem:[%s2137 + $0x188] sm:$0xf]
    %v2204 = vld [vmem:[%s2137 + $0x18c] sm:$0xff]
    %v2205 = vld [vmem:[%s2137 + $0x194] sm:$0xf]
    %v2206 = vld [vmem:[%s2137 + $0x198] sm:$0xff]
    %v2207 = vld [vmem:[%s2137 + $0x1a0] sm:$0xf]
    %v2208 = vld [vmem:[%s2137 + $0x1a4] sm:$0xff]
    %v2209 = vld [vmem:[%s2137 + $0x1ac] sm:$0xf]
    %v2210 = vld [vmem:[%s2137 + $0x1b0] sm:$0xff]
    %v2211 = vld [vmem:[%s2137 + $0x1b8] sm:$0xf]
    %v2212 = vld [vmem:[%s2137 + $0x1bc] sm:$0xff]
    %v2213 = vld [vmem:[%s2137 + $0x1c4] sm:$0xf]
    %v2214 = vld [vmem:[%s2137 + $0x1c8] sm:$0xff]
    %v2215 = vld [vmem:[%s2137 + $0x1d0] sm:$0xf]
    %v2216 = vld [vmem:[%s2137 + $0x1d4] sm:$0xff]
    %v2217 = vld [vmem:[%s2137 + $0x1dc] sm:$0xf]
    %v2218 = vld [vmem:[%s2137 + $0x1e0] sm:$0xff]
    %v2219 = vld [vmem:[%s2137 + $0x1e8] sm:$0xf]
    %v2220 = vld [vmem:[%s2137 + $0x1ec] sm:$0xff]
    %v2221 = vld [vmem:[%s2137 + $0x1f4] sm:$0xf]
    %v2222 = vld [vmem:[%s2137 + $0x1f8] sm:$0xff]
    %v2223 = vld [vmem:[%s2137 + $0x200] sm:$0xf]
    %v2224 = vld [vmem:[%s2137 + $0x204] sm:$0xff]
    %v2225 = vld [vmem:[%s2137 + $0x20c] sm:$0xf]
    %v2226 = vld [vmem:[%s2137 + $0x210] sm:$0x33]
    %v2227 = vld [vmem:[%s2137 + $0x218] sm:$0x3]
    %v2228 = vpack.c.bf16 %v2134, %v2131
    %v2229 = vpack.c.bf16 %v2135, %v2132
    %v2230 = vpack.c.bf16 %v2136, %v2133
    %s2231 = scalar_lea.vmem %s10, 3
    %v2232 = vld [vmem:[%s2231] sm:$0x7]
    %v2234 = vlaneseq
    %v2235 = vshrl.u32 %v2234, 7
    %v2236 = vsub.s32 0, %v2235
    %v2237 = vrot.slane %v2232, %v2236
    %v2238 = vlaneseq
    %v2239 = vshrl.u32 %v2238, 7
    %v2240 = vsub.s32 1, %v2239
    %v2241 = vrot.slane %v2232, %v2240
    %v2242 = vlaneseq
    %v2243 = vshrl.u32 %v2242, 7
    %v2244 = vsub.s32 2, %v2243
    %v2245 = vrot.slane %v2232, %v2244
    %v2339 = vunpack.c.l.b16 %v2138
    %v2340 = vunpack.c.h.b16 %v2138
    %v2341 = vunpack.c.l.b16 %v2139
    %v2342 = vunpack.c.l.b16 %v2140
    %v2343 = vunpack.c.h.b16 %v2140
    %v2344 = vunpack.c.l.b16 %v2141
    %v2345 = vunpack.c.l.b16 %v2142
    %v2346 = vunpack.c.h.b16 %v2142
    %v2347 = vunpack.c.l.b16 %v2143
    %v2348 = vunpack.c.l.b16 %v2144
    %v2349 = vunpack.c.h.b16 %v2144
    %v2350 = vunpack.c.l.b16 %v2145
    %v2351 = vunpack.c.l.b16 %v2146
    %v2352 = vunpack.c.h.b16 %v2146
    %v2353 = vunpack.c.l.b16 %v2147
    %v2354 = vunpack.c.l.b16 %v2148
    %v2355 = vunpack.c.h.b16 %v2148
    %v2356 = vunpack.c.l.b16 %v2149
    %v2357 = vunpack.c.l.b16 %v2150
    %v2358 = vunpack.c.h.b16 %v2150
    %v2359 = vunpack.c.l.b16 %v2151
    %v2360 = vunpack.c.l.b16 %v2152
    %v2361 = vunpack.c.h.b16 %v2152
    %v2362 = vunpack.c.l.b16 %v2153
    %v2363 = vunpack.c.l.b16 %v2154
    %v2364 = vunpack.c.h.b16 %v2154
    %v2365 = vunpack.c.l.b16 %v2155
    %v2366 = vunpack.c.l.b16 %v2156
    %v2367 = vunpack.c.h.b16 %v2156
    %v2368 = vunpack.c.l.b16 %v2157
    %v2369 = vunpack.c.l.b16 %v2158
    %v2370 = vunpack.c.h.b16 %v2158
    %v2371 = vunpack.c.l.b16 %v2159
    %v2372 = vunpack.c.l.b16 %v2160
    %v2373 = vunpack.c.h.b16 %v2160
    %v2374 = vunpack.c.l.b16 %v2161
    %v2375 = vunpack.c.l.b16 %v2162
    %v2376 = vunpack.c.h.b16 %v2162
    %v2377 = vunpack.c.l.b16 %v2163
    %v2378 = vunpack.c.l.b16 %v2164
    %v2379 = vunpack.c.h.b16 %v2164
    %v2380 = vunpack.c.l.b16 %v2165
    %v2381 = vunpack.c.l.b16 %v2166
    %v2382 = vunpack.c.h.b16 %v2166
    %v2383 = vunpack.c.l.b16 %v2167
    %v2384 = vunpack.c.l.b16 %v2168
    %v2385 = vunpack.c.h.b16 %v2168
    %v2386 = vunpack.c.l.b16 %v2169
    %v2387 = vunpack.c.l.b16 %v2170
    %v2388 = vunpack.c.h.b16 %v2170
    %v2389 = vunpack.c.l.b16 %v2171
    %v2390 = vunpack.c.l.b16 %v2172
    %v2391 = vunpack.c.h.b16 %v2172
    %v2392 = vunpack.c.l.b16 %v2173
    %v2393 = vunpack.c.l.b16 %v2174
    %v2394 = vunpack.c.h.b16 %v2174
    %v2395 = vunpack.c.l.b16 %v2175
    %v2396 = vunpack.c.l.b16 %v2176
    %v2397 = vunpack.c.h.b16 %v2176
    %v2398 = vunpack.c.l.b16 %v2177
    %v2399 = vunpack.c.l.b16 %v2178
    %v2400 = vunpack.c.h.b16 %v2178
    %v2401 = vunpack.c.l.b16 %v2179
    %v2402 = vunpack.c.l.b16 %v2180
    %v2403 = vunpack.c.h.b16 %v2180
    %v2404 = vunpack.c.l.b16 %v2181
    %v2405 = vunpack.c.l.b16 %v2182
    %v2406 = vunpack.c.h.b16 %v2182
    %v2407 = vunpack.c.l.b16 %v2183
    %v2408 = vunpack.c.l.b16 %v2184
    %v2409 = vunpack.c.h.b16 %v2184
    %v2410 = vunpack.c.l.b16 %v2185
    %v2411 = vunpack.c.l.b16 %v2186
    %v2412 = vunpack.c.h.b16 %v2186
    %v2413 = vunpack.c.l.b16 %v2187
    %v2414 = vunpack.c.l.b16 %v2188
    %v2415 = vunpack.c.h.b16 %v2188
    %v2416 = vunpack.c.l.b16 %v2189
    %v2417 = vunpack.c.l.b16 %v2190
    %v2418 = vunpack.c.h.b16 %v2190
    %v2419 = vunpack.c.l.b16 %v2191
    %v2420 = vunpack.c.l.b16 %v2192
    %v2421 = vunpack.c.h.b16 %v2192
    %v2422 = vunpack.c.l.b16 %v2193
    %v2423 = vunpack.c.l.b16 %v2194
    %v2424 = vunpack.c.h.b16 %v2194
    %v2425 = vunpack.c.l.b16 %v2195
    %v2426 = vunpack.c.l.b16 %v2196
    %v2427 = vunpack.c.h.b16 %v2196
    %v2428 = vunpack.c.l.b16 %v2197
    %v2429 = vunpack.c.l.b16 %v2198
    %v2430 = vunpack.c.h.b16 %v2198
    %v2431 = vunpack.c.l.b16 %v2199
    %v2432 = vunpack.c.l.b16 %v2200
    %v2433 = vunpack.c.h.b16 %v2200
    %v2434 = vunpack.c.l.b16 %v2201
    %v2435 = vunpack.c.l.b16 %v2202
    %v2436 = vunpack.c.h.b16 %v2202
    %v2437 = vunpack.c.l.b16 %v2203
    %v2438 = vunpack.c.l.b16 %v2204
    %v2439 = vunpack.c.h.b16 %v2204
    %v2440 = vunpack.c.l.b16 %v2205
    %v2441 = vunpack.c.l.b16 %v2206
    %v2442 = vunpack.c.h.b16 %v2206
    %v2443 = vunpack.c.l.b16 %v2207
    %v2444 = vunpack.c.l.b16 %v2208
    %v2445 = vunpack.c.h.b16 %v2208
    %v2446 = vunpack.c.l.b16 %v2209
    %v2447 = vunpack.c.l.b16 %v2210
    %v2448 = vunpack.c.h.b16 %v2210
    %v2449 = vunpack.c.l.b16 %v2211
    %v2450 = vunpack.c.l.b16 %v2212
    %v2451 = vunpack.c.h.b16 %v2212
    %v2452 = vunpack.c.l.b16 %v2213
    %v2453 = vunpack.c.l.b16 %v2214
    %v2454 = vunpack.c.h.b16 %v2214
    %v2455 = vunpack.c.l.b16 %v2215
    %v2456 = vunpack.c.l.b16 %v2216
    %v2457 = vunpack.c.h.b16 %v2216
    %v2458 = vunpack.c.l.b16 %v2217
    %v2459 = vunpack.c.l.b16 %v2218
    %v2460 = vunpack.c.h.b16 %v2218
    %v2461 = vunpack.c.l.b16 %v2219
    %v2462 = vunpack.c.l.b16 %v2220
    %v2463 = vunpack.c.h.b16 %v2220
    %v2464 = vunpack.c.l.b16 %v2221
    %v2465 = vunpack.c.l.b16 %v2222
    %v2466 = vunpack.c.h.b16 %v2222
    %v2467 = vunpack.c.l.b16 %v2223
    %v2468 = vunpack.c.l.b16 %v2224
    %v2469 = vunpack.c.h.b16 %v2224
    %v2470 = vunpack.c.l.b16 %v2225
    %v2471 = vunpack.c.l.b16 %v2226
    %v2472 = vunpack.c.h.b16 %v2226
    %v2473 = vunpack.c.l.b16 %v2227
    %v2474 = vpack.c.b16 %v2342, %v2339
    %v2475 = vpack.c.b16 %v2343, %v2340
    %v2476 = vpack.c.b16 %v2344, %v2341
    %v2477 = vpack.c.b16 %v2348, %v2345
    %v2478 = vpack.c.b16 %v2349, %v2346
    %v2479 = vpack.c.b16 %v2350, %v2347
    %v2480 = vpack.c.b16 %v2354, %v2351
    %v2481 = vpack.c.b16 %v2355, %v2352
    %v2482 = vpack.c.b16 %v2356, %v2353
    %v2483 = vpack.c.b16 %v2360, %v2357
    %v2484 = vpack.c.b16 %v2361, %v2358
    %v2485 = vpack.c.b16 %v2362, %v2359
    %v2486 = vpack.c.b16 %v2366, %v2363
    %v2487 = vpack.c.b16 %v2367, %v2364
    %v2488 = vpack.c.b16 %v2368, %v2365
    %v2489 = vpack.c.b16 %v2372, %v2369
    %v2490 = vpack.c.b16 %v2373, %v2370
    %v2491 = vpack.c.b16 %v2374, %v2371
    %v2492 = vpack.c.b16 %v2378, %v2375
    %v2493 = vpack.c.b16 %v2379, %v2376
    %v2494 = vpack.c.b16 %v2380, %v2377
    %v2495 = vpack.c.b16 %v2384, %v2381
    %v2496 = vpack.c.b16 %v2385, %v2382
    %v2497 = vpack.c.b16 %v2386, %v2383
    %v2498 = vpack.c.b16 %v2390, %v2387
    %v2499 = vpack.c.b16 %v2391, %v2388
    %v2500 = vpack.c.b16 %v2392, %v2389
    %v2501 = vpack.c.b16 %v2396, %v2393
    %v2502 = vpack.c.b16 %v2397, %v2394
    %v2503 = vpack.c.b16 %v2398, %v2395
    %v2504 = vpack.c.b16 %v2402, %v2399
    %v2505 = vpack.c.b16 %v2403, %v2400
    %v2506 = vpack.c.b16 %v2404, %v2401
    %v2507 = vpack.c.b16 %v2408, %v2405
    %v2508 = vpack.c.b16 %v2409, %v2406
    %v2509 = vpack.c.b16 %v2410, %v2407
    %v2510 = vpack.c.b16 %v2414, %v2411
    %v2511 = vpack.c.b16 %v2415, %v2412
    %v2512 = vpack.c.b16 %v2416, %v2413
    %v2513 = vpack.c.b16 %v2420, %v2417
    %v2514 = vpack.c.b16 %v2421, %v2418
    %v2515 = vpack.c.b16 %v2422, %v2419
    %v2516 = vpack.c.b16 %v2426, %v2423
    %v2517 = vpack.c.b16 %v2427, %v2424
    %v2518 = vpack.c.b16 %v2428, %v2425
    %v2519 = vpack.c.b16 %v2432, %v2429
    %v2520 = vpack.c.b16 %v2433, %v2430
    %v2521 = vpack.c.b16 %v2434, %v2431
    %v2522 = vpack.c.b16 %v2438, %v2435
    %v2523 = vpack.c.b16 %v2439, %v2436
    %v2524 = vpack.c.b16 %v2440, %v2437
    %v2525 = vpack.c.b16 %v2444, %v2441
    %v2526 = vpack.c.b16 %v2445, %v2442
    %v2527 = vpack.c.b16 %v2446, %v2443
    %v2528 = vpack.c.b16 %v2450, %v2447
    %v2529 = vpack.c.b16 %v2451, %v2448
    %v2530 = vpack.c.b16 %v2452, %v2449
    %v2531 = vpack.c.b16 %v2456, %v2453
    %v2532 = vpack.c.b16 %v2457, %v2454
    %v2533 = vpack.c.b16 %v2458, %v2455
    %v2534 = vpack.c.b16 %v2462, %v2459
    %v2535 = vpack.c.b16 %v2463, %v2460
    %v2536 = vpack.c.b16 %v2464, %v2461
    %v2537 = vpack.c.b16 %v2468, %v2465
    %v2538 = vpack.c.b16 %v2469, %v2466
    %v2539 = vpack.c.b16 %v2470, %v2467
    %v2540 = vpack.c.b16 %v2471, %v2471
    %v2541 = vpack.c.b16 %v2472, %v2472
    %v2542 = vpack.c.b16 %v2473, %v2473
    %v2610 = vsel %vm970, %v2230, 0
    %v2613 = vsel %vm974, %v2540, 0
    %v2616 = vsel %vm974, %v2541, 0
    %v2619 = vsel %vm974, %v2542, 0
    %2621 = vmatprep.subr.bf16.mxu0 %v2475
    %2622 = vmatpush1.bf16.msra.mxu0 %v2474
    %2623 = vmatprep.subr.bf16.mxu0 %v2478
    %2624 = vmatpush1.bf16.msra.mxu0 %v2477
    %2625 = vmatprep.subr.bf16.mxu0 %v2481
    %2626 = vmatpush1.bf16.msra.mxu0 %v2480
    %2627 = vmatprep.subr.bf16.mxu0 %v2484
    %2628 = vmatpush1.bf16.msra.mxu0 %v2483
    %2629 = vmatprep.subr.bf16.mxu0 %v2487
    %2630 = vmatpush1.bf16.msra.mxu0 %v2486
    %2631 = vmatprep.subr.bf16.mxu0 %v2490
    %2632 = vmatpush1.bf16.msra.mxu0 %v2489
    %2633 = vmatprep.subr.bf16.mxu0 %v2493
    %2634 = vmatpush1.bf16.msra.mxu0 %v2492
    %2635 = vmatprep.subr.bf16.mxu0 %v2496
    %2636 = vmatpush1.bf16.msra.mxu0 %v2495
    %2637 = vmatprep.subr.bf16.mxu0 %v2499
    %2638 = vmatpush1.bf16.msra.mxu0 %v2498
    %2639 = vmatprep.subr.bf16.mxu0 %v2502
    %2640 = vmatpush1.bf16.msra.mxu0 %v2501
    %2641 = vmatprep.subr.bf16.mxu0 %v2505
    %2642 = vmatpush1.bf16.msra.mxu0 %v2504
    %2643 = vmatprep.subr.bf16.mxu0 %v2508
    %2644 = vmatpush1.bf16.msra.mxu0 %v2507
    %2645 = vmatprep.subr.bf16.mxu0 %v2511
    %2646 = vmatpush1.bf16.msra.mxu0 %v2510
    %2647 = vmatprep.subr.bf16.mxu0 %v2514
    %2648 = vmatpush1.bf16.msra.mxu0 %v2513
    %2649 = vmatprep.subr.bf16.mxu0 %v2517
    %2650 = vmatpush1.bf16.msra.mxu0 %v2516
    %2651 = vmatprep.subr.bf16.mxu0 %v2520
    %2652 = vmatpush1.bf16.msra.mxu0 %v2519
    %2653 = vmatprep.mubr.bf16.mxu0 %v2229
    %2654 = vmatmul.mubr.bf16.gmra.mrb[0].mxu0 %v2228
    %v2655 = vpop.f32.mrb[0].mxu0
    %v2656 = vadd.f32 %v2237, %v2655
    %v2657 = vpop.f32.mrb[0].mxu0
    %v2658 = vadd.f32 %v2241, %v2657
    %v2659 = vpop.f32.mrb[0].mxu0
    %v2660 = vadd.f32 %v2237, %v2659
    %v2661 = vpop.f32.mrb[0].mxu0
    %v2662 = vadd.f32 %v2241, %v2661
    %2663 = vdwg.mxu0
    %2664 = vmatprep.subr.bf16.mxu0 %v2523
    %2665 = vmatpush1.bf16.msra.mxu0 %v2522
    %2666 = vmatprep.subr.bf16.mxu0 %v2526
    %2667 = vmatpush1.bf16.msra.mxu0 %v2525
    %2668 = vmatprep.subr.bf16.mxu0 %v2529
    %2669 = vmatpush1.bf16.msra.mxu0 %v2528
    %2670 = vmatprep.subr.bf16.mxu0 %v2532
    %2671 = vmatpush1.bf16.msra.mxu0 %v2531
    %2672 = vmatprep.subr.bf16.mxu0 %v2535
    %2673 = vmatpush1.bf16.msra.mxu0 %v2534
    %2674 = vmatprep.subr.bf16.mxu0 %v2538
    %2675 = vmatpush1.bf16.msra.mxu0 %v2537
    %2676 = vmatprep.subr.bf16.mxu0 %v2616
    %2677 = vmatpush1.bf16.msra.mxu0 %v2613
    %2678 = vmatprep.subr.bf16.mxu0 0
    %2679 = vmatpush1.bf16.msra.mxu0 0
    %2680 = vmatprep.subr.bf16.mxu0 0
    %2681 = vmatpush1.bf16.msra.mxu0 0
    %2682 = vmatprep.subr.bf16.mxu0 0
    %2683 = vmatpush1.bf16.msra.mxu0 0
    %2684 = vmatprep.subr.bf16.mxu0 0
    %2685 = vmatpush1.bf16.msra.mxu0 0
    %2686 = vmatprep.subr.bf16.mxu0 0
    %2687 = vmatpush1.bf16.msra.mxu0 0
    %2688 = vmatprep.subr.bf16.mxu0 0
    %2689 = vmatpush1.bf16.msra.mxu0 0
    %2690 = vmatprep.subr.bf16.mxu0 0
    %2691 = vmatpush1.bf16.msra.mxu0 0
    %2692 = vmatprep.subr.bf16.mxu0 0
    %2693 = vmatpush1.bf16.msra.mxu0 0
    %2694 = vmatprep.subr.bf16.mxu0 0
    %2695 = vmatpush1.bf16.msra.mxu0 0
    %2696 = vmatprep.mubr.bf16.mxu0 0
    %2697 = vmatmul.mubr.bf16.gmra.mrb[0].mxu0 %v2610
    %v2698 = vpop.f32.mrb[0].mxu0
    %v2699 = vadd.f32 %v2656, %v2698
    %v2700 = vpop.f32.mrb[0].mxu0
    %v2701 = vadd.f32 %v2658, %v2700
    %v2702 = vpop.f32.mrb[0].mxu0
    %v2703 = vadd.f32 %v2660, %v2702
    %v2704 = vpop.f32.mrb[0].mxu0
    %v2705 = vadd.f32 %v2662, %v2704
    %2706 = vdwg.mxu0
    %2707 = vmatprep.subr.bf16.mxu0 0
    %2708 = vmatpush1.bf16.msra.mxu0 %v2476
    %2709 = vmatprep.subr.bf16.mxu0 0
    %2710 = vmatpush1.bf16.msra.mxu0 %v2479
    %2711 = vmatprep.subr.bf16.mxu0 0
    %2712 = vmatpush1.bf16.msra.mxu0 %v2482
    %2713 = vmatprep.subr.bf16.mxu0 0
    %2714 = vmatpush1.bf16.msra.mxu0 %v2485
    %2715 = vmatprep.subr.bf16.mxu0 0
    %2716 = vmatpush1.bf16.msra.mxu0 %v2488
    %2717 = vmatprep.subr.bf16.mxu0 0
    %2718 = vmatpush1.bf16.msra.mxu0 %v2491
    %2719 = vmatprep.subr.bf16.mxu0 0
    %2720 = vmatpush1.bf16.msra.mxu0 %v2494
    %2721 = vmatprep.subr.bf16.mxu0 0
    %2722 = vmatpush1.bf16.msra.mxu0 %v2497
    %2723 = vmatprep.subr.bf16.mxu0 0
    %2724 = vmatpush1.bf16.msra.mxu0 %v2500
    %2725 = vmatprep.subr.bf16.mxu0 0
    %2726 = vmatpush1.bf16.msra.mxu0 %v2503
    %2727 = vmatprep.subr.bf16.mxu0 0
    %2728 = vmatpush1.bf16.msra.mxu0 %v2506
    %2729 = vmatprep.subr.bf16.mxu0 0
    %2730 = vmatpush1.bf16.msra.mxu0 %v2509
    %2731 = vmatprep.subr.bf16.mxu0 0
    %2732 = vmatpush1.bf16.msra.mxu0 %v2512
    %2733 = vmatprep.subr.bf16.mxu0 0
    %2734 = vmatpush1.bf16.msra.mxu0 %v2515
    %2735 = vmatprep.subr.bf16.mxu0 0
    %2736 = vmatpush1.bf16.msra.mxu0 %v2518
    %2737 = vmatprep.subr.bf16.mxu0 0
    %2738 = vmatpush1.bf16.msra.mxu0 %v2521
    %2739 = vmatprep.mubr.bf16.mxu0 %v2229
    %2740 = vmatmul.mubr.bf16.gmra.mrb[0].mxu0 %v2228
    %v2741 = vpop.f32.mrb[0].mxu0
    %v2742 = vadd.f32 %v2245, %v2741
    %v2743 = vpop.f32.mrb[0].mxu0
    %v2744 = vpop.f32.mrb[0].mxu0
    %v2745 = vadd.f32 %v2245, %v2744
    %v2746 = vpop.f32.mrb[0].mxu0
    %2747 = vdwg.mxu0
    %2748 = vmatprep.subr.bf16.mxu0 0
    %2749 = vmatpush1.bf16.msra.mxu0 %v2524
    %2750 = vmatprep.subr.bf16.mxu0 0
    %2751 = vmatpush1.bf16.msra.mxu0 %v2527
    %2752 = vmatprep.subr.bf16.mxu0 0
    %2753 = vmatpush1.bf16.msra.mxu0 %v2530
    %2754 = vmatprep.subr.bf16.mxu0 0
    %2755 = vmatpush1.bf16.msra.mxu0 %v2533
    %2756 = vmatprep.subr.bf16.mxu0 0
    %2757 = vmatpush1.bf16.msra.mxu0 %v2536
    %2758 = vmatprep.subr.bf16.mxu0 0
    %2759 = vmatpush1.bf16.msra.mxu0 %v2539
    %2760 = vmatprep.subr.bf16.mxu0 0
    %2761 = vmatpush1.bf16.msra.mxu0 %v2619
    %2762 = vmatprep.subr.bf16.mxu0 0
    %2763 = vmatpush1.bf16.msra.mxu0 0
    %2764 = vmatprep.subr.bf16.mxu0 0
    %2765 = vmatpush1.bf16.msra.mxu0 0
    %2766 = vmatprep.subr.bf16.mxu0 0
    %2767 = vmatpush1.bf16.msra.mxu0 0
    %2768 = vmatprep.subr.bf16.mxu0 0
    %2769 = vmatpush1.bf16.msra.mxu0 0
    %2770 = vmatprep.subr.bf16.mxu0 0
    %2771 = vmatpush1.bf16.msra.mxu0 0
    %2772 = vmatprep.subr.bf16.mxu0 0
    %2773 = vmatpush1.bf16.msra.mxu0 0
    %2774 = vmatprep.subr.bf16.mxu0 0
    %2775 = vmatpush1.bf16.msra.mxu0 0
    %2776 = vmatprep.subr.bf16.mxu0 0
    %2777 = vmatpush1.bf16.msra.mxu0 0
    %2778 = vmatprep.subr.bf16.mxu0 0
    %2779 = vmatpush1.bf16.msra.mxu0 0
    %2780 = vmatprep.mubr.bf16.mxu0 0
    %2781 = vmatmul.mubr.bf16.gmra.mrb[0].mxu0 %v2610
    %v2782 = vpop.f32.mrb[0].mxu0
    %v2783 = vadd.f32 %v2742, %v2782
    %v2784 = vpop.f32.mrb[0].mxu0
    %v2785 = vpop.f32.mrb[0].mxu0
    %v2786 = vadd.f32 %v2745, %v2785
    %v2787 = vpop.f32.mrb[0].mxu0
    %2788 = vdwg.mxu0
    %v2789 = vmul.f32 %v2699, 0.70710677
    %v2790 = vmul.f32 %v2701, 0.70710677
    %v2791 = vmul.f32 %v2783, 0.70710677
    %v2792 = vmul.f32 %v2703, 0.70710677
    %v2793 = vmul.f32 %v2705, 0.70710677
    %v2794 = vmul.f32 %v2786, 0.70710677
    %v2795 = vand.u32 2147483647, %v2789
    %v2796 = vand.u32 2147483647, %v2790
    %v2797 = vand.u32 2147483647, %v2791
    %v2798 = vand.u32 2147483647, %v2792
    %v2799 = vand.u32 2147483647, %v2793
    %v2800 = vand.u32 2147483647, %v2794
    %v2801 = vmul.f32 %v2795, 0.3275911
    %v2802 = vmul.f32 %v2796, 0.3275911
    %v2803 = vmul.f32 %v2797, 0.3275911
    %v2804 = vmul.f32 %v2798, 0.3275911
    %v2805 = vmul.f32 %v2799, 0.3275911
    %v2806 = vmul.f32 %v2800, 0.3275911
    %v2807 = vadd.f32 %v2801, 1.0
    %v2808 = vadd.f32 %v2802, 1.0
    %v2809 = vadd.f32 %v2803, 1.0
    %v2810 = vadd.f32 %v2804, 1.0
    %v2811 = vadd.f32 %v2805, 1.0
    %v2812 = vadd.f32 %v2806, 1.0
    %v2813 = vrcp.pop %v2807
    %v2814 = vrcp.pop %v2808
    %v2815 = vrcp.pop %v2809
    %v2816 = vrcp.pop %v2810
    %v2817 = vrcp.pop %v2811
    %v2818 = vrcp.pop %v2812
    %v2819 = vmul.f32 %v2813, 1.0614054
    %v2820 = vmul.f32 %v2814, 1.0614054
    %v2821 = vmul.f32 %v2815, 1.0614054
    %v2822 = vmul.f32 %v2816, 1.0614054
    %v2823 = vmul.f32 %v2817, 1.0614054
    %v2824 = vmul.f32 %v2818, 1.0614054
    %v2825 = vadd.f32 %v2819, -1.4531521
    %v2826 = vadd.f32 %v2820, -1.4531521
    %v2827 = vadd.f32 %v2821, -1.4531521
    %v2828 = vadd.f32 %v2822, -1.4531521
    %v2829 = vadd.f32 %v2823, -1.4531521
    %v2830 = vadd.f32 %v2824, -1.4531521
    %v2831 = vmul.f32 %v2825, %v2813
    %v2832 = vmul.f32 %v2826, %v2814
    %v2833 = vmul.f32 %v2827, %v2815
    %v2834 = vmul.f32 %v2828, %v2816
    %v2835 = vmul.f32 %v2829, %v2817
    %v2836 = vmul.f32 %v2830, %v2818
    %v2837 = vadd.f32 %v2831, 1.4214138
    %v2838 = vadd.f32 %v2832, 1.4214138
    %v2839 = vadd.f32 %v2833, 1.4214138
    %v2840 = vadd.f32 %v2834, 1.4214138
    %v2841 = vadd.f32 %v2835, 1.4214138
    %v2842 = vadd.f32 %v2836, 1.4214138
    %v2843 = vmul.f32 %v2837, %v2813
    %v2844 = vmul.f32 %v2838, %v2814
    %v2845 = vmul.f32 %v2839, %v2815
    %v2846 = vmul.f32 %v2840, %v2816
    %v2847 = vmul.f32 %v2841, %v2817
    %v2848 = vmul.f32 %v2842, %v2818
    %v2849 = vadd.f32 %v2843, -0.28449672
    %v2850 = vadd.f32 %v2844, -0.28449672
    %v2851 = vadd.f32 %v2845, -0.28449672
    %v2852 = vadd.f32 %v2846, -0.28449672
    %v2853 = vadd.f32 %v2847, -0.28449672
    %v2854 = vadd.f32 %v2848, -0.28449672
    %v2855 = vmul.f32 %v2849, %v2813
    %v2856 = vmul.f32 %v2850, %v2814
    %v2857 = vmul.f32 %v2851, %v2815
    %v2858 = vmul.f32 %v2852, %v2816
    %v2859 = vmul.f32 %v2853, %v2817
    %v2860 = vmul.f32 %v2854, %v2818
    %v2861 = vadd.f32 %v2855, 0.2548296
    %v2862 = vadd.f32 %v2856, 0.2548296
    %v2863 = vadd.f32 %v2857, 0.2548296
    %v2864 = vadd.f32 %v2858, 0.2548296
    %v2865 = vadd.f32 %v2859, 0.2548296
    %v2866 = vadd.f32 %v2860, 0.2548296
    %v2867 = vmul.f32 %v2861, %v2813
    %v2868 = vmul.f32 %v2862, %v2814
    %v2869 = vmul.f32 %v2863, %v2815
    %v2870 = vmul.f32 %v2864, %v2816
    %v2871 = vmul.f32 %v2865, %v2817
    %v2872 = vmul.f32 %v2866, %v2818
    %v2873 = vsub.f32 0.0, %v2795
    %v2874 = vsub.f32 0.0, %v2796
    %v2875 = vsub.f32 0.0, %v2797
    %v2876 = vsub.f32 0.0, %v2798
    %v2877 = vsub.f32 0.0, %v2799
    %v2878 = vsub.f32 0.0, %v2800
    %v2879 = vmul.f32 %v2873, %v2795
    %v2880 = vmul.f32 %v2874, %v2796
    %v2881 = vmul.f32 %v2875, %v2797
    %v2882 = vmul.f32 %v2876, %v2798
    %v2883 = vmul.f32 %v2877, %v2799
    %v2884 = vmul.f32 %v2878, %v2800
    %v2885 = vmul.f32 %v2879, 1.442695
    %v2886 = vpow.pop %v2885
    %v2887 = vmul.f32 %v2880, 1.442695
    %v2888 = vpow.pop %v2887
    %v2889 = vmul.f32 %v2881, 1.442695
    %v2890 = vpow.pop %v2889
    %v2891 = vmul.f32 %v2882, 1.442695
    %v2892 = vpow.pop %v2891
    %v2893 = vmul.f32 %v2883, 1.442695
    %v2894 = vpow.pop %v2893
    %v2895 = vmul.f32 %v2884, 1.442695
    %v2896 = vpow.pop %v2895
    %v2897 = vmul.f32 %v2867, %v2886
    %v2898 = vmul.f32 %v2868, %v2888
    %v2899 = vmul.f32 %v2869, %v2890
    %v2900 = vmul.f32 %v2870, %v2892
    %v2901 = vmul.f32 %v2871, %v2894
    %v2902 = vmul.f32 %v2872, %v2896
    %v2903 = vsub.f32 1.0, %v2897
    %v2904 = vsub.f32 1.0, %v2898
    %v2905 = vsub.f32 1.0, %v2899
    %v2906 = vsub.f32 1.0, %v2900
    %v2907 = vsub.f32 1.0, %v2901
    %v2908 = vsub.f32 1.0, %v2902
    %vm2909 = vcmp.ge.f32.partialorder %v2789, 0.0
    %vm2910 = vcmp.ge.f32.partialorder %v2790, 0.0
    %vm2911 = vcmp.ge.f32.partialorder %v2791, 0.0
    %vm2912 = vcmp.ge.f32.partialorder %v2792, 0.0
    %vm2913 = vcmp.ge.f32.partialorder %v2793, 0.0
    %vm2914 = vcmp.ge.f32.partialorder %v2794, 0.0
    %v2915 = vsub.f32 0.0, %v2903
    %v2916 = vsub.f32 0.0, %v2904
    %v2917 = vsub.f32 0.0, %v2905
    %v2918 = vsub.f32 0.0, %v2906
    %v2919 = vsub.f32 0.0, %v2907
    %v2920 = vsub.f32 0.0, %v2908
    %v2921 = vsel %vm2909, %v2903, %v2915
    %v2922 = vsel %vm2910, %v2904, %v2916
    %v2923 = vsel %vm2911, %v2905, %v2917
    %v2924 = vsel %vm2912, %v2906, %v2918
    %v2925 = vsel %vm2913, %v2907, %v2919
    %v2926 = vsel %vm2914, %v2908, %v2920
    %v2927 = vmul.f32 %v2699, 0.5
    %v2928 = vmul.f32 %v2701, 0.5
    %v2929 = vmul.f32 %v2783, 0.5
    %v2930 = vmul.f32 %v2703, 0.5
    %v2931 = vmul.f32 %v2705, 0.5
    %v2932 = vmul.f32 %v2786, 0.5
    %v2933 = vadd.f32 %v2921, 1.0
    %v2934 = vadd.f32 %v2922, 1.0
    %v2935 = vadd.f32 %v2923, 1.0
    %v2936 = vadd.f32 %v2924, 1.0
    %v2937 = vadd.f32 %v2925, 1.0
    %v2938 = vadd.f32 %v2926, 1.0
    %v2939 = vmul.f32 %v2927, %v2933
    %v2940 = vmul.f32 %v2928, %v2934
    %v2941 = vmul.f32 %v2929, %v2935
    %v2942 = vmul.f32 %v2930, %v2936
    %v2943 = vmul.f32 %v2931, %v2937
    %v2944 = vmul.f32 %v2932, %v2938
    %s2945 = scalar_lea.vmem [#allocation13], 1080
    %v2946 = vld [vmem:[%s2945] sm:$0xff]
    %v2947 = vld [vmem:[%s2945 + $0x8] sm:$0xf]
    %v2948 = vld [vmem:[%s2945 + $0xc] sm:$0xff]
    %v2949 = vld [vmem:[%s2945 + $0x14] sm:$0xf]
    %v2950 = vld [vmem:[%s2945 + $0x18] sm:$0xff]
    %v2951 = vld [vmem:[%s2945 + $0x20] sm:$0xf]
    %v2952 = vld [vmem:[%s2945 + $0x24] sm:$0xff]
    %v2953 = vld [vmem:[%s2945 + $0x2c] sm:$0xf]
    %v2954 = vld [vmem:[%s2945 + $0x30] sm:$0xff]
    %v2955 = vld [vmem:[%s2945 + $0x38] sm:$0xf]
    %v2956 = vld [vmem:[%s2945 + $0x3c] sm:$0xff]
    %v2957 = vld [vmem:[%s2945 + $0x44] sm:$0xf]
    %v2958 = vld [vmem:[%s2945 + $0x48] sm:$0xff]
    %v2959 = vld [vmem:[%s2945 + $0x50] sm:$0xf]
    %v2960 = vld [vmem:[%s2945 + $0x54] sm:$0xff]
    %v2961 = vld [vmem:[%s2945 + $0x5c] sm:$0xf]
    %v2962 = vld [vmem:[%s2945 + $0x60] sm:$0xff]
    %v2963 = vld [vmem:[%s2945 + $0x68] sm:$0xf]
    %v2964 = vld [vmem:[%s2945 + $0x6c] sm:$0xff]
    %v2965 = vld [vmem:[%s2945 + $0x74] sm:$0xf]
    %v2966 = vld [vmem:[%s2945 + $0x78] sm:$0xff]
    %v2967 = vld [vmem:[%s2945 + $0x80] sm:$0xf]
    %v2968 = vld [vmem:[%s2945 + $0x84] sm:$0xff]
    %v2969 = vld [vmem:[%s2945 + $0x8c] sm:$0xf]
    %v2970 = vld [vmem:[%s2945 + $0x90] sm:$0xff]
    %v2971 = vld [vmem:[%s2945 + $0x98] sm:$0xf]
    %v2972 = vld [vmem:[%s2945 + $0x9c] sm:$0xff]
    %v2973 = vld [vmem:[%s2945 + $0xa4] sm:$0xf]
    %v2974 = vld [vmem:[%s2945 + $0xa8] sm:$0xff]
    %v2975 = vld [vmem:[%s2945 + $0xb0] sm:$0xf]
    %v2976 = vld [vmem:[%s2945 + $0xb4] sm:$0xff]
    %v2977 = vld [vmem:[%s2945 + $0xbc] sm:$0xf]
    %v2978 = vld [vmem:[%s2945 + $0xc0] sm:$0xff]
    %v2979 = vld [vmem:[%s2945 + $0xc8] sm:$0xf]
    %v2980 = vld [vmem:[%s2945 + $0xcc] sm:$0xff]
    %v2981 = vld [vmem:[%s2945 + $0xd4] sm:$0xf]
    %v2982 = vld [vmem:[%s2945 + $0xd8] sm:$0xff]
    %v2983 = vld [vmem:[%s2945 + $0xe0] sm:$0xf]
    %v2984 = vld [vmem:[%s2945 + $0xe4] sm:$0xff]
    %v2985 = vld [vmem:[%s2945 + $0xec] sm:$0xf]
    %v2986 = vld [vmem:[%s2945 + $0xf0] sm:$0xff]
    %v2987 = vld [vmem:[%s2945 + $0xf8] sm:$0xf]
    %v2988 = vld [vmem:[%s2945 + $0xfc] sm:$0xff]
    %v2989 = vld [vmem:[%s2945 + $0x104] sm:$0xf]
    %v2990 = vld [vmem:[%s2945 + $0x108] sm:$0xff]
    %v2991 = vld [vmem:[%s2945 + $0x110] sm:$0xf]
    %v2992 = vld [vmem:[%s2945 + $0x114] sm:$0xff]
    %v2993 = vld [vmem:[%s2945 + $0x11c] sm:$0xf]
    %v2994 = vld [vmem:[%s2945 + $0x120] sm:$0xff]
    %v2995 = vld [vmem:[%s2945 + $0x128] sm:$0xf]
    %v2996 = vld [vmem:[%s2945 + $0x12c] sm:$0xff]
    %v2997 = vld [vmem:[%s2945 + $0x134] sm:$0xf]
    %v2998 = vld [vmem:[%s2945 + $0x138] sm:$0xff]
    %v2999 = vld [vmem:[%s2945 + $0x140] sm:$0xf]
    %v3000 = vld [vmem:[%s2945 + $0x144] sm:$0xff]
    %v3001 = vld [vmem:[%s2945 + $0x14c] sm:$0xf]
    %v3002 = vld [vmem:[%s2945 + $0x150] sm:$0xff]
    %v3003 = vld [vmem:[%s2945 + $0x158] sm:$0xf]
    %v3004 = vld [vmem:[%s2945 + $0x15c] sm:$0xff]
    %v3005 = vld [vmem:[%s2945 + $0x164] sm:$0xf]
    %v3006 = vld [vmem:[%s2945 + $0x168] sm:$0xff]
    %v3007 = vld [vmem:[%s2945 + $0x170] sm:$0xf]
    %v3008 = vld [vmem:[%s2945 + $0x174] sm:$0xff]
    %v3009 = vld [vmem:[%s2945 + $0x17c] sm:$0xf]
    %v3010 = vld [vmem:[%s2945 + $0x180] sm:$0xff]
    %v3011 = vld [vmem:[%s2945 + $0x188] sm:$0xf]
    %v3012 = vld [vmem:[%s2945 + $0x18c] sm:$0xff]
    %v3013 = vld [vmem:[%s2945 + $0x194] sm:$0xf]
    %v3014 = vld [vmem:[%s2945 + $0x198] sm:$0xff]
    %v3015 = vld [vmem:[%s2945 + $0x1a0] sm:$0xf]
    %v3016 = vld [vmem:[%s2945 + $0x1a4] sm:$0xff]
    %v3017 = vld [vmem:[%s2945 + $0x1ac] sm:$0xf]
    %v3018 = vld [vmem:[%s2945 + $0x1b0] sm:$0xff]
    %v3019 = vld [vmem:[%s2945 + $0x1b8] sm:$0xf]
    %v3020 = vld [vmem:[%s2945 + $0x1bc] sm:$0xff]
    %v3021 = vld [vmem:[%s2945 + $0x1c4] sm:$0xf]
    %v3022 = vld [vmem:[%s2945 + $0x1c8] sm:$0xff]
    %v3023 = vld [vmem:[%s2945 + $0x1d0] sm:$0xf]
    %v3024 = vld [vmem:[%s2945 + $0x1d4] sm:$0xff]
    %v3025 = vld [vmem:[%s2945 + $0x1dc] sm:$0xf]
    %v3026 = vld [vmem:[%s2945 + $0x1e0] sm:$0xff]
    %v3027 = vld [vmem:[%s2945 + $0x1e8] sm:$0xf]
    %v3028 = vld [vmem:[%s2945 + $0x1ec] sm:$0xff]
    %v3029 = vld [vmem:[%s2945 + $0x1f4] sm:$0xf]
    %v3030 = vld [vmem:[%s2945 + $0x1f8] sm:$0xff]
    %v3031 = vld [vmem:[%s2945 + $0x200] sm:$0xf]
    %v3032 = vld [vmem:[%s2945 + $0x204] sm:$0xff]
    %v3033 = vld [vmem:[%s2945 + $0x20c] sm:$0xf]
    %v3034 = vld [vmem:[%s2945 + $0x210] sm:$0x33]
    %v3035 = vld [vmem:[%s2945 + $0x218] sm:$0x3]
    %v3036 = vpack.c.bf16 %v2942, %v2939
    %v3037 = vpack.c.bf16 %v2943, %v2940
    %v3038 = vpack.c.bf16 %v2944, %v2941
    %s3039 = scalar_lea.vmem %s10, 6
    %v3040 = vld [vmem:[%s3039] sm:$0x7]
    %v3042 = vlaneseq
    %v3043 = vshrl.u32 %v3042, 7
    %v3044 = vsub.s32 0, %v3043
    %v3045 = vrot.slane %v3040, %v3044
    %v3046 = vlaneseq
    %v3047 = vshrl.u32 %v3046, 7
    %v3048 = vsub.s32 1, %v3047
    %v3049 = vrot.slane %v3040, %v3048
    %v3050 = vlaneseq
    %v3051 = vshrl.u32 %v3050, 7
    %v3052 = vsub.s32 2, %v3051
    %v3053 = vrot.slane %v3040, %v3052
    %v3147 = vunpack.c.l.b16 %v2946
    %v3148 = vunpack.c.h.b16 %v2946
    %v3149 = vunpack.c.l.b16 %v2947
    %v3150 = vunpack.c.l.b16 %v2948
    %v3151 = vunpack.c.h.b16 %v2948
    %v3152 = vunpack.c.l.b16 %v2949
    %v3153 = vunpack.c.l.b16 %v2950
    %v3154 = vunpack.c.h.b16 %v2950
    %v3155 = vunpack.c.l.b16 %v2951
    %v3156 = vunpack.c.l.b16 %v2952
    %v3157 = vunpack.c.h.b16 %v2952
    %v3158 = vunpack.c.l.b16 %v2953
    %v3159 = vunpack.c.l.b16 %v2954
    %v3160 = vunpack.c.h.b16 %v2954
    %v3161 = vunpack.c.l.b16 %v2955
    %v3162 = vunpack.c.l.b16 %v2956
    %v3163 = vunpack.c.h.b16 %v2956
    %v3164 = vunpack.c.l.b16 %v2957
    %v3165 = vunpack.c.l.b16 %v2958
    %v3166 = vunpack.c.h.b16 %v2958
    %v3167 = vunpack.c.l.b16 %v2959
    %v3168 = vunpack.c.l.b16 %v2960
    %v3169 = vunpack.c.h.b16 %v2960
    %v3170 = vunpack.c.l.b16 %v2961
    %v3171 = vunpack.c.l.b16 %v2962
    %v3172 = vunpack.c.h.b16 %v2962
    %v3173 = vunpack.c.l.b16 %v2963
    %v3174 = vunpack.c.l.b16 %v2964
    %v3175 = vunpack.c.h.b16 %v2964
    %v3176 = vunpack.c.l.b16 %v2965
    %v3177 = vunpack.c.l.b16 %v2966
    %v3178 = vunpack.c.h.b16 %v2966
    %v3179 = vunpack.c.l.b16 %v2967
    %v3180 = vunpack.c.l.b16 %v2968
    %v3181 = vunpack.c.h.b16 %v2968
    %v3182 = vunpack.c.l.b16 %v2969
    %v3183 = vunpack.c.l.b16 %v2970
    %v3184 = vunpack.c.h.b16 %v2970
    %v3185 = vunpack.c.l.b16 %v2971
    %v3186 = vunpack.c.l.b16 %v2972
    %v3187 = vunpack.c.h.b16 %v2972
    %v3188 = vunpack.c.l.b16 %v2973
    %v3189 = vunpack.c.l.b16 %v2974
    %v3190 = vunpack.c.h.b16 %v2974
    %v3191 = vunpack.c.l.b16 %v2975
    %v3192 = vunpack.c.l.b16 %v2976
    %v3193 = vunpack.c.h.b16 %v2976
    %v3194 = vunpack.c.l.b16 %v2977
    %v3195 = vunpack.c.l.b16 %v2978
    %v3196 = vunpack.c.h.b16 %v2978
    %v3197 = vunpack.c.l.b16 %v2979
    %v3198 = vunpack.c.l.b16 %v2980
    %v3199 = vunpack.c.h.b16 %v2980
    %v3200 = vunpack.c.l.b16 %v2981
    %v3201 = vunpack.c.l.b16 %v2982
    %v3202 = vunpack.c.h.b16 %v2982
    %v3203 = vunpack.c.l.b16 %v2983
    %v3204 = vunpack.c.l.b16 %v2984
    %v3205 = vunpack.c.h.b16 %v2984
    %v3206 = vunpack.c.l.b16 %v2985
    %v3207 = vunpack.c.l.b16 %v2986
    %v3208 = vunpack.c.h.b16 %v2986
    %v3209 = vunpack.c.l.b16 %v2987
    %v3210 = vunpack.c.l.b16 %v2988
    %v3211 = vunpack.c.h.b16 %v2988
    %v3212 = vunpack.c.l.b16 %v2989
    %v3213 = vunpack.c.l.b16 %v2990
    %v3214 = vunpack.c.h.b16 %v2990
    %v3215 = vunpack.c.l.b16 %v2991
    %v3216 = vunpack.c.l.b16 %v2992
    %v3217 = vunpack.c.h.b16 %v2992
    %v3218 = vunpack.c.l.b16 %v2993
    %v3219 = vunpack.c.l.b16 %v2994
    %v3220 = vunpack.c.h.b16 %v2994
    %v3221 = vunpack.c.l.b16 %v2995
    %v3222 = vunpack.c.l.b16 %v2996
    %v3223 = vunpack.c.h.b16 %v2996
    %v3224 = vunpack.c.l.b16 %v2997
    %v3225 = vunpack.c.l.b16 %v2998
    %v3226 = vunpack.c.h.b16 %v2998
    %v3227 = vunpack.c.l.b16 %v2999
    %v3228 = vunpack.c.l.b16 %v3000
    %v3229 = vunpack.c.h.b16 %v3000
    %v3230 = vunpack.c.l.b16 %v3001
    %v3231 = vunpack.c.l.b16 %v3002
    %v3232 = vunpack.c.h.b16 %v3002
    %v3233 = vunpack.c.l.b16 %v3003
    %v3234 = vunpack.c.l.b16 %v3004
    %v3235 = vunpack.c.h.b16 %v3004
    %v3236 = vunpack.c.l.b16 %v3005
    %v3237 = vunpack.c.l.b16 %v3006
    %v3238 = vunpack.c.h.b16 %v3006
    %v3239 = vunpack.c.l.b16 %v3007
    %v3240 = vunpack.c.l.b16 %v3008
    %v3241 = vunpack.c.h.b16 %v3008
    %v3242 = vunpack.c.l.b16 %v3009
    %v3243 = vunpack.c.l.b16 %v3010
    %v3244 = vunpack.c.h.b16 %v3010
    %v3245 = vunpack.c.l.b16 %v3011
    %v3246 = vunpack.c.l.b16 %v3012
    %v3247 = vunpack.c.h.b16 %v3012
    %v3248 = vunpack.c.l.b16 %v3013
    %v3249 = vunpack.c.l.b16 %v3014
    %v3250 = vunpack.c.h.b16 %v3014
    %v3251 = vunpack.c.l.b16 %v3015
    %v3252 = vunpack.c.l.b16 %v3016
    %v3253 = vunpack.c.h.b16 %v3016
    %v3254 = vunpack.c.l.b16 %v3017
    %v3255 = vunpack.c.l.b16 %v3018
    %v3256 = vunpack.c.h.b16 %v3018
    %v3257 = vunpack.c.l.b16 %v3019
    %v3258 = vunpack.c.l.b16 %v3020
    %v3259 = vunpack.c.h.b16 %v3020
    %v3260 = vunpack.c.l.b16 %v3021
    %v3261 = vunpack.c.l.b16 %v3022
    %v3262 = vunpack.c.h.b16 %v3022
    %v3263 = vunpack.c.l.b16 %v3023
    %v3264 = vunpack.c.l.b16 %v3024
    %v3265 = vunpack.c.h.b16 %v3024
    %v3266 = vunpack.c.l.b16 %v3025
    %v3267 = vunpack.c.l.b16 %v3026
    %v3268 = vunpack.c.h.b16 %v3026
    %v3269 = vunpack.c.l.b16 %v3027
    %v3270 = vunpack.c.l.b16 %v3028
    %v3271 = vunpack.c.h.b16 %v3028
    %v3272 = vunpack.c.l.b16 %v3029
    %v3273 = vunpack.c.l.b16 %v3030
    %v3274 = vunpack.c.h.b16 %v3030
    %v3275 = vunpack.c.l.b16 %v3031
    %v3276 = vunpack.c.l.b16 %v3032
    %v3277 = vunpack.c.h.b16 %v3032
    %v3278 = vunpack.c.l.b16 %v3033
    %v3279 = vunpack.c.l.b16 %v3034
    %v3280 = vunpack.c.h.b16 %v3034
    %v3281 = vunpack.c.l.b16 %v3035
    %v3282 = vpack.c.b16 %v3150, %v3147
    %v3283 = vpack.c.b16 %v3151, %v3148
    %v3284 = vpack.c.b16 %v3152, %v3149
    %v3285 = vpack.c.b16 %v3156, %v3153
    %v3286 = vpack.c.b16 %v3157, %v3154
    %v3287 = vpack.c.b16 %v3158, %v3155
    %v3288 = vpack.c.b16 %v3162, %v3159
    %v3289 = vpack.c.b16 %v3163, %v3160
    %v3290 = vpack.c.b16 %v3164, %v3161
    %v3291 = vpack.c.b16 %v3168, %v3165
    %v3292 = vpack.c.b16 %v3169, %v3166
    %v3293 = vpack.c.b16 %v3170, %v3167
    %v3294 = vpack.c.b16 %v3174, %v3171
    %v3295 = vpack.c.b16 %v3175, %v3172
    %v3296 = vpack.c.b16 %v3176, %v3173
    %v3297 = vpack.c.b16 %v3180, %v3177
    %v3298 = vpack.c.b16 %v3181, %v3178
    %v3299 = vpack.c.b16 %v3182, %v3179
    %v3300 = vpack.c.b16 %v3186, %v3183
    %v3301 = vpack.c.b16 %v3187, %v3184
    %v3302 = vpack.c.b16 %v3188, %v3185
    %v3303 = vpack.c.b16 %v3192, %v3189
    %v3304 = vpack.c.b16 %v3193, %v3190
    %v3305 = vpack.c.b16 %v3194, %v3191
    %v3306 = vpack.c.b16 %v3198, %v3195
    %v3307 = vpack.c.b16 %v3199, %v3196
    %v3308 = vpack.c.b16 %v3200, %v3197
    %v3309 = vpack.c.b16 %v3204, %v3201
    %v3310 = vpack.c.b16 %v3205, %v3202
    %v3311 = vpack.c.b16 %v3206, %v3203
    %v3312 = vpack.c.b16 %v3210, %v3207
    %v3313 = vpack.c.b16 %v3211, %v3208
    %v3314 = vpack.c.b16 %v3212, %v3209
    %v3315 = vpack.c.b16 %v3216, %v3213
    %v3316 = vpack.c.b16 %v3217, %v3214
    %v3317 = vpack.c.b16 %v3218, %v3215
    %v3318 = vpack.c.b16 %v3222, %v3219
    %v3319 = vpack.c.b16 %v3223, %v3220
    %v3320 = vpack.c.b16 %v3224, %v3221
    %v3321 = vpack.c.b16 %v3228, %v3225
    %v3322 = vpack.c.b16 %v3229, %v3226
    %v3323 = vpack.c.b16 %v3230, %v3227
    %v3324 = vpack.c.b16 %v3234, %v3231
    %v3325 = vpack.c.b16 %v3235, %v3232
    %v3326 = vpack.c.b16 %v3236, %v3233
    %v3327 = vpack.c.b16 %v3240, %v3237
    %v3328 = vpack.c.b16 %v3241, %v3238
    %v3329 = vpack.c.b16 %v3242, %v3239
    %v3330 = vpack.c.b16 %v3246, %v3243
    %v3331 = vpack.c.b16 %v3247, %v3244
    %v3332 = vpack.c.b16 %v3248, %v3245
    %v3333 = vpack.c.b16 %v3252, %v3249
    %v3334 = vpack.c.b16 %v3253, %v3250
    %v3335 = vpack.c.b16 %v3254, %v3251
    %v3336 = vpack.c.b16 %v3258, %v3255
    %v3337 = vpack.c.b16 %v3259, %v3256
    %v3338 = vpack.c.b16 %v3260, %v3257
    %v3339 = vpack.c.b16 %v3264, %v3261
    %v3340 = vpack.c.b16 %v3265, %v3262
    %v3341 = vpack.c.b16 %v3266, %v3263
    %v3342 = vpack.c.b16 %v3270, %v3267
    %v3343 = vpack.c.b16 %v3271, %v3268
    %v3344 = vpack.c.b16 %v3272, %v3269
    %v3345 = vpack.c.b16 %v3276, %v3273
    %v3346 = vpack.c.b16 %v3277, %v3274
    %v3347 = vpack.c.b16 %v3278, %v3275
    %v3348 = vpack.c.b16 %v3279, %v3279
    %v3349 = vpack.c.b16 %v3280, %v3280
    %v3350 = vpack.c.b16 %v3281, %v3281
    %v3418 = vsel %vm970, %v3038, 0
    %v3421 = vsel %vm974, %v3348, 0
    %v3424 = vsel %vm974, %v3349, 0
    %v3427 = vsel %vm974, %v3350, 0
    %3429 = vmatprep.subr.bf16.mxu0 %v3283
    %3430 = vmatpush1.bf16.msra.mxu0 %v3282
    %3431 = vmatprep.subr.bf16.mxu0 %v3286
    %3432 = vmatpush1.bf16.msra.mxu0 %v3285
    %3433 = vmatprep.subr.bf16.mxu0 %v3289
    %3434 = vmatpush1.bf16.msra.mxu0 %v3288
    %3435 = vmatprep.subr.bf16.mxu0 %v3292
    %3436 = vmatpush1.bf16.msra.mxu0 %v3291
    %3437 = vmatprep.subr.bf16.mxu0 %v3295
    %3438 = vmatpush1.bf16.msra.mxu0 %v3294
    %3439 = vmatprep.subr.bf16.mxu0 %v3298
    %3440 = vmatpush1.bf16.msra.mxu0 %v3297
    %3441 = vmatprep.subr.bf16.mxu0 %v3301
    %3442 = vmatpush1.bf16.msra.mxu0 %v3300
    %3443 = vmatprep.subr.bf16.mxu0 %v3304
    %3444 = vmatpush1.bf16.msra.mxu0 %v3303
    %3445 = vmatprep.subr.bf16.mxu0 %v3307
    %3446 = vmatpush1.bf16.msra.mxu0 %v3306
    %3447 = vmatprep.subr.bf16.mxu0 %v3310
    %3448 = vmatpush1.bf16.msra.mxu0 %v3309
    %3449 = vmatprep.subr.bf16.mxu0 %v3313
    %3450 = vmatpush1.bf16.msra.mxu0 %v3312
    %3451 = vmatprep.subr.bf16.mxu0 %v3316
    %3452 = vmatpush1.bf16.msra.mxu0 %v3315
    %3453 = vmatprep.subr.bf16.mxu0 %v3319
    %3454 = vmatpush1.bf16.msra.mxu0 %v3318
    %3455 = vmatprep.subr.bf16.mxu0 %v3322
    %3456 = vmatpush1.bf16.msra.mxu0 %v3321
    %3457 = vmatprep.subr.bf16.mxu0 %v3325
    %3458 = vmatpush1.bf16.msra.mxu0 %v3324
    %3459 = vmatprep.subr.bf16.mxu0 %v3328
    %3460 = vmatpush1.bf16.msra.mxu0 %v3327
    %3461 = vmatprep.mubr.bf16.mxu0 %v3037
    %3462 = vmatmul.mubr.bf16.gmra.mrb[0].mxu0 %v3036
    %v3463 = vpop.f32.mrb[0].mxu0
    %v3464 = vadd.f32 %v3045, %v3463
    %v3465 = vpop.f32.mrb[0].mxu0
    %v3466 = vadd.f32 %v3049, %v3465
    %v3467 = vpop.f32.mrb[0].mxu0
    %v3468 = vadd.f32 %v3045, %v3467
    %v3469 = vpop.f32.mrb[0].mxu0
    %v3470 = vadd.f32 %v3049, %v3469
    %3471 = vdwg.mxu0
    %3472 = vmatprep.subr.bf16.mxu0 %v3331
    %3473 = vmatpush1.bf16.msra.mxu0 %v3330
    %3474 = vmatprep.subr.bf16.mxu0 %v3334
    %3475 = vmatpush1.bf16.msra.mxu0 %v3333
    %3476 = vmatprep.subr.bf16.mxu0 %v3337
    %3477 = vmatpush1.bf16.msra.mxu0 %v3336
    %3478 = vmatprep.subr.bf16.mxu0 %v3340
    %3479 = vmatpush1.bf16.msra.mxu0 %v3339
    %3480 = vmatprep.subr.bf16.mxu0 %v3343
    %3481 = vmatpush1.bf16.msra.mxu0 %v3342
    %3482 = vmatprep.subr.bf16.mxu0 %v3346
    %3483 = vmatpush1.bf16.msra.mxu0 %v3345
    %3484 = vmatprep.subr.bf16.mxu0 %v3424
    %3485 = vmatpush1.bf16.msra.mxu0 %v3421
    %3486 = vmatprep.subr.bf16.mxu0 0
    %3487 = vmatpush1.bf16.msra.mxu0 0
    %3488 = vmatprep.subr.bf16.mxu0 0
    %3489 = vmatpush1.bf16.msra.mxu0 0
    %3490 = vmatprep.subr.bf16.mxu0 0
    %3491 = vmatpush1.bf16.msra.mxu0 0
    %3492 = vmatprep.subr.bf16.mxu0 0
    %3493 = vmatpush1.bf16.msra.mxu0 0
    %3494 = vmatprep.subr.bf16.mxu0 0
    %3495 = vmatpush1.bf16.msra.mxu0 0
    %3496 = vmatprep.subr.bf16.mxu0 0
    %3497 = vmatpush1.bf16.msra.mxu0 0
    %3498 = vmatprep.subr.bf16.mxu0 0
    %3499 = vmatpush1.bf16.msra.mxu0 0
    %3500 = vmatprep.subr.bf16.mxu0 0
    %3501 = vmatpush1.bf16.msra.mxu0 0
    %3502 = vmatprep.subr.bf16.mxu0 0
    %3503 = vmatpush1.bf16.msra.mxu0 0
    %3504 = vmatprep.mubr.bf16.mxu0 0
    %3505 = vmatmul.mubr.bf16.gmra.mrb[0].mxu0 %v3418
    %v3506 = vpop.f32.mrb[0].mxu0
    %v3507 = vadd.f32 %v3464, %v3506
    %v3508 = vpop.f32.mrb[0].mxu0
    %v3509 = vadd.f32 %v3466, %v3508
    %v3510 = vpop.f32.mrb[0].mxu0
    %v3511 = vadd.f32 %v3468, %v3510
    %v3512 = vpop.f32.mrb[0].mxu0
    %v3513 = vadd.f32 %v3470, %v3512
    %3514 = vdwg.mxu0
    %3515 = vmatprep.subr.bf16.mxu0 0
    %3516 = vmatpush1.bf16.msra.mxu0 %v3284
    %3517 = vmatprep.subr.bf16.mxu0 0
    %3518 = vmatpush1.bf16.msra.mxu0 %v3287
    %3519 = vmatprep.subr.bf16.mxu0 0
    %3520 = vmatpush1.bf16.msra.mxu0 %v3290
    %3521 = vmatprep.subr.bf16.mxu0 0
    %3522 = vmatpush1.bf16.msra.mxu0 %v3293
    %3523 = vmatprep.subr.bf16.mxu0 0
    %3524 = vmatpush1.bf16.msra.mxu0 %v3296
    %3525 = vmatprep.subr.bf16.mxu0 0
    %3526 = vmatpush1.bf16.msra.mxu0 %v3299
    %3527 = vmatprep.subr.bf16.mxu0 0
    %3528 = vmatpush1.bf16.msra.mxu0 %v3302
    %3529 = vmatprep.subr.bf16.mxu0 0
    %3530 = vmatpush1.bf16.msra.mxu0 %v3305
    %3531 = vmatprep.subr.bf16.mxu0 0
    %3532 = vmatpush1.bf16.msra.mxu0 %v3308
    %3533 = vmatprep.subr.bf16.mxu0 0
    %3534 = vmatpush1.bf16.msra.mxu0 %v3311
    %3535 = vmatprep.subr.bf16.mxu0 0
    %3536 = vmatpush1.bf16.msra.mxu0 %v3314
    %3537 = vmatprep.subr.bf16.mxu0 0
    %3538 = vmatpush1.bf16.msra.mxu0 %v3317
    %3539 = vmatprep.subr.bf16.mxu0 0
    %3540 = vmatpush1.bf16.msra.mxu0 %v3320
    %3541 = vmatprep.subr.bf16.mxu0 0
    %3542 = vmatpush1.bf16.msra.mxu0 %v3323
    %3543 = vmatprep.subr.bf16.mxu0 0
    %3544 = vmatpush1.bf16.msra.mxu0 %v3326
    %3545 = vmatprep.subr.bf16.mxu0 0
    %3546 = vmatpush1.bf16.msra.mxu0 %v3329
    %3547 = vmatprep.mubr.bf16.mxu0 %v3037
    %3548 = vmatmul.mubr.bf16.gmra.mrb[0].mxu0 %v3036
    %v3549 = vpop.f32.mrb[0].mxu0
    %v3550 = vadd.f32 %v3053, %v3549
    %v3551 = vpop.f32.mrb[0].mxu0
    %v3552 = vpop.f32.mrb[0].mxu0
    %v3553 = vadd.f32 %v3053, %v3552
    %v3554 = vpop.f32.mrb[0].mxu0
    %3555 = vdwg.mxu0
    %3556 = vmatprep.subr.bf16.mxu0 0
    %3557 = vmatpush1.bf16.msra.mxu0 %v3332
    %3558 = vmatprep.subr.bf16.mxu0 0
    %3559 = vmatpush1.bf16.msra.mxu0 %v3335
    %3560 = vmatprep.subr.bf16.mxu0 0
    %3561 = vmatpush1.bf16.msra.mxu0 %v3338
    %3562 = vmatprep.subr.bf16.mxu0 0
    %3563 = vmatpush1.bf16.msra.mxu0 %v3341
    %3564 = vmatprep.subr.bf16.mxu0 0
    %3565 = vmatpush1.bf16.msra.mxu0 %v3344
    %3566 = vmatprep.subr.bf16.mxu0 0
    %3567 = vmatpush1.bf16.msra.mxu0 %v3347
    %3568 = vmatprep.subr.bf16.mxu0 0
    %3569 = vmatpush1.bf16.msra.mxu0 %v3427
    %3570 = vmatprep.subr.bf16.mxu0 0
    %3571 = vmatpush1.bf16.msra.mxu0 0
    %3572 = vmatprep.subr.bf16.mxu0 0
    %3573 = vmatpush1.bf16.msra.mxu0 0
    %3574 = vmatprep.subr.bf16.mxu0 0
    %3575 = vmatpush1.bf16.msra.mxu0 0
    %3576 = vmatprep.subr.bf16.mxu0 0
    %3577 = vmatpush1.bf16.msra.mxu0 0
    %3578 = vmatprep.subr.bf16.mxu0 0
    %3579 = vmatpush1.bf16.msra.mxu0 0
    %3580 = vmatprep.subr.bf16.mxu0 0
    %3581 = vmatpush1.bf16.msra.mxu0 0
    %3582 = vmatprep.subr.bf16.mxu0 0
    %3583 = vmatpush1.bf16.msra.mxu0 0
    %3584 = vmatprep.subr.bf16.mxu0 0
    %3585 = vmatpush1.bf16.msra.mxu0 0
    %3586 = vmatprep.subr.bf16.mxu0 0
    %3587 = vmatpush1.bf16.msra.mxu0 0
    %3588 = vmatprep.mubr.bf16.mxu0 0
    %3589 = vmatmul.mubr.bf16.gmra.mrb[0].mxu0 %v3418
    %v3590 = vpop.f32.mrb[0].mxu0
    %v3591 = vadd.f32 %v3550, %v3590
    %v3592 = vpop.f32.mrb[0].mxu0
    %v3593 = vpop.f32.mrb[0].mxu0
    %v3594 = vadd.f32 %v3553, %v3593
    %v3595 = vpop.f32.mrb[0].mxu0
    %3596 = vdwg.mxu0
    %3597 = vst [vmem:[#allocation14] sm:$0xff] %v3507
    %3598 = vst [vmem:[#allocation14 + $0x8] sm:$0xff] %v3509
    %3599 = vst.msk [vmem:[#allocation14 + $0x10] sm:$0xff] %vm970, %v3591
    %3600 = vst [vmem:[#allocation14 + $0x18] sm:$0xff] %v3511
    %3601 = vst [vmem:[#allocation14 + $0x20] sm:$0xff] %v3513
    %3602 = vst.msk [vmem:[#allocation14 + $0x28] sm:$0xff] %vm970, %v3594
    // Predicated region
    $region74: #{tpu_custom_call.1} parent=1 // pred_check
      _
    $region75: #{tpu_custom_call.1} parent=1 // pred_check_branch
      %3604 = sbr.rel (0) target = $region77
    $region76: #{tpu_custom_call.1} parent=1 // pred_region
      %s3606 = ssub.s32 768, 768
      %3607 = vsyncadd [#allocation4], %s3606
      %s3608 = sshll.u32 [#allocation14], 4
      %s3609 = int_to_ptr.vmem [resolvable:$true] %s3608
      %3614 = dma.vmem_to_hbm [thread:$0]  %s3609, 768, %s11, [#allocation4], 384, 384, 24
    $region77: #{tpu_custom_call.1} parent=1 // pred_fallthru
      _
    // Predicated region
    $region78: #{tpu_custom_call.1} parent=1 // pred_check
      _
    $region79: #{tpu_custom_call.1} parent=1 // pred_check_branch
      %3616 = sbr.rel (0) target = $region81
    $region80: #{tpu_custom_call.1} parent=1 // pred_region
      %3617 = dma.done [#allocation4], 768
    $region81: #{tpu_custom_call.1} parent=1 // pred_fallthru
      _
    %3618 = vsyncpa [#allocation3], 1
    %3619 = vsyncpa [#allocation6], 1
    %3620 = vsyncpa [#allocation9], 1
    %3621 = vsyncpa [#allocation12], 1
    %3622 = vsyncpa [#allocation4], 1

</llo_original>
